<compile_context>
chip_gen: v7x
topology: tpu7x:2x2x1
jax: 0.10.0
libtpu: 0.0.40
codegen_flags: <defaults>
</compile_context>

<pallas_src>
import math
import functools

import jax
import jax.numpy as jnp
from jax import lax
from jax.experimental import pallas as pl
from jax.experimental.pallas import tpu as pltpu

NEG_CAUSAL = -65536.0   # matches TransformerDecoder.get_future_masks fill value
NEG_PAD = -1e9          # stand-in for float("-inf") key-padding fill (keeps rows finite)

VMEM_LIMIT = 48 * 1024 * 1024   # explicit budget; safe on v7x (64 MiB physical)


def _tile(dim, pref=256):
    """Adaptive tile: use `pref` if it divides the dim, else the full dim."""
    return pref if dim % pref == 0 else dim


def _mosaic(sem):
    return pltpu.CompilerParams(dimension_semantics=sem, vmem_limit_bytes=VMEM_LIMIT)


# ----------------------------- fused matmul-ish kernels -----------------------------

def _ln_matmul_kernel(x_ref, g_ref, b_ref, w_ref, wb_ref, o_ref, *, eps):
    x = x_ref[...].astype(jnp.float32)
    mu = jnp.mean(x, axis=-1, keepdims=True)
    xc = x - mu
    var = jnp.mean(xc * xc, axis=-1, keepdims=True)
    y = xc * lax.rsqrt(var + eps) * g_ref[...] + b_ref[...]
    acc = jnp.dot(y.astype(jnp.bfloat16), w_ref[...], preferred_element_type=jnp.float32)
    o_ref[...] = (acc + wb_ref[...]).astype(o_ref.dtype)


def ln_matmul(x, g, b, w, wb, eps=1e-5):
    """out = LayerNorm(x) @ w + wb   (w is bf16)."""
    M, D = x.shape
    N = w.shape[1]
    tm = _tile(M)
    return pl.pallas_call(
        functools.partial(_ln_matmul_kernel, eps=eps),
        out_shape=jax.ShapeDtypeStruct((M, N), jnp.float32),
        grid=(M // tm,),
        in_specs=[pl.BlockSpec((tm, D), lambda i: (i, 0)),
                  pl.BlockSpec((1, D), lambda i: (0, 0)),
                  pl.BlockSpec((1, D), lambda i: (0, 0)),
                  pl.BlockSpec((D, N), lambda i: (0, 0)),
                  pl.BlockSpec((1, N), lambda i: (0, 0))],
        out_specs=pl.BlockSpec((tm, N), lambda i: (i, 0)),
        compiler_params=_mosaic(("parallel",)),
    )(x, g.reshape(1, D), b.reshape(1, D), w, wb.reshape(1, N))


def _linear_kernel(x_ref, w_ref, b_ref, o_ref):
    acc = jnp.dot(x_ref[...].astype(jnp.bfloat16), w_ref[...],
                  preferred_element_type=jnp.float32)
    o_ref[...] = (acc + b_ref[...]).astype(o_ref.dtype)


def linear(x, w, b):
    M, K = x.shape
    N = w.shape[1]
    tm = _tile(M)
    return pl.pallas_call(
        _linear_kernel,
        out_shape=jax.ShapeDtypeStruct((M, N), jnp.float32),
        grid=(M // tm,),
        in_specs=[pl.BlockSpec((tm, K), lambda i: (i, 0)),
                  pl.BlockSpec((K, N), lambda i: (0, 0)),
                  pl.BlockSpec((1, N), lambda i: (0, 0))],
        out_specs=pl.BlockSpec((tm, N), lambda i: (i, 0)),
        compiler_params=_mosaic(("parallel",)),
    )(x, w, b.reshape(1, N))


def _proj_res_kernel(a_ref, w_ref, b_ref, r_ref, o_ref):
    acc = jnp.dot(a_ref[...].astype(jnp.bfloat16), w_ref[...],
                  preferred_element_type=jnp.float32)
    o_ref[...] = (acc + b_ref[...] + r_ref[...]).astype(o_ref.dtype)


def proj_residual(a, w, b, res):
    """out = res + a @ w + b   (output projection fused with the residual add)."""
    M, K = a.shape
    N = w.shape[1]
    tm = _tile(M)
    return pl.pallas_call(
        _proj_res_kernel,
        out_shape=jax.ShapeDtypeStruct((M, N), jnp.float32),
        grid=(M // tm,),
        in_specs=[pl.BlockSpec((tm, K), lambda i: (i, 0)),
                  pl.BlockSpec((K, N), lambda i: (0, 0)),
                  pl.BlockSpec((1, N), lambda i: (0, 0)),
                  pl.BlockSpec((tm, N), lambda i: (i, 0))],
        out_specs=pl.BlockSpec((tm, N), lambda i: (i, 0)),
        compiler_params=_mosaic(("parallel",)),
    )(a, w, b.reshape(1, N), res)


def _ln_ffn_res_kernel(x_ref, g_ref, b_ref, w1_ref, b1_ref, w2_ref, b2_ref, o_ref, *, eps):
    x = x_ref[...].astype(jnp.float32)
    mu = jnp.mean(x, axis=-1, keepdims=True)
    xc = x - mu
    var = jnp.mean(xc * xc, axis=-1, keepdims=True)
    y = xc * lax.rsqrt(var + eps) * g_ref[...] + b_ref[...]
    h = jnp.dot(y.astype(jnp.bfloat16), w1_ref[...],
                preferred_element_type=jnp.float32) + b1_ref[...]
    h = jnp.maximum(h, 0.0)                                   # ReLU
    f = jnp.dot(h.astype(jnp.bfloat16), w2_ref[...],
                preferred_element_type=jnp.float32) + b2_ref[...]
    o_ref[...] = (x + f).astype(o_ref.dtype)                  # residual = pre-LN x


def ln_ffn_residual(x, g, b, w1, b1, w2, b2, eps=1e-5):
    M, D = x.shape
    F = w1.shape[1]
    tm = _tile(M)
    return pl.pallas_call(
        functools.partial(_ln_ffn_res_kernel, eps=eps),
        out_shape=jax.ShapeDtypeStruct((M, D), jnp.float32),
        grid=(M // tm,),
        in_specs=[pl.BlockSpec((tm, D), lambda i: (i, 0)),
                  pl.BlockSpec((1, D), lambda i: (0, 0)),
                  pl.BlockSpec((1, D), lambda i: (0, 0)),
                  pl.BlockSpec((D, F), lambda i: (0, 0)),
                  pl.BlockSpec((1, F), lambda i: (0, 0)),
                  pl.BlockSpec((F, D), lambda i: (0, 0)),
                  pl.BlockSpec((1, D), lambda i: (0, 0))],
        out_specs=pl.BlockSpec((tm, D), lambda i: (i, 0)),
        compiler_params=_mosaic(("parallel",)),
    )(x, g.reshape(1, D), b.reshape(1, D), w1, b1.reshape(1, F), w2, b2.reshape(1, D))


def _ln_logits_kernel(x_ref, g_ref, b_ref, w_ref, o_ref, *, eps):
    x = x_ref[...].astype(jnp.float32)
    mu = jnp.mean(x, axis=-1, keepdims=True)
    xc = x - mu
    var = jnp.mean(xc * xc, axis=-1, keepdims=True)
    y = xc * lax.rsqrt(var + eps) * g_ref[...] + b_ref[...]
    o_ref[...] = jnp.dot(y.astype(jnp.bfloat16), w_ref[...],
                         preferred_element_type=jnp.float32).astype(o_ref.dtype)


def ln_logits(x, g, b, w, eps=1e-5):
    """logits = LayerNorm(x) @ w   (fc bias=False), tiled over rows and vocab."""
    M, D = x.shape
    V = w.shape[1]
    tm = _tile(M)
    tv = _tile(V, 512)
    return pl.pallas_call(
        functools.partial(_ln_logits_kernel, eps=eps),
        out_shape=jax.ShapeDtypeStruct((M, V), jnp.float32),
        grid=(M // tm, V // tv),
        in_specs=[pl.BlockSpec((tm, D), lambda i, j: (i, 0)),
                  pl.BlockSpec((1, D), lambda i, j: (0, 0)),
                  pl.BlockSpec((1, D), lambda i, j: (0, 0)),
                  pl.BlockSpec((D, tv), lambda i, j: (0, j))],
        out_specs=pl.BlockSpec((tm, tv), lambda i, j: (i, j)),
        compiler_params=_mosaic(("parallel", "parallel")),
    )(x, g.reshape(1, D), b.reshape(1, D), w)


# ----------------------------- attention kernels -----------------------------

def _self_attn_kernel(qkv_ref, pad_ref, o_ref, *, num_heads, scale):
    qkv = qkv_ref[0]                    # (T, 3D) f32
    pad = pad_ref[0]                    # (1, T)  additive key-padding bias
    T = qkv.shape[0]
    D = qkv.shape[1] // 3
    dh = D // num_heads
    # causal mask built in-kernel (no (B,H,T,T) bias in HBM)
    row = lax.broadcasted_iota(jnp.int32, (T, T), 0)
    col = lax.broadcasted_iota(jnp.int32, (T, T), 1)
    bias = jnp.where(row < col, NEG_CAUSAL, 0.0).astype(jnp.float32) + pad
    outs = []
    for h in range(num_heads):          # static unroll over heads
        q = (qkv[:, h * dh:(h + 1) * dh] * scale).astype(jnp.bfloat16)
        k = qkv[:, D + h * dh:D + (h + 1) * dh].astype(jnp.bfloat16)
        v = qkv[:, 2 * D + h * dh:2 * D + (h + 1) * dh].astype(jnp.bfloat16)
        s = jnp.dot(q, k.T, preferred_element_type=jnp.float32) + bias
        m = jnp.max(s, axis=-1, keepdims=True)
        p = jnp.exp(s - m)
        denom = jnp.sum(p, axis=-1, keepdims=True)
        o = jnp.dot(p.astype(jnp.bfloat16), v, preferred_element_type=jnp.float32)
        outs.append(o * pl.reciprocal(denom, approx=True))
    o_ref[0] = jnp.concatenate(outs, axis=-1).astype(o_ref.dtype)


def self_attention(qkv, pad_bias, num_heads):
    # qkv: (B, T, 3D) f32, pad_bias: (B, 1, T) additive f32
    B, T, D3 = qkv.shape
    D = D3 // 3
    scale = 1.0 / math.sqrt(D // num_heads)
    return pl.pallas_call(
        functools.partial(_self_attn_kernel, num_heads=num_heads, scale=scale),
        out_shape=jax.ShapeDtypeStruct((B, T, D), jnp.float32),
        grid=(B,),
        in_specs=[pl.BlockSpec((1, T, D3), lambda b: (b, 0, 0)),
                  pl.BlockSpec((1, 1, T), lambda b: (b, 0, 0))],
        out_specs=pl.BlockSpec((1, T, D), lambda b: (b, 0, 0)),
        compiler_params=_mosaic(("parallel",)),
    )(qkv, pad_bias)


def _cross_attn_kernel(q_ref, kv_ref, pad_ref, o_ref, *, num_heads, scale):
    q_all = q_ref[0]                    # (T, D)
    kv = kv_ref[0]                      # (S, 2D)
    pad = pad_ref[0]                    # (1, S)
    D = q_all.shape[1]
    dh = D // num_heads
    outs = []
    for h in range(num_heads):
        q = (q_all[:, h * dh:(h + 1) * dh] * scale).astype(jnp.bfloat16)
        k = kv[:, h * dh:(h + 1) * dh].astype(jnp.bfloat16)
        v = kv[:, D + h * dh:D + (h + 1) * dh].astype(jnp.bfloat16)
        s = jnp.dot(q, k.T, preferred_element_type=jnp.float32) + pad
        m = jnp.max(s, axis=-1, keepdims=True)
        p = jnp.exp(s - m)
        denom = jnp.sum(p, axis=-1, keepdims=True)
        o = jnp.dot(p.astype(jnp.bfloat16), v, preferred_element_type=jnp.float32)
        outs.append(o * pl.reciprocal(denom, approx=True))
    o_ref[0] = jnp.concatenate(outs, axis=-1).astype(o_ref.dtype)


def cross_attention(q, kv, pad_bias, num_heads):
    # q: (B, T, D), kv: (B, S, 2D), pad_bias: (B, 1, S)
    B, T, D = q.shape
    S = kv.shape[1]
    scale = 1.0 / math.sqrt(D // num_heads)
    return pl.pallas_call(
        functools.partial(_cross_attn_kernel, num_heads=num_heads, scale=scale),
        out_shape=jax.ShapeDtypeStruct((B, T, D), jnp.float32),
        grid=(B,),
        in_specs=[pl.BlockSpec((1, T, D), lambda b: (b, 0, 0)),
                  pl.BlockSpec((1, S, 2 * D), lambda b: (b, 0, 0)),
                  pl.BlockSpec((1, 1, S), lambda b: (b, 0, 0))],
        out_specs=pl.BlockSpec((1, T, D), lambda b: (b, 0, 0)),
        compiler_params=_mosaic(("parallel",)),
    )(q, kv, pad_bias)


# ----------------------------- model glue (plain JAX) -----------------------------

def transformer_decoder_forward(tgt_tokens, encoder_out, encoder_padding_mask, params, cfg):
    B, T = tgt_tokens.shape
    S = encoder_out.shape[1]
    D, H = cfg["embed_dim"], cfg["num_heads"]

    # TODO(synk): embedding table gather stays in plain JAX (no Pallas gather needed at this scale).
    x = params["tok_emb"][tgt_tokens] * math.sqrt(D) + params["pos_emb"][:T][None, :, :]
    x = x.astype(jnp.float32).reshape(B * T, D)

    # Small additive key-padding biases; causal mask is generated inside the attention kernel.
    self_pad = jnp.where(tgt_tokens == cfg["padding_idx"], NEG_PAD, 0.0)
    self_pad = self_pad.astype(jnp.float32).reshape(B, 1, T)
    cross_pad = jnp.where(encoder_padding_mask, NEG_PAD, 0.0)
    cross_pad = cross_pad.astype(jnp.float32).reshape(B, 1, S)
    enc2d = encoder_out.astype(jnp.float32).reshape(B * S, D)

    def layer_step(x, p):
        # self-attention block (pre-LN): LN + fused QKV projection, attention, out-proj + residual
        qkv = ln_matmul(x, p["ln_self_g"], p["ln_self_b"], p["w_qkv"], p["b_qkv"])
        a = self_attention(qkv.reshape(B, T, 3 * D), self_pad, H).reshape(B * T, D)
        x = proj_residual(a, p["self_wo"], p["self_bo"], x)
        # cross-attention block: LN + Q projection; encoder K/V via one fused [D,2D] projection
        q = ln_matmul(x, p["ln_cross_g"], p["ln_cross_b"], p["cross_wq"], p["cross_bq"])
        kv = linear(enc2d, p["cross_wkv"], p["cross_bkv"])
        a = cross_attention(q.reshape(B, T, D), kv.reshape(B, S, 2 * D), cross_pad, H)
        x = proj_residual(a.reshape(B * T, D), p["cross_wo"], p["cross_bo"], x)
        # feed-forward block: LN + FC1 + ReLU + FC2 + residual, all in one kernel
        x = ln_ffn_residual(x, p["ln_ffn_g"], p["ln_ffn_b"],
                            p["fc1_w"], p["fc1_b"], p["fc2_w"], p["fc2_b"])
        return x, None

    x, _ = lax.scan(layer_step, x, params["layers"])

    logits = ln_logits(x, params["final_ln_g"], params["final_ln_b"], params["fc_w"])
    return logits.reshape(B, T, cfg["vocab_size"])


def init_params(key, cfg):
    D, F, V, L = cfg["embed_dim"], cfg["ffn_dim"], cfg["vocab_size"], cfg["num_layers"]

    def nrm(k, shape, scale=0.02, dtype=jnp.float32):
        return (scale * jax.random.normal(k, shape)).astype(dtype)

    ks = jax.random.split(key, 3 + L)
    tok_emb = nrm(ks[0], (V, D)).at[cfg["padding_idx"]].set(0.0)
    pos_emb = nrm(ks[1], (cfg["max_positions"], D))

    def layer_params(k):
        k8 = jax.random.split(k, 7)
        return {
            "ln_self_g": jnp.ones((D,), jnp.float32), "ln_self_b": jnp.zeros((D,), jnp.float32),
            "w_qkv": nrm(k8[0], (D, 3 * D), dtype=jnp.bfloat16),
            "b_qkv": jnp.zeros((3 * D,), jnp.float32),
            "self_wo": nrm(k8[1], (D, D), dtype=jnp.bfloat16),
            "self_bo": jnp.zeros((D,), jnp.float32),
            "ln_cross_g": jnp.ones((D,), jnp.float32), "ln_cross_b": jnp.zeros((D,), jnp.float32),
            "cross_wq": nrm(k8[2], (D, D), dtype=jnp.bfloat16),
            "cross_bq": jnp.zeros((D,), jnp.float32),
            "cross_wkv": nrm(k8[3], (D, 2 * D), dtype=jnp.bfloat16),
            "cross_bkv": jnp.zeros((2 * D,), jnp.float32),
            "cross_wo": nrm(k8[4], (D, D), dtype=jnp.bfloat16),
            "cross_bo": jnp.zeros((D,), jnp.float32),
            "ln_ffn_g": jnp.ones((D,), jnp.float32), "ln_ffn_b": jnp.zeros((D,), jnp.float32),
            "fc1_w": nrm(k8[5], (D, F), dtype=jnp.bfloat16), "fc1_b": jnp.zeros((F,), jnp.float32),
            "fc2_w": nrm(k8[6], (F, D), dtype=jnp.bfloat16), "fc2_b": jnp.zeros((D,), jnp.float32),
        }

    layer_list = [layer_params(ks[3 + i]) for i in range(L)]
    layers = jax.tree_util.tree_map(lambda *xs: jnp.stack(xs), *layer_list)   # stacked for lax.scan

    return {"tok_emb": tok_emb, "pos_emb": pos_emb, "layers": layers,
            "final_ln_g": jnp.ones((D,), jnp.float32),
            "final_ln_b": jnp.zeros((D,), jnp.float32),
            "fc_w": nrm(ks[2], (D, V), dtype=jnp.bfloat16)}


if __name__ == "__main__":
    cfg = dict(embed_dim=32, num_heads=4, num_layers=2, ffn_dim=64,
               vocab_size=64, padding_idx=1, max_positions=32)

    key = jax.random.PRNGKey(0)
    pkey, tkey, ekey = jax.random.split(key, 3)
    params = init_params(pkey, cfg)

    B, T, S = 2, 8, 10
    tgt_tokens = jax.random.randint(tkey, (B, T), 2, cfg["vocab_size"])
    tgt_tokens = tgt_tokens.at[1, -2:].set(cfg["padding_idx"])       # exercise target key padding
    encoder_out = jax.random.normal(ekey, (B, S, cfg["embed_dim"]), jnp.float32)
    encoder_padding_mask = jnp.zeros((B, S), jnp.bool_).at[1, -3:].set(True)

    fwd = jax.jit(functools.partial(transformer_decoder_forward, cfg=cfg))
    logits = fwd(tgt_tokens, encoder_out, encoder_padding_mask, params)
    logits = jax.block_until_ready(logits)

    assert logits.shape == (B, T, cfg["vocab_size"]), logits.shape
    assert bool(jnp.all(jnp.isfinite(logits)))
    print("KERNEL_OK")
</pallas_src>

<mosaic_0001>
module attributes {stable_mosaic.version = 11 : i64} {
  func.func @_proj_res_kernel(%arg0: i32, %arg1: memref<16x32xf32, #tpu.memory_space<vmem>>, %arg2: memref<32x32xbf16, #tpu.memory_space<vmem>>, %arg3: memref<1x32xf32, #tpu.memory_space<vmem>>, %arg4: memref<16x32xf32, #tpu.memory_space<vmem>>, %arg5: memref<16x32xf32, #tpu.memory_space<vmem>>) attributes {dimension_semantics = [#tpu.dimension_semantics<parallel>], iteration_bounds = array<i64: 1>, scalar_prefetch = 0 : i64, scratch_operands = 0 : i64, tpu.core_type = #tpu.core_type<tc>, window_params = [{transform_indices = @transform_0, window_bounds = array<i64: 16, 32>}, {pipeline_mode = #tpu.pipeline_mode<synchronous>, transform_indices = @transform_1, window_bounds = array<i64: 32, 32>}, {pipeline_mode = #tpu.pipeline_mode<synchronous>, transform_indices = @transform_2, window_bounds = array<i64: 1, 32>}, {transform_indices = @transform_3, window_bounds = array<i64: 16, 32>}, {transform_indices = @transform_4, window_bounds = array<i64: 16, 32>}]} {
    %c0 = arith.constant 0 : index
    %c0_0 = arith.constant 0 : index
    %0 = vector.load %arg1[%c0, %c0_0] : memref<16x32xf32, #tpu.memory_space<vmem>>, vector<16x32xf32>
    %1 = arith.truncf %0 : vector<16x32xf32> to vector<16x32xbf16>
    %c0_1 = arith.constant 0 : index
    %c0_2 = arith.constant 0 : index
    %2 = vector.load %arg2[%c0_1, %c0_2] : memref<32x32xbf16, #tpu.memory_space<vmem>>, vector<32x32xbf16>
    %cst = arith.constant dense<0.000000e+00> : vector<16x32xf32>
    %3 = tpu.matmul %1, %2, %cst {dimension_numbers = #tpu.dot_dimension_numbers<[1], [0], [0], [1], [0, 0, 1, 1], [], []>} : vector<16x32xbf16>, vector<32x32xbf16>, vector<16x32xf32> -> vector<16x32xf32>
    %c0_3 = arith.constant 0 : index
    %c0_4 = arith.constant 0 : index
    %4 = vector.load %arg3[%c0_3, %c0_4] : memref<1x32xf32, #tpu.memory_space<vmem>>, vector<1x32xf32>
    %5 = vector.broadcast %4 : vector<1x32xf32> to vector<16x32xf32>
    %6 = arith.addf %3, %5 : vector<16x32xf32>
    %c0_5 = arith.constant 0 : index
    %c0_6 = arith.constant 0 : index
    %7 = vector.load %arg4[%c0_5, %c0_6] : memref<16x32xf32, #tpu.memory_space<vmem>>, vector<16x32xf32>
    %8 = arith.addf %6, %7 : vector<16x32xf32>
    %c0_7 = arith.constant 0 : index
    %c0_8 = arith.constant 0 : index
    %9 = vector.load %arg5[%c0_7, %c0_8] : memref<16x32xf32, #tpu.memory_space<vmem>>, vector<16x32xf32>
    tpu.vector_store %arg5[%c0_7, %c0_8], %8 {strides = array<i32>} : memref<16x32xf32, #tpu.memory_space<vmem>>, vector<16x32xf32>,
    return
  }
  func.func @transform_0(%arg0: i32) -> (i32, i32) {
    %c0_i32 = arith.constant 0 : i32
    %c0_i32_0 = arith.constant 0 : i32
    return %arg0, %c0_i32 : i32, i32
  }
  func.func @transform_1(%arg0: i32) -> (i32, i32) {
    %c0_i32 = arith.constant 0 : i32
    %c0_i32_0 = arith.constant 0 : i32
    %c0_i32_1 = arith.constant 0 : i32
    return %c0_i32, %c0_i32_0 : i32, i32
  }
  func.func @transform_2(%arg0: i32) -> (i32, i32) {
    %c0_i32 = arith.constant 0 : i32
    %c0_i32_0 = arith.constant 0 : i32
    %c0_i32_1 = arith.constant 0 : i32
    return %c0_i32, %c0_i32_0 : i32, i32
  }
  func.func @transform_3(%arg0: i32) -> (i32, i32) {
    %c0_i32 = arith.constant 0 : i32
    %c0_i32_0 = arith.constant 0 : i32
    return %arg0, %c0_i32 : i32, i32
  }
  func.func @transform_4(%arg0: i32) -> (i32, i32) {
    %c0_i32 = arith.constant 0 : i32
    %c0_i32_0 = arith.constant 0 : i32
    return %arg0, %c0_i32 : i32, i32
  }
}

module attributes {stable_mosaic.version = 11 : i64} {
  func.func @_ln_matmul_kernel(%arg0: i32, %arg1: memref<16x32xf32, #tpu.memory_space<vmem>>, %arg2: memref<1x32xf32, #tpu.memory_space<vmem>>, %arg3: memref<1x32xf32, #tpu.memory_space<vmem>>, %arg4: memref<32x96xbf16, #tpu.memory_space<vmem>>, %arg5: memref<1x96xf32, #tpu.memory_space<vmem>>, %arg6: memref<16x96xf32, #tpu.memory_space<vmem>>) attributes {dimension_semantics = [#tpu.dimension_semantics<parallel>], iteration_bounds = array<i64: 1>, scalar_prefetch = 0 : i64, scratch_operands = 0 : i64, tpu.core_type = #tpu.core_type<tc>, window_params = [{transform_indices = @transform_0, window_bounds = array<i64: 16, 32>}, {pipeline_mode = #tpu.pipeline_mode<synchronous>, transform_indices = @transform_1, window_bounds = array<i64: 1, 32>}, {pipeline_mode = #tpu.pipeline_mode<synchronous>, transform_indices = @transform_2, window_bounds = array<i64: 1, 32>}, {pipeline_mode = #tpu.pipeline_mode<synchronous>, transform_indices = @transform_3, window_bounds = array<i64: 32, 96>}, {pipeline_mode = #tpu.pipeline_mode<synchronous>, transform_indices = @transform_4, window_bounds = array<i64: 1, 96>}, {transform_indices = @transform_5, window_bounds = array<i64: 16, 96>}]} {
    %c0 = arith.constant 0 : index
    %c0_0 = arith.constant 0 : index
    %0 = vector.load %arg1[%c0, %c0_0] : memref<16x32xf32, #tpu.memory_space<vmem>>, vector<16x32xf32>
    %cst = arith.constant dense<0.000000e+00> : vector<16xf32>
    %1 = vector.multi_reduction <add>, %0, %cst [1] : vector<16x32xf32> to vector<16xf32>
    %2 = vector.shape_cast %1 : vector<16xf32> to vector<16x1xf32>
    %cst_1 = arith.constant 3.200000e+01 : f32
    %3 = vector.broadcast %cst_1 : f32 to vector<16x1xf32>
    %4 = arith.divf %2, %3 : vector<16x1xf32>
    %5 = vector.broadcast %4 : vector<16x1xf32> to vector<16x32xf32>
    %6 = arith.subf %0, %5 : vector<16x32xf32>
    %7 = arith.mulf %6, %6 : vector<16x32xf32>
    %cst_2 = arith.constant dense<0.000000e+00> : vector<16xf32>
    %8 = vector.multi_reduction <add>, %7, %cst_2 [1] : vector<16x32xf32> to vector<16xf32>
    %9 = vector.shape_cast %8 : vector<16xf32> to vector<16x1xf32>
    %cst_3 = arith.constant 3.200000e+01 : f32
    %10 = vector.broadcast %cst_3 : f32 to vector<16x1xf32>
    %11 = arith.divf %9, %10 : vector<16x1xf32>
    %cst_4 = arith.constant 9.99999974E-6 : f32
    %12 = vector.broadcast %cst_4 : f32 to vector<16x1xf32>
    %13 = arith.addf %11, %12 : vector<16x1xf32>
    %14 = math.rsqrt %13 : vector<16x1xf32>
    %15 = vector.broadcast %14 : vector<16x1xf32> to vector<16x32xf32>
    %16 = arith.mulf %6, %15 : vector<16x32xf32>
    %c0_5 = arith.constant 0 : index
    %c0_6 = arith.constant 0 : index
    %17 = vector.load %arg2[%c0_5, %c0_6] : memref<1x32xf32, #tpu.memory_space<vmem>>, vector<1x32xf32>
    %18 = vector.broadcast %17 : vector<1x32xf32> to vector<16x32xf32>
    %19 = arith.mulf %16, %18 : vector<16x32xf32>
    %c0_7 = arith.constant 0 : index
    %c0_8 = arith.constant 0 : index
    %20 = vector.load %arg3[%c0_7, %c0_8] : memref<1x32xf32, #tpu.memory_space<vmem>>, vector<1x32xf32>
    %21 = vector.broadcast %20 : vector<1x32xf32> to vector<16x32xf32>
    %22 = arith.addf %19, %21 : vector<16x32xf32>
    %23 = arith.truncf %22 : vector<16x32xf32> to vector<16x32xbf16>
    %c0_9 = arith.constant 0 : index
    %c0_10 = arith.constant 0 : index
    %24 = vector.load %arg4[%c0_9, %c0_10] : memref<32x96xbf16, #tpu.memory_space<vmem>>, vector<32x96xbf16>
    %cst_11 = arith.constant dense<0.000000e+00> : vector<16x96xf32>
    %25 = tpu.matmul %23, %24, %cst_11 {dimension_numbers = #tpu.dot_dimension_numbers<[1], [0], [0], [1], [0, 0, 1, 1], [], []>} : vector<16x32xbf16>, vector<32x96xbf16>, vector<16x96xf32> -> vector<16x96xf32>
    %c0_12 = arith.constant 0 : index
    %c0_13 = arith.constant 0 : index
    %26 = vector.load %arg5[%c0_12, %c0_13] : memref<1x96xf32, #tpu.memory_space<vmem>>, vector<1x96xf32>
    %27 = vector.broadcast %26 : vector<1x96xf32> to vector<16x96xf32>
    %28 = arith.addf %25, %27 : vector<16x96xf32>
    %c0_14 = arith.constant 0 : index
    %c0_15 = arith.constant 0 : index
    %29 = vector.load %arg6[%c0_14, %c0_15] : memref<16x96xf32, #tpu.memory_space<vmem>>, vector<16x96xf32>
    tpu.vector_store %arg6[%c0_14, %c0_15], %28 {strides = array<i32>} : memref<16x96xf32, #tpu.memory_space<vmem>>, vector<16x96xf32>,
    return
  }
  func.func @transform_0(%arg0: i32) -> (i32, i32) {
    %c0_i32 = arith.constant 0 : i32
    %c0_i32_0 = arith.constant 0 : i32
    return %arg0, %c0_i32 : i32, i32
  }
  func.func @transform_1(%arg0: i32) -> (i32, i32) {
    %c0_i32 = arith.constant 0 : i32
    %c0_i32_0 = arith.constant 0 : i32
    %c0_i32_1 = arith.constant 0 : i32
    return %c0_i32, %c0_i32_0 : i32, i32
  }
  func.func @transform_2(%arg0: i32) -> (i32, i32) {
    %c0_i32 = arith.constant 0 : i32
    %c0_i32_0 = arith.constant 0 : i32
    %c0_i32_1 = arith.constant 0 : i32
    return %c0_i32, %c0_i32_0 : i32, i32
  }
  func.func @transform_3(%arg0: i32) -> (i32, i32) {
    %c0_i32 = arith.constant 0 : i32
    %c0_i32_0 = arith.constant 0 : i32
    %c0_i32_1 = arith.constant 0 : i32
    return %c0_i32, %c0_i32_0 : i32, i32
  }
  func.func @transform_4(%arg0: i32) -> (i32, i32) {
    %c0_i32 = arith.constant 0 : i32
    %c0_i32_0 = arith.constant 0 : i32
    %c0_i32_1 = arith.constant 0 : i32
    return %c0_i32, %c0_i32_0 : i32, i32
  }
  func.func @transform_5(%arg0: i32) -> (i32, i32) {
    %c0_i32 = arith.constant 0 : i32
    %c0_i32_0 = arith.constant 0 : i32
    return %arg0, %c0_i32 : i32, i32
  }
}

module attributes {stable_mosaic.version = 11 : i64} {
  func.func @_ln_matmul_kernel(%arg0: i32, %arg1: memref<16x32xf32, #tpu.memory_space<vmem>>, %arg2: memref<1x32xf32, #tpu.memory_space<vmem>>, %arg3: memref<1x32xf32, #tpu.memory_space<vmem>>, %arg4: memref<32x32xbf16, #tpu.memory_space<vmem>>, %arg5: memref<1x32xf32, #tpu.memory_space<vmem>>, %arg6: memref<16x32xf32, #tpu.memory_space<vmem>>) attributes {dimension_semantics = [#tpu.dimension_semantics<parallel>], iteration_bounds = array<i64: 1>, scalar_prefetch = 0 : i64, scratch_operands = 0 : i64, tpu.core_type = #tpu.core_type<tc>, window_params = [{transform_indices = @transform_0, window_bounds = array<i64: 16, 32>}, {pipeline_mode = #tpu.pipeline_mode<synchronous>, transform_indices = @transform_1, window_bounds = array<i64: 1, 32>}, {pipeline_mode = #tpu.pipeline_mode<synchronous>, transform_indices = @transform_2, window_bounds = array<i64: 1, 32>}, {pipeline_mode = #tpu.pipeline_mode<synchronous>, transform_indices = @transform_3, window_bounds = array<i64: 32, 32>}, {pipeline_mode = #tpu.pipeline_mode<synchronous>, transform_indices = @transform_4, window_bounds = array<i64: 1, 32>}, {transform_indices = @transform_5, window_bounds = array<i64: 16, 32>}]} {
    %c0 = arith.constant 0 : index
    %c0_0 = arith.constant 0 : index
    %0 = vector.load %arg1[%c0, %c0_0] : memref<16x32xf32, #tpu.memory_space<vmem>>, vector<16x32xf32>
    %cst = arith.constant dense<0.000000e+00> : vector<16xf32>
    %1 = vector.multi_reduction <add>, %0, %cst [1] : vector<16x32xf32> to vector<16xf32>
    %2 = vector.shape_cast %1 : vector<16xf32> to vector<16x1xf32>
    %cst_1 = arith.constant 3.200000e+01 : f32
    %3 = vector.broadcast %cst_1 : f32 to vector<16x1xf32>
    %4 = arith.divf %2, %3 : vector<16x1xf32>
    %5 = vector.broadcast %4 : vector<16x1xf32> to vector<16x32xf32>
    %6 = arith.subf %0, %5 : vector<16x32xf32>
    %7 = arith.mulf %6, %6 : vector<16x32xf32>
    %cst_2 = arith.constant dense<0.000000e+00> : vector<16xf32>
    %8 = vector.multi_reduction <add>, %7, %cst_2 [1] : vector<16x32xf32> to vector<16xf32>
    %9 = vector.shape_cast %8 : vector<16xf32> to vector<16x1xf32>
    %cst_3 = arith.constant 3.200000e+01 : f32
    %10 = vector.broadcast %cst_3 : f32 to vector<16x1xf32>
    %11 = arith.divf %9, %10 : vector<16x1xf32>
    %cst_4 = arith.constant 9.99999974E-6 : f32
    %12 = vector.broadcast %cst_4 : f32 to vector<16x1xf32>
    %13 = arith.addf %11, %12 : vector<16x1xf32>
    %14 = math.rsqrt %13 : vector<16x1xf32>
    %15 = vector.broadcast %14 : vector<16x1xf32> to vector<16x32xf32>
    %16 = arith.mulf %6, %15 : vector<16x32xf32>
    %c0_5 = arith.constant 0 : index
    %c0_6 = arith.constant 0 : index
    %17 = vector.load %arg2[%c0_5, %c0_6] : memref<1x32xf32, #tpu.memory_space<vmem>>, vector<1x32xf32>
    %18 = vector.broadcast %17 : vector<1x32xf32> to vector<16x32xf32>
    %19 = arith.mulf %16, %18 : vector<16x32xf32>
    %c0_7 = arith.constant 0 : index
    %c0_8 = arith.constant 0 : index
    %20 = vector.load %arg3[%c0_7, %c0_8] : memref<1x32xf32, #tpu.memory_space<vmem>>, vector<1x32xf32>
    %21 = vector.broadcast %20 : vector<1x32xf32> to vector<16x32xf32>
    %22 = arith.addf %19, %21 : vector<16x32xf32>
    %23 = arith.truncf %22 : vector<16x32xf32> to vector<16x32xbf16>
    %c0_9 = arith.constant 0 : index
    %c0_10 = arith.constant 0 : index
    %24 = vector.load %arg4[%c0_9, %c0_10] : memref<32x32xbf16, #tpu.memory_space<vmem>>, vector<32x32xbf16>
    %cst_11 = arith.constant dense<0.000000e+00> : vector<16x32xf32>
    %25 = tpu.matmul %23, %24, %cst_11 {dimension_numbers = #tpu.dot_dimension_numbers<[1], [0], [0], [1], [0, 0, 1, 1], [], []>} : vector<16x32xbf16>, vector<32x32xbf16>, vector<16x32xf32> -> vector<16x32xf32>
    %c0_12 = arith.constant 0 : index
    %c0_13 = arith.constant 0 : index
    %26 = vector.load %arg5[%c0_12, %c0_13] : memref<1x32xf32, #tpu.memory_space<vmem>>, vector<1x32xf32>
    %27 = vector.broadcast %26 : vector<1x32xf32> to vector<16x32xf32>
    %28 = arith.addf %25, %27 : vector<16x32xf32>
    %c0_14 = arith.constant 0 : index
    %c0_15 = arith.constant 0 : index
    %29 = vector.load %arg6[%c0_14, %c0_15] : memref<16x32xf32, #tpu.memory_space<vmem>>, vector<16x32xf32>
    tpu.vector_store %arg6[%c0_14, %c0_15], %28 {strides = array<i32>} : memref<16x32xf32, #tpu.memory_space<vmem>>, vector<16x32xf32>,
    return
  }
  func.func @transform_0(%arg0: i32) -> (i32, i32) {
    %c0_i32 = arith.constant 0 : i32
    %c0_i32_0 = arith.constant 0 : i32
    return %arg0, %c0_i32 : i32, i32
  }
  func.func @transform_1(%arg0: i32) -> (i32, i32) {
    %c0_i32 = arith.constant 0 : i32
    %c0_i32_0 = arith.constant 0 : i32
    %c0_i32_1 = arith.constant 0 : i32
    return %c0_i32, %c0_i32_0 : i32, i32
  }
  func.func @transform_2(%arg0: i32) -> (i32, i32) {
    %c0_i32 = arith.constant 0 : i32
    %c0_i32_0 = arith.constant 0 : i32
    %c0_i32_1 = arith.constant 0 : i32
    return %c0_i32, %c0_i32_0 : i32, i32
  }
  func.func @transform_3(%arg0: i32) -> (i32, i32) {
    %c0_i32 = arith.constant 0 : i32
    %c0_i32_0 = arith.constant 0 : i32
    %c0_i32_1 = arith.constant 0 : i32
    return %c0_i32, %c0_i32_0 : i32, i32
  }
  func.func @transform_4(%arg0: i32) -> (i32, i32) {
    %c0_i32 = arith.constant 0 : i32
    %c0_i32_0 = arith.constant 0 : i32
    %c0_i32_1 = arith.constant 0 : i32
    return %c0_i32, %c0_i32_0 : i32, i32
  }
  func.func @transform_5(%arg0: i32) -> (i32, i32) {
    %c0_i32 = arith.constant 0 : i32
    %c0_i32_0 = arith.constant 0 : i32
    return %arg0, %c0_i32 : i32, i32
  }
}

module attributes {stable_mosaic.version = 11 : i64} {
  func.func @_self_attn_kernel(%arg0: i32, %arg1: memref<1x8x96xf32, #tpu.memory_space<vmem>>, %arg2: memref<1x1x8xf32, #tpu.memory_space<vmem>>, %arg3: memref<1x8x32xf32, #tpu.memory_space<vmem>>) attributes {dimension_semantics = [#tpu.dimension_semantics<parallel>], iteration_bounds = array<i64: 2>, scalar_prefetch = 0 : i64, scratch_operands = 0 : i64, tpu.core_type = #tpu.core_type<tc>, window_params = [{transform_indices = @transform_0, window_bounds = array<i64: 1, 8, 96>}, {transform_indices = @transform_1, window_bounds = array<i64: 1, 1, 8>}, {transform_indices = @transform_2, window_bounds = array<i64: 1, 8, 32>}]} {
    %c0 = arith.constant 0 : index
    %c0_0 = arith.constant 0 : index
    %c0_1 = arith.constant 0 : index
    %0 = vector.load %arg1[%c0, %c0_0, %c0_1] : memref<1x8x96xf32, #tpu.memory_space<vmem>>, vector<1x8x96xf32>
    %1 = vector.shape_cast %0 : vector<1x8x96xf32> to vector<8x96xf32>
    %c0_2 = arith.constant 0 : index
    %c0_3 = arith.constant 0 : index
    %c0_4 = arith.constant 0 : index
    %2 = vector.load %arg2[%c0_2, %c0_3, %c0_4] : memref<1x1x8xf32, #tpu.memory_space<vmem>>, vector<1x1x8xf32>
    %3 = vector.shape_cast %2 : vector<1x1x8xf32> to vector<1x8xf32>
    %4 = tpu.iota {dimensions = array<i32: 0>} : vector<8x8xi32>
    %5 = tpu.iota {dimensions = array<i32: 1>} : vector<8x8xi32>
    %6 = arith.cmpi slt, %4, %5 : vector<8x8xi32>
    %cst = arith.constant -6.553600e+04 : f32
    %cst_5 = arith.constant 0.000000e+00 : f32
    %7 = vector.broadcast %cst : f32 to vector<8x8xf32>
    %8 = vector.broadcast %cst_5 : f32 to vector<8x8xf32>
    %9 = arith.select %6, %7, %8 : vector<8x8xi1>, vector<8x8xf32>
    %10 = vector.broadcast %3 : vector<1x8xf32> to vector<8x8xf32>
    %11 = arith.addf %9, %10 : vector<8x8xf32>
    %12 = vector.extract_strided_slice %1 {offsets = [0, 0], sizes = [8, 8], strides = [1, 1]} : vector<8x96xf32> to vector<8x8xf32>
    %cst_6 = arith.constant 0.353553385 : f32
    %13 = vector.broadcast %cst_6 : f32 to vector<8x8xf32>
    %14 = arith.mulf %12, %13 : vector<8x8xf32>
    %15 = arith.truncf %14 : vector<8x8xf32> to vector<8x8xbf16>
    %16 = vector.extract_strided_slice %1 {offsets = [0, 32], sizes = [8, 8], strides = [1, 1]} : vector<8x96xf32> to vector<8x8xf32>
    %17 = arith.truncf %16 : vector<8x8xf32> to vector<8x8xbf16>
    %18 = vector.extract_strided_slice %1 {offsets = [0, 64], sizes = [8, 8], strides = [1, 1]} : vector<8x96xf32> to vector<8x8xf32>
    %19 = arith.truncf %18 : vector<8x8xf32> to vector<8x8xbf16>
    %20 = tpu.transpose %17, [1, 0] : vector<8x8xbf16> -> vector<8x8xbf16>
    %cst_7 = arith.constant dense<0.000000e+00> : vector<8x8xf32>
    %21 = tpu.matmul %15, %20, %cst_7 {dimension_numbers = #tpu.dot_dimension_numbers<[1], [0], [0], [1], [0, 0, 1, 1], [], []>} : vector<8x8xbf16>, vector<8x8xbf16>, vector<8x8xf32> -> vector<8x8xf32>
    %22 = arith.addf %21, %11 : vector<8x8xf32>
    %cst_8 = arith.constant dense<0xFF800000> : vector<8xf32>
    %23 = vector.multi_reduction <maximumf>, %22, %cst_8 [1] : vector<8x8xf32> to vector<8xf32>
    %24 = vector.shape_cast %23 : vector<8xf32> to vector<8x1xf32>
    %25 = vector.broadcast %24 : vector<8x1xf32> to vector<8x8xf32>
    %26 = arith.subf %22, %25 : vector<8x8xf32>
    %27 = math.exp %26 : vector<8x8xf32>
    %cst_9 = arith.constant dense<0.000000e+00> : vector<8xf32>
    %28 = vector.multi_reduction <add>, %27, %cst_9 [1] : vector<8x8xf32> to vector<8xf32>
    %29 = vector.shape_cast %28 : vector<8xf32> to vector<8x1xf32>
    %30 = arith.truncf %27 : vector<8x8xf32> to vector<8x8xbf16>
    %cst_10 = arith.constant dense<0.000000e+00> : vector<8x8xf32>
    %31 = tpu.matmul %30, %19, %cst_10 {dimension_numbers = #tpu.dot_dimension_numbers<[1], [0], [0], [1], [0, 0, 1, 1], [], []>} : vector<8x8xbf16>, vector<8x8xbf16>, vector<8x8xf32> -> vector<8x8xf32>
    %32 = tpu.reciprocal %29 {approx = true} : vector<8x1xf32> -> vector<8x1xf32>
    %33 = vector.broadcast %32 : vector<8x1xf32> to vector<8x8xf32>
    %34 = arith.mulf %31, %33 : vector<8x8xf32>
    %35 = vector.extract_strided_slice %1 {offsets = [0, 8], sizes = [8, 8], strides = [1, 1]} : vector<8x96xf32> to vector<8x8xf32>
    %cst_11 = arith.constant 0.353553385 : f32
    %36 = vector.broadcast %cst_11 : f32 to vector<8x8xf32>
    %37 = arith.mulf %35, %36 : vector<8x8xf32>
    %38 = arith.truncf %37 : vector<8x8xf32> to vector<8x8xbf16>
    %39 = vector.extract_strided_slice %1 {offsets = [0, 40], sizes = [8, 8], strides = [1, 1]} : vector<8x96xf32> to vector<8x8xf32>
    %40 = arith.truncf %39 : vector<8x8xf32> to vector<8x8xbf16>
    %41 = vector.extract_strided_slice %1 {offsets = [0, 72], sizes = [8, 8], strides = [1, 1]} : vector<8x96xf32> to vector<8x8xf32>
    %42 = arith.truncf %41 : vector<8x8xf32> to vector<8x8xbf16>
    %43 = tpu.transpose %40, [1, 0] : vector<8x8xbf16> -> vector<8x8xbf16>
    %cst_12 = arith.constant dense<0.000000e+00> : vector<8x8xf32>
    %44 = tpu.matmul %38, %43, %cst_12 {dimension_numbers = #tpu.dot_dimension_numbers<[1], [0], [0], [1], [0, 0, 1, 1], [], []>} : vector<8x8xbf16>, vector<8x8xbf16>, vector<8x8xf32> -> vector<8x8xf32>
    %45 = arith.addf %44, %11 : vector<8x8xf32>
    %cst_13 = arith.constant dense<0xFF800000> : vector<8xf32>
    %46 = vector.multi_reduction <maximumf>, %45, %cst_13 [1] : vector<8x8xf32> to vector<8xf32>
    %47 = vector.shape_cast %46 : vector<8xf32> to vector<8x1xf32>
    %48 = vector.broadcast %47 : vector<8x1xf32> to vector<8x8xf32>
    %49 = arith.subf %45, %48 : vector<8x8xf32>
    %50 = math.exp %49 : vector<8x8xf32>
    %cst_14 = arith.constant dense<0.000000e+00> : vector<8xf32>
    %51 = vector.multi_reduction <add>, %50, %cst_14 [1] : vector<8x8xf32> to vector<8xf32>
    %52 = vector.shape_cast %51 : vector<8xf32> to vector<8x1xf32>
    %53 = arith.truncf %50 : vector<8x8xf32> to vector<8x8xbf16>
    %cst_15 = arith.constant dense<0.000000e+00> : vector<8x8xf32>
    %54 = tpu.matmul %53, %42, %cst_15 {dimension_numbers = #tpu.dot_dimension_numbers<[1], [0], [0], [1], [0, 0, 1, 1], [], []>} : vector<8x8xbf16>, vector<8x8xbf16>, vector<8x8xf32> -> vector<8x8xf32>
    %55 = tpu.reciprocal %52 {approx = true} : vector<8x1xf32> -> vector<8x1xf32>
    %56 = vector.broadcast %55 : vector<8x1xf32> to vector<8x8xf32>
    %57 = arith.mulf %54, %56 : vector<8x8xf32>
    %58 = vector.extract_strided_slice %1 {offsets = [0, 16], sizes = [8, 8], strides = [1, 1]} : vector<8x96xf32> to vector<8x8xf32>
    %cst_16 = arith.constant 0.353553385 : f32
    %59 = vector.broadcast %cst_16 : f32 to vector<8x8xf32>
    %60 = arith.mulf %58, %59 : vector<8x8xf32>
    %61 = arith.truncf %60 : vector<8x8xf32> to vector<8x8xbf16>
    %62 = vector.extract_strided_slice %1 {offsets = [0, 48], sizes = [8, 8], strides = [1, 1]} : vector<8x96xf32> to vector<8x8xf32>
    %63 = arith.truncf %62 : vector<8x8xf32> to vector<8x8xbf16>
    %64 = vector.extract_strided_slice %1 {offsets = [0, 80], sizes = [8, 8], strides = [1, 1]} : vector<8x96xf32> to vector<8x8xf32>
    %65 = arith.truncf %64 : vector<8x8xf32> to vector<8x8xbf16>
    %66 = tpu.transpose %63, [1, 0] : vector<8x8xbf16> -> vector<8x8xbf16>
    %cst_17 = arith.constant dense<0.000000e+00> : vector<8x8xf32>
    %67 = tpu.matmul %61, %66, %cst_17 {dimension_numbers = #tpu.dot_dimension_numbers<[1], [0], [0], [1], [0, 0, 1, 1], [], []>} : vector<8x8xbf16>, vector<8x8xbf16>, vector<8x8xf32> -> vector<8x8xf32>
    %68 = arith.addf %67, %11 : vector<8x8xf32>
    %cst_18 = arith.constant dense<0xFF800000> : vector<8xf32>
    %69 = vector.multi_reduction <maximumf>, %68, %cst_18 [1] : vector<8x8xf32> to vector<8xf32>
    %70 = vector.shape_cast %69 : vector<8xf32> to vector<8x1xf32>
    %71 = vector.broadcast %70 : vector<8x1xf32> to vector<8x8xf32>
    %72 = arith.subf %68, %71 : vector<8x8xf32>
    %73 = math.exp %72 : vector<8x8xf32>
    %cst_19 = arith.constant dense<0.000000e+00> : vector<8xf32>
    %74 = vector.multi_reduction <add>, %73, %cst_19 [1] : vector<8x8xf32> to vector<8xf32>
    %75 = vector.shape_cast %74 : vector<8xf32> to vector<8x1xf32>
    %76 = arith.truncf %73 : vector<8x8xf32> to vector<8x8xbf16>
    %cst_20 = arith.constant dense<0.000000e+00> : vector<8x8xf32>
    %77 = tpu.matmul %76, %65, %cst_20 {dimension_numbers = #tpu.dot_dimension_numbers<[1], [0], [0], [1], [0, 0, 1, 1], [], []>} : vector<8x8xbf16>, vector<8x8xbf16>, vector<8x8xf32> -> vector<8x8xf32>
    %78 = tpu.reciprocal %75 {approx = true} : vector<8x1xf32> -> vector<8x1xf32>
    %79 = vector.broadcast %78 : vector<8x1xf32> to vector<8x8xf32>
    %80 = arith.mulf %77, %79 : vector<8x8xf32>
    %81 = vector.extract_strided_slice %1 {offsets = [0, 24], sizes = [8, 8], strides = [1, 1]} : vector<8x96xf32> to vector<8x8xf32>
    %cst_21 = arith.constant 0.353553385 : f32
    %82 = vector.broadcast %cst_21 : f32 to vector<8x8xf32>
    %83 = arith.mulf %81, %82 : vector<8x8xf32>
    %84 = arith.truncf %83 : vector<8x8xf32> to vector<8x8xbf16>
    %85 = vector.extract_strided_slice %1 {offsets = [0, 56], sizes = [8, 8], strides = [1, 1]} : vector<8x96xf32> to vector<8x8xf32>
    %86 = arith.truncf %85 : vector<8x8xf32> to vector<8x8xbf16>
    %87 = vector.extract_strided_slice %1 {offsets = [0, 88], sizes = [8, 8], strides = [1, 1]} : vector<8x96xf32> to vector<8x8xf32>
    %88 = arith.truncf %87 : vector<8x8xf32> to vector<8x8xbf16>
    %89 = tpu.transpose %86, [1, 0] : vector<8x8xbf16> -> vector<8x8xbf16>
    %cst_22 = arith.constant dense<0.000000e+00> : vector<8x8xf32>
    %90 = tpu.matmul %84, %89, %cst_22 {dimension_numbers = #tpu.dot_dimension_numbers<[1], [0], [0], [1], [0, 0, 1, 1], [], []>} : vector<8x8xbf16>, vector<8x8xbf16>, vector<8x8xf32> -> vector<8x8xf32>
    %91 = arith.addf %90, %11 : vector<8x8xf32>
    %cst_23 = arith.constant dense<0xFF800000> : vector<8xf32>
    %92 = vector.multi_reduction <maximumf>, %91, %cst_23 [1] : vector<8x8xf32> to vector<8xf32>
    %93 = vector.shape_cast %92 : vector<8xf32> to vector<8x1xf32>
    %94 = vector.broadcast %93 : vector<8x1xf32> to vector<8x8xf32>
    %95 = arith.subf %91, %94 : vector<8x8xf32>
    %96 = math.exp %95 : vector<8x8xf32>
    %cst_24 = arith.constant dense<0.000000e+00> : vector<8xf32>
    %97 = vector.multi_reduction <add>, %96, %cst_24 [1] : vector<8x8xf32> to vector<8xf32>
    %98 = vector.shape_cast %97 : vector<8xf32> to vector<8x1xf32>
    %99 = arith.truncf %96 : vector<8x8xf32> to vector<8x8xbf16>
    %cst_25 = arith.constant dense<0.000000e+00> : vector<8x8xf32>
    %100 = tpu.matmul %99, %88, %cst_25 {dimension_numbers = #tpu.dot_dimension_numbers<[1], [0], [0], [1], [0, 0, 1, 1], [], []>} : vector<8x8xbf16>, vector<8x8xbf16>, vector<8x8xf32> -> vector<8x8xf32>
    %101 = tpu.reciprocal %98 {approx = true} : vector<8x1xf32> -> vector<8x1xf32>
    %102 = vector.broadcast %101 : vector<8x1xf32> to vector<8x8xf32>
    %103 = arith.mulf %100, %102 : vector<8x8xf32>
    %104 = tpu.concatenate %34, %57, %80, %103 in 1 : vector<8x8xf32>, vector<8x8xf32>, vector<8x8xf32>, vector<8x8xf32> -> vector<8x32xf32>
    %c0_26 = arith.constant 0 : index
    %c0_27 = arith.constant 0 : index
    %c0_28 = arith.constant 0 : index
    %105 = vector.load %arg3[%c0_26, %c0_27, %c0_28] : memref<1x8x32xf32, #tpu.memory_space<vmem>>, vector<1x8x32xf32>
    %106 = vector.shape_cast %105 : vector<1x8x32xf32> to vector<8x32xf32>
    %107 = vector.shape_cast %104 : vector<8x32xf32> to vector<1x8x32xf32>
    tpu.vector_store %arg3[%c0_26, %c0_27, %c0_28], %107 {strides = array<i32>} : memref<1x8x32xf32, #tpu.memory_space<vmem>>, vector<1x8x32xf32>,
    return
  }
  func.func @transform_0(%arg0: i32) -> (i32, i32, i32) {
    %c0_i32 = arith.constant 0 : i32
    %c0_i32_0 = arith.constant 0 : i32
    %c0_i32_1 = arith.constant 0 : i32
    return %arg0, %c0_i32, %c0_i32_0 : i32, i32, i32
  }
  func.func @transform_1(%arg0: i32) -> (i32, i32, i32) {
    %c0_i32 = arith.constant 0 : i32
    %c0_i32_0 = arith.constant 0 : i32
    %c0_i32_1 = arith.constant 0 : i32
    return %arg0, %c0_i32, %c0_i32_0 : i32, i32, i32
  }
  func.func @transform_2(%arg0: i32) -> (i32, i32, i32) {
    %c0_i32 = arith.constant 0 : i32
    %c0_i32_0 = arith.constant 0 : i32
    %c0_i32_1 = arith.constant 0 : i32
    return %arg0, %c0_i32, %c0_i32_0 : i32, i32, i32
  }
}

module attributes {stable_mosaic.version = 11 : i64} {
  func.func @_linear_kernel(%arg0: i32, %arg1: memref<20x32xf32, #tpu.memory_space<vmem>>, %arg2: memref<32x64xbf16, #tpu.memory_space<vmem>>, %arg3: memref<1x64xf32, #tpu.memory_space<vmem>>, %arg4: memref<20x64xf32, #tpu.memory_space<vmem>>) attributes {dimension_semantics = [#tpu.dimension_semantics<parallel>], iteration_bounds = array<i64: 1>, scalar_prefetch = 0 : i64, scratch_operands = 0 : i64, tpu.core_type = #tpu.core_type<tc>, window_params = [{transform_indices = @transform_0, window_bounds = array<i64: 20, 32>}, {pipeline_mode = #tpu.pipeline_mode<synchronous>, transform_indices = @transform_1, window_bounds = array<i64: 32, 64>}, {pipeline_mode = #tpu.pipeline_mode<synchronous>, transform_indices = @transform_2, window_bounds = array<i64: 1, 64>}, {transform_indices = @transform_3, window_bounds = array<i64: 20, 64>}]} {
    %c0 = arith.constant 0 : index
    %c0_0 = arith.constant 0 : index
    %0 = vector.load %arg1[%c0, %c0_0] : memref<20x32xf32, #tpu.memory_space<vmem>>, vector<20x32xf32>
    %1 = arith.truncf %0 : vector<20x32xf32> to vector<20x32xbf16>
    %c0_1 = arith.constant 0 : index
    %c0_2 = arith.constant 0 : index
    %2 = vector.load %arg2[%c0_1, %c0_2] : memref<32x64xbf16, #tpu.memory_space<vmem>>, vector<32x64xbf16>
    %cst = arith.constant dense<0.000000e+00> : vector<20x64xf32>
    %3 = tpu.matmul %1, %2, %cst {dimension_numbers = #tpu.dot_dimension_numbers<[1], [0], [0], [1], [0, 0, 1, 1], [], []>} : vector<20x32xbf16>, vector<32x64xbf16>, vector<20x64xf32> -> vector<20x64xf32>
    %c0_3 = arith.constant 0 : index
    %c0_4 = arith.constant 0 : index
    %4 = vector.load %arg3[%c0_3, %c0_4] : memref<1x64xf32, #tpu.memory_space<vmem>>, vector<1x64xf32>
    %5 = vector.broadcast %4 : vector<1x64xf32> to vector<20x64xf32>
    %6 = arith.addf %3, %5 : vector<20x64xf32>
    %c0_5 = arith.constant 0 : index
    %c0_6 = arith.constant 0 : index
    %7 = vector.load %arg4[%c0_5, %c0_6] : memref<20x64xf32, #tpu.memory_space<vmem>>, vector<20x64xf32>
    tpu.vector_store %arg4[%c0_5, %c0_6], %6 {strides = array<i32>} : memref<20x64xf32, #tpu.memory_space<vmem>>, vector<20x64xf32>,
    return
  }
  func.func @transform_0(%arg0: i32) -> (i32, i32) {
    %c0_i32 = arith.constant 0 : i32
    %c0_i32_0 = arith.constant 0 : i32
    return %arg0, %c0_i32 : i32, i32
  }
  func.func @transform_1(%arg0: i32) -> (i32, i32) {
    %c0_i32 = arith.constant 0 : i32
    %c0_i32_0 = arith.constant 0 : i32
    %c0_i32_1 = arith.constant 0 : i32
    return %c0_i32, %c0_i32_0 : i32, i32
  }
  func.func @transform_2(%arg0: i32) -> (i32, i32) {
    %c0_i32 = arith.constant 0 : i32
    %c0_i32_0 = arith.constant 0 : i32
    %c0_i32_1 = arith.constant 0 : i32
    return %c0_i32, %c0_i32_0 : i32, i32
  }
  func.func @transform_3(%arg0: i32) -> (i32, i32) {
    %c0_i32 = arith.constant 0 : i32
    %c0_i32_0 = arith.constant 0 : i32
    return %arg0, %c0_i32 : i32, i32
  }
}

module attributes {stable_mosaic.version = 11 : i64} {
  func.func @_cross_attn_kernel(%arg0: i32, %arg1: memref<1x8x32xf32, #tpu.memory_space<vmem>>, %arg2: memref<1x10x64xf32, #tpu.memory_space<vmem>>, %arg3: memref<1x1x10xf32, #tpu.memory_space<vmem>>, %arg4: memref<1x8x32xf32, #tpu.memory_space<vmem>>) attributes {dimension_semantics = [#tpu.dimension_semantics<parallel>], iteration_bounds = array<i64: 2>, scalar_prefetch = 0 : i64, scratch_operands = 0 : i64, tpu.core_type = #tpu.core_type<tc>, window_params = [{transform_indices = @transform_0, window_bounds = array<i64: 1, 8, 32>}, {transform_indices = @transform_1, window_bounds = array<i64: 1, 10, 64>}, {transform_indices = @transform_2, window_bounds = array<i64: 1, 1, 10>}, {transform_indices = @transform_3, window_bounds = array<i64: 1, 8, 32>}]} {
    %c0 = arith.constant 0 : index
    %c0_0 = arith.constant 0 : index
    %c0_1 = arith.constant 0 : index
    %0 = vector.load %arg1[%c0, %c0_0, %c0_1] : memref<1x8x32xf32, #tpu.memory_space<vmem>>, vector<1x8x32xf32>
    %1 = vector.shape_cast %0 : vector<1x8x32xf32> to vector<8x32xf32>
    %c0_2 = arith.constant 0 : index
    %c0_3 = arith.constant 0 : index
    %c0_4 = arith.constant 0 : index
    %2 = vector.load %arg2[%c0_2, %c0_3, %c0_4] : memref<1x10x64xf32, #tpu.memory_space<vmem>>, vector<1x10x64xf32>
    %3 = vector.shape_cast %2 : vector<1x10x64xf32> to vector<10x64xf32>
    %c0_5 = arith.constant 0 : index
    %c0_6 = arith.constant 0 : index
    %c0_7 = arith.constant 0 : index
    %4 = vector.load %arg3[%c0_5, %c0_6, %c0_7] : memref<1x1x10xf32, #tpu.memory_space<vmem>>, vector<1x1x10xf32>
    %5 = vector.shape_cast %4 : vector<1x1x10xf32> to vector<1x10xf32>
    %6 = vector.extract_strided_slice %1 {offsets = [0, 0], sizes = [8, 8], strides = [1, 1]} : vector<8x32xf32> to vector<8x8xf32>
    %cst = arith.constant 0.353553385 : f32
    %7 = vector.broadcast %cst : f32 to vector<8x8xf32>
    %8 = arith.mulf %6, %7 : vector<8x8xf32>
    %9 = arith.truncf %8 : vector<8x8xf32> to vector<8x8xbf16>
    %10 = vector.extract_strided_slice %3 {offsets = [0, 0], sizes = [10, 8], strides = [1, 1]} : vector<10x64xf32> to vector<10x8xf32>
    %11 = arith.truncf %10 : vector<10x8xf32> to vector<10x8xbf16>
    %12 = vector.extract_strided_slice %3 {offsets = [0, 32], sizes = [10, 8], strides = [1, 1]} : vector<10x64xf32> to vector<10x8xf32>
    %13 = arith.truncf %12 : vector<10x8xf32> to vector<10x8xbf16>
    %14 = tpu.transpose %11, [1, 0] : vector<10x8xbf16> -> vector<8x10xbf16>
    %cst_8 = arith.constant dense<0.000000e+00> : vector<8x10xf32>
    %15 = tpu.matmul %9, %14, %cst_8 {dimension_numbers = #tpu.dot_dimension_numbers<[1], [0], [0], [1], [0, 0, 1, 1], [], []>} : vector<8x8xbf16>, vector<8x10xbf16>, vector<8x10xf32> -> vector<8x10xf32>
    %16 = vector.broadcast %5 : vector<1x10xf32> to vector<8x10xf32>
    %17 = arith.addf %15, %16 : vector<8x10xf32>
    %cst_9 = arith.constant dense<0xFF800000> : vector<8xf32>
    %18 = vector.multi_reduction <maximumf>, %17, %cst_9 [1] : vector<8x10xf32> to vector<8xf32>
    %19 = vector.shape_cast %18 : vector<8xf32> to vector<8x1xf32>
    %20 = vector.broadcast %19 : vector<8x1xf32> to vector<8x10xf32>
    %21 = arith.subf %17, %20 : vector<8x10xf32>
    %22 = math.exp %21 : vector<8x10xf32>
    %cst_10 = arith.constant dense<0.000000e+00> : vector<8xf32>
    %23 = vector.multi_reduction <add>, %22, %cst_10 [1] : vector<8x10xf32> to vector<8xf32>
    %24 = vector.shape_cast %23 : vector<8xf32> to vector<8x1xf32>
    %25 = arith.truncf %22 : vector<8x10xf32> to vector<8x10xbf16>
    %cst_11 = arith.constant dense<0.000000e+00> : vector<8x8xf32>
    %26 = tpu.matmul %25, %13, %cst_11 {dimension_numbers = #tpu.dot_dimension_numbers<[1], [0], [0], [1], [0, 0, 1, 1], [], []>} : vector<8x10xbf16>, vector<10x8xbf16>, vector<8x8xf32> -> vector<8x8xf32>
    %27 = tpu.reciprocal %24 {approx = true} : vector<8x1xf32> -> vector<8x1xf32>
    %28 = vector.broadcast %27 : vector<8x1xf32> to vector<8x8xf32>
    %29 = arith.mulf %26, %28 : vector<8x8xf32>
    %30 = vector.extract_strided_slice %1 {offsets = [0, 8], sizes = [8, 8], strides = [1, 1]} : vector<8x32xf32> to vector<8x8xf32>
    %cst_12 = arith.constant 0.353553385 : f32
    %31 = vector.broadcast %cst_12 : f32 to vector<8x8xf32>
    %32 = arith.mulf %30, %31 : vector<8x8xf32>
    %33 = arith.truncf %32 : vector<8x8xf32> to vector<8x8xbf16>
    %34 = vector.extract_strided_slice %3 {offsets = [0, 8], sizes = [10, 8], strides = [1, 1]} : vector<10x64xf32> to vector<10x8xf32>
    %35 = arith.truncf %34 : vector<10x8xf32> to vector<10x8xbf16>
    %36 = vector.extract_strided_slice %3 {offsets = [0, 40], sizes = [10, 8], strides = [1, 1]} : vector<10x64xf32> to vector<10x8xf32>
    %37 = arith.truncf %36 : vector<10x8xf32> to vector<10x8xbf16>
    %38 = tpu.transpose %35, [1, 0] : vector<10x8xbf16> -> vector<8x10xbf16>
    %cst_13 = arith.constant dense<0.000000e+00> : vector<8x10xf32>
    %39 = tpu.matmul %33, %38, %cst_13 {dimension_numbers = #tpu.dot_dimension_numbers<[1], [0], [0], [1], [0, 0, 1, 1], [], []>} : vector<8x8xbf16>, vector<8x10xbf16>, vector<8x10xf32> -> vector<8x10xf32>
    %40 = vector.broadcast %5 : vector<1x10xf32> to vector<8x10xf32>
    %41 = arith.addf %39, %40 : vector<8x10xf32>
    %cst_14 = arith.constant dense<0xFF800000> : vector<8xf32>
    %42 = vector.multi_reduction <maximumf>, %41, %cst_14 [1] : vector<8x10xf32> to vector<8xf32>
    %43 = vector.shape_cast %42 : vector<8xf32> to vector<8x1xf32>
    %44 = vector.broadcast %43 : vector<8x1xf32> to vector<8x10xf32>
    %45 = arith.subf %41, %44 : vector<8x10xf32>
    %46 = math.exp %45 : vector<8x10xf32>
    %cst_15 = arith.constant dense<0.000000e+00> : vector<8xf32>
    %47 = vector.multi_reduction <add>, %46, %cst_15 [1] : vector<8x10xf32> to vector<8xf32>
    %48 = vector.shape_cast %47 : vector<8xf32> to vector<8x1xf32>
    %49 = arith.truncf %46 : vector<8x10xf32> to vector<8x10xbf16>
    %cst_16 = arith.constant dense<0.000000e+00> : vector<8x8xf32>
    %50 = tpu.matmul %49, %37, %cst_16 {dimension_numbers = #tpu.dot_dimension_numbers<[1], [0], [0], [1], [0, 0, 1, 1], [], []>} : vector<8x10xbf16>, vector<10x8xbf16>, vector<8x8xf32> -> vector<8x8xf32>
    %51 = tpu.reciprocal %48 {approx = true} : vector<8x1xf32> -> vector<8x1xf32>
    %52 = vector.broadcast %51 : vector<8x1xf32> to vector<8x8xf32>
    %53 = arith.mulf %50, %52 : vector<8x8xf32>
    %54 = vector.extract_strided_slice %1 {offsets = [0, 16], sizes = [8, 8], strides = [1, 1]} : vector<8x32xf32> to vector<8x8xf32>
    %cst_17 = arith.constant 0.353553385 : f32
    %55 = vector.broadcast %cst_17 : f32 to vector<8x8xf32>
    %56 = arith.mulf %54, %55 : vector<8x8xf32>
    %57 = arith.truncf %56 : vector<8x8xf32> to vector<8x8xbf16>
    %58 = vector.extract_strided_slice %3 {offsets = [0, 16], sizes = [10, 8], strides = [1, 1]} : vector<10x64xf32> to vector<10x8xf32>
    %59 = arith.truncf %58 : vector<10x8xf32> to vector<10x8xbf16>
    %60 = vector.extract_strided_slice %3 {offsets = [0, 48], sizes = [10, 8], strides = [1, 1]} : vector<10x64xf32> to vector<10x8xf32>
    %61 = arith.truncf %60 : vector<10x8xf32> to vector<10x8xbf16>
    %62 = tpu.transpose %59, [1, 0] : vector<10x8xbf16> -> vector<8x10xbf16>
    %cst_18 = arith.constant dense<0.000000e+00> : vector<8x10xf32>
    %63 = tpu.matmul %57, %62, %cst_18 {dimension_numbers = #tpu.dot_dimension_numbers<[1], [0], [0], [1], [0, 0, 1, 1], [], []>} : vector<8x8xbf16>, vector<8x10xbf16>, vector<8x10xf32> -> vector<8x10xf32>
    %64 = vector.broadcast %5 : vector<1x10xf32> to vector<8x10xf32>
    %65 = arith.addf %63, %64 : vector<8x10xf32>
    %cst_19 = arith.constant dense<0xFF800000> : vector<8xf32>
    %66 = vector.multi_reduction <maximumf>, %65, %cst_19 [1] : vector<8x10xf32> to vector<8xf32>
    %67 = vector.shape_cast %66 : vector<8xf32> to vector<8x1xf32>
    %68 = vector.broadcast %67 : vector<8x1xf32> to vector<8x10xf32>
    %69 = arith.subf %65, %68 : vector<8x10xf32>
    %70 = math.exp %69 : vector<8x10xf32>
    %cst_20 = arith.constant dense<0.000000e+00> : vector<8xf32>
    %71 = vector.multi_reduction <add>, %70, %cst_20 [1] : vector<8x10xf32> to vector<8xf32>
    %72 = vector.shape_cast %71 : vector<8xf32> to vector<8x1xf32>
    %73 = arith.truncf %70 : vector<8x10xf32> to vector<8x10xbf16>
    %cst_21 = arith.constant dense<0.000000e+00> : vector<8x8xf32>
    %74 = tpu.matmul %73, %61, %cst_21 {dimension_numbers = #tpu.dot_dimension_numbers<[1], [0], [0], [1], [0, 0, 1, 1], [], []>} : vector<8x10xbf16>, vector<10x8xbf16>, vector<8x8xf32> -> vector<8x8xf32>
    %75 = tpu.reciprocal %72 {approx = true} : vector<8x1xf32> -> vector<8x1xf32>
    %76 = vector.broadcast %75 : vector<8x1xf32> to vector<8x8xf32>
    %77 = arith.mulf %74, %76 : vector<8x8xf32>
    %78 = vector.extract_strided_slice %1 {offsets = [0, 24], sizes = [8, 8], strides = [1, 1]} : vector<8x32xf32> to vector<8x8xf32>
    %cst_22 = arith.constant 0.353553385 : f32
    %79 = vector.broadcast %cst_22 : f32 to vector<8x8xf32>
    %80 = arith.mulf %78, %79 : vector<8x8xf32>
    %81 = arith.truncf %80 : vector<8x8xf32> to vector<8x8xbf16>
    %82 = vector.extract_strided_slice %3 {offsets = [0, 24], sizes = [10, 8], strides = [1, 1]} : vector<10x64xf32> to vector<10x8xf32>
    %83 = arith.truncf %82 : vector<10x8xf32> to vector<10x8xbf16>
    %84 = vector.extract_strided_slice %3 {offsets = [0, 56], sizes = [10, 8], strides = [1, 1]} : vector<10x64xf32> to vector<10x8xf32>
    %85 = arith.truncf %84 : vector<10x8xf32> to vector<10x8xbf16>
    %86 = tpu.transpose %83, [1, 0] : vector<10x8xbf16> -> vector<8x10xbf16>
    %cst_23 = arith.constant dense<0.000000e+00> : vector<8x10xf32>
    %87 = tpu.matmul %81, %86, %cst_23 {dimension_numbers = #tpu.dot_dimension_numbers<[1], [0], [0], [1], [0, 0, 1, 1], [], []>} : vector<8x8xbf16>, vector<8x10xbf16>, vector<8x10xf32> -> vector<8x10xf32>
    %88 = vector.broadcast %5 : vector<1x10xf32> to vector<8x10xf32>
    %89 = arith.addf %87, %88 : vector<8x10xf32>
    %cst_24 = arith.constant dense<0xFF800000> : vector<8xf32>
    %90 = vector.multi_reduction <maximumf>, %89, %cst_24 [1] : vector<8x10xf32> to vector<8xf32>
    %91 = vector.shape_cast %90 : vector<8xf32> to vector<8x1xf32>
    %92 = vector.broadcast %91 : vector<8x1xf32> to vector<8x10xf32>
    %93 = arith.subf %89, %92 : vector<8x10xf32>
    %94 = math.exp %93 : vector<8x10xf32>
    %cst_25 = arith.constant dense<0.000000e+00> : vector<8xf32>
    %95 = vector.multi_reduction <add>, %94, %cst_25 [1] : vector<8x10xf32> to vector<8xf32>
    %96 = vector.shape_cast %95 : vector<8xf32> to vector<8x1xf32>
    %97 = arith.truncf %94 : vector<8x10xf32> to vector<8x10xbf16>
    %cst_26 = arith.constant dense<0.000000e+00> : vector<8x8xf32>
    %98 = tpu.matmul %97, %85, %cst_26 {dimension_numbers = #tpu.dot_dimension_numbers<[1], [0], [0], [1], [0, 0, 1, 1], [], []>} : vector<8x10xbf16>, vector<10x8xbf16>, vector<8x8xf32> -> vector<8x8xf32>
    %99 = tpu.reciprocal %96 {approx = true} : vector<8x1xf32> -> vector<8x1xf32>
    %100 = vector.broadcast %99 : vector<8x1xf32> to vector<8x8xf32>
    %101 = arith.mulf %98, %100 : vector<8x8xf32>
    %102 = tpu.concatenate %29, %53, %77, %101 in 1 : vector<8x8xf32>, vector<8x8xf32>, vector<8x8xf32>, vector<8x8xf32> -> vector<8x32xf32>
    %c0_27 = arith.constant 0 : index
    %c0_28 = arith.constant 0 : index
    %c0_29 = arith.constant 0 : index
    %103 = vector.load %arg4[%c0_27, %c0_28, %c0_29] : memref<1x8x32xf32, #tpu.memory_space<vmem>>, vector<1x8x32xf32>
    %104 = vector.shape_cast %103 : vector<1x8x32xf32> to vector<8x32xf32>
    %105 = vector.shape_cast %102 : vector<8x32xf32> to vector<1x8x32xf32>
    tpu.vector_store %arg4[%c0_27, %c0_28, %c0_29], %105 {strides = array<i32>} : memref<1x8x32xf32, #tpu.memory_space<vmem>>, vector<1x8x32xf32>,
    return
  }
  func.func @transform_0(%arg0: i32) -> (i32, i32, i32) {
    %c0_i32 = arith.constant 0 : i32
    %c0_i32_0 = arith.constant 0 : i32
    %c0_i32_1 = arith.constant 0 : i32
    return %arg0, %c0_i32, %c0_i32_0 : i32, i32, i32
  }
  func.func @transform_1(%arg0: i32) -> (i32, i32, i32) {
    %c0_i32 = arith.constant 0 : i32
    %c0_i32_0 = arith.constant 0 : i32
    %c0_i32_1 = arith.constant 0 : i32
    return %arg0, %c0_i32, %c0_i32_0 : i32, i32, i32
  }
  func.func @transform_2(%arg0: i32) -> (i32, i32, i32) {
    %c0_i32 = arith.constant 0 : i32
    %c0_i32_0 = arith.constant 0 : i32
    %c0_i32_1 = arith.constant 0 : i32
    return %arg0, %c0_i32, %c0_i32_0 : i32, i32, i32
  }
  func.func @transform_3(%arg0: i32) -> (i32, i32, i32) {
    %c0_i32 = arith.constant 0 : i32
    %c0_i32_0 = arith.constant 0 : i32
    %c0_i32_1 = arith.constant 0 : i32
    return %arg0, %c0_i32, %c0_i32_0 : i32, i32, i32
  }
}

module attributes {stable_mosaic.version = 11 : i64} {
  func.func @_ln_logits_kernel(%arg0: i32, %arg1: i32, %arg2: memref<16x32xf32, #tpu.memory_space<vmem>>, %arg3: memref<1x32xf32, #tpu.memory_space<vmem>>, %arg4: memref<1x32xf32, #tpu.memory_space<vmem>>, %arg5: memref<32x64xbf16, #tpu.memory_space<vmem>>, %arg6: memref<16x64xf32, #tpu.memory_space<vmem>>) attributes {dimension_semantics = [#tpu.dimension_semantics<parallel>, #tpu.dimension_semantics<parallel>], iteration_bounds = array<i64: 1, 1>, scalar_prefetch = 0 : i64, scratch_operands = 0 : i64, tpu.core_type = #tpu.core_type<tc>, window_params = [{transform_indices = @transform_0, window_bounds = array<i64: 16, 32>}, {pipeline_mode = #tpu.pipeline_mode<synchronous>, transform_indices = @transform_1, window_bounds = array<i64: 1, 32>}, {pipeline_mode = #tpu.pipeline_mode<synchronous>, transform_indices = @transform_2, window_bounds = array<i64: 1, 32>}, {transform_indices = @transform_3, window_bounds = array<i64: 32, 64>}, {transform_indices = @transform_4, window_bounds = array<i64: 16, 64>}]} {
    %c0 = arith.constant 0 : index
    %c0_0 = arith.constant 0 : index
    %0 = vector.load %arg2[%c0, %c0_0] : memref<16x32xf32, #tpu.memory_space<vmem>>, vector<16x32xf32>
    %cst = arith.constant dense<0.000000e+00> : vector<16xf32>
    %1 = vector.multi_reduction <add>, %0, %cst [1] : vector<16x32xf32> to vector<16xf32>
    %2 = vector.shape_cast %1 : vector<16xf32> to vector<16x1xf32>
    %cst_1 = arith.constant 3.200000e+01 : f32
    %3 = vector.broadcast %cst_1 : f32 to vector<16x1xf32>
    %4 = arith.divf %2, %3 : vector<16x1xf32>
    %5 = vector.broadcast %4 : vector<16x1xf32> to vector<16x32xf32>
    %6 = arith.subf %0, %5 : vector<16x32xf32>
    %7 = arith.mulf %6, %6 : vector<16x32xf32>
    %cst_2 = arith.constant dense<0.000000e+00> : vector<16xf32>
    %8 = vector.multi_reduction <add>, %7, %cst_2 [1] : vector<16x32xf32> to vector<16xf32>
    %9 = vector.shape_cast %8 : vector<16xf32> to vector<16x1xf32>
    %cst_3 = arith.constant 3.200000e+01 : f32
    %10 = vector.broadcast %cst_3 : f32 to vector<16x1xf32>
    %11 = arith.divf %9, %10 : vector<16x1xf32>
    %cst_4 = arith.constant 9.99999974E-6 : f32
    %12 = vector.broadcast %cst_4 : f32 to vector<16x1xf32>
    %13 = arith.addf %11, %12 : vector<16x1xf32>
    %14 = math.rsqrt %13 : vector<16x1xf32>
    %15 = vector.broadcast %14 : vector<16x1xf32> to vector<16x32xf32>
    %16 = arith.mulf %6, %15 : vector<16x32xf32>
    %c0_5 = arith.constant 0 : index
    %c0_6 = arith.constant 0 : index
    %17 = vector.load %arg3[%c0_5, %c0_6] : memref<1x32xf32, #tpu.memory_space<vmem>>, vector<1x32xf32>
    %18 = vector.broadcast %17 : vector<1x32xf32> to vector<16x32xf32>
    %19 = arith.mulf %16, %18 : vector<16x32xf32>
    %c0_7 = arith.constant 0 : index
    %c0_8 = arith.constant 0 : index
    %20 = vector.load %arg4[%c0_7, %c0_8] : memref<1x32xf32, #tpu.memory_space<vmem>>, vector<1x32xf32>
    %21 = vector.broadcast %20 : vector<1x32xf32> to vector<16x32xf32>
    %22 = arith.addf %19, %21 : vector<16x32xf32>
    %23 = arith.truncf %22 : vector<16x32xf32> to vector<16x32xbf16>
    %c0_9 = arith.constant 0 : index
    %c0_10 = arith.constant 0 : index
    %24 = vector.load %arg5[%c0_9, %c0_10] : memref<32x64xbf16, #tpu.memory_space<vmem>>, vector<32x64xbf16>
    %cst_11 = arith.constant dense<0.000000e+00> : vector<16x64xf32>
    %25 = tpu.matmul %23, %24, %cst_11 {dimension_numbers = #tpu.dot_dimension_numbers<[1], [0], [0], [1], [0, 0, 1, 1], [], []>} : vector<16x32xbf16>, vector<32x64xbf16>, vector<16x64xf32> -> vector<16x64xf32>
    %c0_12 = arith.constant 0 : index
    %c0_13 = arith.constant 0 : index
    %26 = vector.load %arg6[%c0_12, %c0_13] : memref<16x64xf32, #tpu.memory_space<vmem>>, vector<16x64xf32>
    tpu.vector_store %arg6[%c0_12, %c0_13], %25 {strides = array<i32>} : memref<16x64xf32, #tpu.memory_space<vmem>>, vector<16x64xf32>,
    return
  }
  func.func @transform_0(%arg0: i32, %arg1: i32) -> (i32, i32) {
    %c0_i32 = arith.constant 0 : i32
    %c0_i32_0 = arith.constant 0 : i32
    return %arg0, %c0_i32 : i32, i32
  }
  func.func @transform_1(%arg0: i32, %arg1: i32) -> (i32, i32) {
    %c0_i32 = arith.constant 0 : i32
    %c0_i32_0 = arith.constant 0 : i32
    %c0_i32_1 = arith.constant 0 : i32
    return %c0_i32, %c0_i32_0 : i32, i32
  }
  func.func @transform_2(%arg0: i32, %arg1: i32) -> (i32, i32) {
    %c0_i32 = arith.constant 0 : i32
    %c0_i32_0 = arith.constant 0 : i32
    %c0_i32_1 = arith.constant 0 : i32
    return %c0_i32, %c0_i32_0 : i32, i32
  }
  func.func @transform_3(%arg0: i32, %arg1: i32) -> (i32, i32) {
    %c0_i32 = arith.constant 0 : i32
    %c0_i32_0 = arith.constant 0 : i32
    return %c0_i32, %arg1 : i32, i32
  }
  func.func @transform_4(%arg0: i32, %arg1: i32) -> (i32, i32) {
    %c0_i32 = arith.constant 0 : i32
    return %arg0, %arg1 : i32, i32
  }
}

module attributes {stable_mosaic.version = 11 : i64} {
  func.func @_ln_ffn_res_kernel(%arg0: i32, %arg1: memref<16x32xf32, #tpu.memory_space<vmem>>, %arg2: memref<1x32xf32, #tpu.memory_space<vmem>>, %arg3: memref<1x32xf32, #tpu.memory_space<vmem>>, %arg4: memref<32x64xbf16, #tpu.memory_space<vmem>>, %arg5: memref<1x64xf32, #tpu.memory_space<vmem>>, %arg6: memref<64x32xbf16, #tpu.memory_space<vmem>>, %arg7: memref<1x32xf32, #tpu.memory_space<vmem>>, %arg8: memref<16x32xf32, #tpu.memory_space<vmem>>) attributes {dimension_semantics = [#tpu.dimension_semantics<parallel>], iteration_bounds = array<i64: 1>, scalar_prefetch = 0 : i64, scratch_operands = 0 : i64, tpu.core_type = #tpu.core_type<tc>, window_params = [{transform_indices = @transform_0, window_bounds = array<i64: 16, 32>}, {pipeline_mode = #tpu.pipeline_mode<synchronous>, transform_indices = @transform_1, window_bounds = array<i64: 1, 32>}, {pipeline_mode = #tpu.pipeline_mode<synchronous>, transform_indices = @transform_2, window_bounds = array<i64: 1, 32>}, {pipeline_mode = #tpu.pipeline_mode<synchronous>, transform_indices = @transform_3, window_bounds = array<i64: 32, 64>}, {pipeline_mode = #tpu.pipeline_mode<synchronous>, transform_indices = @transform_4, window_bounds = array<i64: 1, 64>}, {pipeline_mode = #tpu.pipeline_mode<synchronous>, transform_indices = @transform_5, window_bounds = array<i64: 64, 32>}, {pipeline_mode = #tpu.pipeline_mode<synchronous>, transform_indices = @transform_6, window_bounds = array<i64: 1, 32>}, {transform_indices = @transform_7, window_bounds = array<i64: 16, 32>}]} {
    %c0 = arith.constant 0 : index
    %c0_0 = arith.constant 0 : index
    %0 = vector.load %arg1[%c0, %c0_0] : memref<16x32xf32, #tpu.memory_space<vmem>>, vector<16x32xf32>
    %cst = arith.constant dense<0.000000e+00> : vector<16xf32>
    %1 = vector.multi_reduction <add>, %0, %cst [1] : vector<16x32xf32> to vector<16xf32>
    %2 = vector.shape_cast %1 : vector<16xf32> to vector<16x1xf32>
    %cst_1 = arith.constant 3.200000e+01 : f32
    %3 = vector.broadcast %cst_1 : f32 to vector<16x1xf32>
    %4 = arith.divf %2, %3 : vector<16x1xf32>
    %5 = vector.broadcast %4 : vector<16x1xf32> to vector<16x32xf32>
    %6 = arith.subf %0, %5 : vector<16x32xf32>
    %7 = arith.mulf %6, %6 : vector<16x32xf32>
    %cst_2 = arith.constant dense<0.000000e+00> : vector<16xf32>
    %8 = vector.multi_reduction <add>, %7, %cst_2 [1] : vector<16x32xf32> to vector<16xf32>
    %9 = vector.shape_cast %8 : vector<16xf32> to vector<16x1xf32>
    %cst_3 = arith.constant 3.200000e+01 : f32
    %10 = vector.broadcast %cst_3 : f32 to vector<16x1xf32>
    %11 = arith.divf %9, %10 : vector<16x1xf32>
    %cst_4 = arith.constant 9.99999974E-6 : f32
    %12 = vector.broadcast %cst_4 : f32 to vector<16x1xf32>
    %13 = arith.addf %11, %12 : vector<16x1xf32>
    %14 = math.rsqrt %13 : vector<16x1xf32>
    %15 = vector.broadcast %14 : vector<16x1xf32> to vector<16x32xf32>
    %16 = arith.mulf %6, %15 : vector<16x32xf32>
    %c0_5 = arith.constant 0 : index
    %c0_6 = arith.constant 0 : index
    %17 = vector.load %arg2[%c0_5, %c0_6] : memref<1x32xf32, #tpu.memory_space<vmem>>, vector<1x32xf32>
    %18 = vector.broadcast %17 : vector<1x32xf32> to vector<16x32xf32>
    %19 = arith.mulf %16, %18 : vector<16x32xf32>
    %c0_7 = arith.constant 0 : index
    %c0_8 = arith.constant 0 : index
    %20 = vector.load %arg3[%c0_7, %c0_8] : memref<1x32xf32, #tpu.memory_space<vmem>>, vector<1x32xf32>
    %21 = vector.broadcast %20 : vector<1x32xf32> to vector<16x32xf32>
    %22 = arith.addf %19, %21 : vector<16x32xf32>
    %23 = arith.truncf %22 : vector<16x32xf32> to vector<16x32xbf16>
    %c0_9 = arith.constant 0 : index
    %c0_10 = arith.constant 0 : index
    %24 = vector.load %arg4[%c0_9, %c0_10] : memref<32x64xbf16, #tpu.memory_space<vmem>>, vector<32x64xbf16>
    %cst_11 = arith.constant dense<0.000000e+00> : vector<16x64xf32>
    %25 = tpu.matmul %23, %24, %cst_11 {dimension_numbers = #tpu.dot_dimension_numbers<[1], [0], [0], [1], [0, 0, 1, 1], [], []>} : vector<16x32xbf16>, vector<32x64xbf16>, vector<16x64xf32> -> vector<16x64xf32>
    %c0_12 = arith.constant 0 : index
    %c0_13 = arith.constant 0 : index
    %26 = vector.load %arg5[%c0_12, %c0_13] : memref<1x64xf32, #tpu.memory_space<vmem>>, vector<1x64xf32>
    %27 = vector.broadcast %26 : vector<1x64xf32> to vector<16x64xf32>
    %28 = arith.addf %25, %27 : vector<16x64xf32>
    %cst_14 = arith.constant 0.000000e+00 : f32
    %29 = vector.broadcast %cst_14 : f32 to vector<16x64xf32>
    %30 = arith.maximumf %28, %29 : vector<16x64xf32>
    %31 = arith.truncf %30 : vector<16x64xf32> to vector<16x64xbf16>
    %c0_15 = arith.constant 0 : index
    %c0_16 = arith.constant 0 : index
    %32 = vector.load %arg6[%c0_15, %c0_16] : memref<64x32xbf16, #tpu.memory_space<vmem>>, vector<64x32xbf16>
    %cst_17 = arith.constant dense<0.000000e+00> : vector<16x32xf32>
    %33 = tpu.matmul %31, %32, %cst_17 {dimension_numbers = #tpu.dot_dimension_numbers<[1], [0], [0], [1], [0, 0, 1, 1], [], []>} : vector<16x64xbf16>, vector<64x32xbf16>, vector<16x32xf32> -> vector<16x32xf32>
    %c0_18 = arith.constant 0 : index
    %c0_19 = arith.constant 0 : index
    %34 = vector.load %arg7[%c0_18, %c0_19] : memref<1x32xf32, #tpu.memory_space<vmem>>, vector<1x32xf32>
    %35 = vector.broadcast %34 : vector<1x32xf32> to vector<16x32xf32>
    %36 = arith.addf %33, %35 : vector<16x32xf32>
    %37 = arith.addf %0, %36 : vector<16x32xf32>
    %c0_20 = arith.constant 0 : index
    %c0_21 = arith.constant 0 : index
    %38 = vector.load %arg8[%c0_20, %c0_21] : memref<16x32xf32, #tpu.memory_space<vmem>>, vector<16x32xf32>
    tpu.vector_store %arg8[%c0_20, %c0_21], %37 {strides = array<i32>} : memref<16x32xf32, #tpu.memory_space<vmem>>, vector<16x32xf32>,
    return
  }
  func.func @transform_0(%arg0: i32) -> (i32, i32) {
    %c0_i32 = arith.constant 0 : i32
    %c0_i32_0 = arith.constant 0 : i32
    return %arg0, %c0_i32 : i32, i32
  }
  func.func @transform_1(%arg0: i32) -> (i32, i32) {
    %c0_i32 = arith.constant 0 : i32
    %c0_i32_0 = arith.constant 0 : i32
    %c0_i32_1 = arith.constant 0 : i32
    return %c0_i32, %c0_i32_0 : i32, i32
  }
  func.func @transform_2(%arg0: i32) -> (i32, i32) {
    %c0_i32 = arith.constant 0 : i32
    %c0_i32_0 = arith.constant 0 : i32
    %c0_i32_1 = arith.constant 0 : i32
    return %c0_i32, %c0_i32_0 : i32, i32
  }
  func.func @transform_3(%arg0: i32) -> (i32, i32) {
    %c0_i32 = arith.constant 0 : i32
    %c0_i32_0 = arith.constant 0 : i32
    %c0_i32_1 = arith.constant 0 : i32
    return %c0_i32, %c0_i32_0 : i32, i32
  }
  func.func @transform_4(%arg0: i32) -> (i32, i32) {
    %c0_i32 = arith.constant 0 : i32
    %c0_i32_0 = arith.constant 0 : i32
    %c0_i32_1 = arith.constant 0 : i32
    return %c0_i32, %c0_i32_0 : i32, i32
  }
  func.func @transform_5(%arg0: i32) -> (i32, i32) {
    %c0_i32 = arith.constant 0 : i32
    %c0_i32_0 = arith.constant 0 : i32
    %c0_i32_1 = arith.constant 0 : i32
    return %c0_i32, %c0_i32_0 : i32, i32
  }
  func.func @transform_6(%arg0: i32) -> (i32, i32) {
    %c0_i32 = arith.constant 0 : i32
    %c0_i32_0 = arith.constant 0 : i32
    %c0_i32_1 = arith.constant 0 : i32
    return %c0_i32, %c0_i32_0 : i32, i32
  }
  func.func @transform_7(%arg0: i32) -> (i32, i32) {
    %c0_i32 = arith.constant 0 : i32
    %c0_i32_0 = arith.constant 0 : i32
    return %arg0, %c0_i32 : i32, i32
  }
}

</mosaic_0001>

<llo_original>
// kernel: closed_call.27
$region0: #{closed_call.27}
  #allocation0 [shape = 'u32[]', space=smem, size = 0x4, offset = 0x4, fixed_abs, tag = 'smem constant byte address 0x4 - core index']
  #allocation1 [shape = 'u32[144,128]{1,0:T(1,128)}', space=vmem, size = 0x12000, scoped, tag = 'internal scratch']
  %s0 = inlined_call_operand.vmem [shape: f32[16,32], index: 0, kind: input, shape index: {}]
  %s1 = inlined_call_operand.vmem [shape: bf16[32,32], index: 1, kind: input, shape index: {}]
  %s2 = inlined_call_operand.vmem [shape: f32[1,32], index: 2, kind: input, shape index: {}]
  %s3 = inlined_call_operand.vmem [shape: f32[16,32], index: 3, kind: input, shape index: {}]
  %s4 = inlined_call_operand.vmem [shape: f32[16,32], index: 4, kind: output, shape index: {}]
  %s5 = sld [smem:[#allocation0]]
  $region26: #{closed_call.27} parent=0
    _
  %s7 = ssub.s32 1, %s5
  %s8 = scalar_select 0, %s7, %s5
  // Predicated region
  $region2: #{closed_call.27} parent=0 // pred_check
    _
  $region3: #{closed_call.27} parent=0 // pred_check_branch
    %10 = sbr.rel (0) target = $region5
  $region4: #{closed_call.27} parent=0 // pred_region
    _
  $region5: #{closed_call.27} parent=0 // pred_fallthru
    _
  // Predicated region
  $region6: #{closed_call.27} parent=0 // pred_check
    _
  $region7: #{closed_call.27} parent=0 // pred_check_branch
    %12 = sbr.rel (0) target = $region9
  $region8: #{closed_call.27} parent=0 // pred_region
    _
  $region9: #{closed_call.27} parent=0 // pred_fallthru
    _
  // Predicated region
  $region10: #{closed_call.27} parent=0 // pred_check
    _
  $region11: #{closed_call.27} parent=0 // pred_check_branch
    %14 = sbr.rel (0) target = $region13
  $region12: #{closed_call.27} parent=0 // pred_region
    _
  $region13: #{closed_call.27} parent=0 // pred_fallthru
    _
  // Predicated region
  $region14: #{closed_call.27} parent=0 // pred_check
    _
  $region15: #{closed_call.27} parent=0 // pred_check_branch
    %16 = sbr.rel (0) target = $region17
  $region16: #{closed_call.27} parent=0 // pred_region
    _
  $region17: #{closed_call.27} parent=0 // pred_fallthru
    _
  %v18 = vld [vmem:[%s0] sm:$0xff]
  %v19 = vld [vmem:[%s0 + $0x8] sm:$0xff]
  %v20 = vpack.c.bf16 %v19, %v18
  %v21 = vld [vmem:[%s1] sm:$0xf]
  %v22 = vld [vmem:[%s1 + $0x4] sm:$0xf]
  %v23 = vld [vmem:[%s1 + $0x8] sm:$0xf]
  %v24 = vld [vmem:[%s1 + $0xc] sm:$0xf]
  %v25 = vld [vmem:[%s2] sm:$0x1]
  %v27 = vlaneseq
  %v28 = vshrl.u32 %v27, 7
  %v29 = vsub.s32 0, %v28
  %v30 = vrot.slane %v25, %v29
  %v36 = vunpack.c.l.b16 %v21
  %v37 = vunpack.c.l.b16 %v22
  %v38 = vunpack.c.l.b16 %v23
  %v39 = vunpack.c.l.b16 %v24
  %v40 = vpack.c.b16 %v37, %v36
  %v41 = vpack.c.b16 %v39, %v38
  %vm44 = vcmask 261120
  %v46 = vsel %vm44, %v20, 0
  %48 = vmatprep.subr.bf16.mxu0 0
  %49 = vmatpush1.bf16.msra.mxu0 %v40
  %50 = vmatprep.subr.bf16.mxu0 0
  %51 = vmatpush1.bf16.msra.mxu0 %v41
  %52 = vmatprep.subr.bf16.mxu0 0
  %53 = vmatpush1.bf16.msra.mxu0 0
  %54 = vmatprep.subr.bf16.mxu0 0
  %55 = vmatpush1.bf16.msra.mxu0 0
  %56 = vmatprep.subr.bf16.mxu0 0
  %57 = vmatpush1.bf16.msra.mxu0 0
  %58 = vmatprep.subr.bf16.mxu0 0
  %59 = vmatpush1.bf16.msra.mxu0 0
  %60 = vmatprep.subr.bf16.mxu0 0
  %61 = vmatpush1.bf16.msra.mxu0 0
  %62 = vmatprep.subr.bf16.mxu0 0
  %63 = vmatpush1.bf16.msra.mxu0 0
  %64 = vmatprep.subr.bf16.mxu0 0
  %65 = vmatpush1.bf16.msra.mxu0 0
  %66 = vmatprep.subr.bf16.mxu0 0
  %67 = vmatpush1.bf16.msra.mxu0 0
  %68 = vmatprep.subr.bf16.mxu0 0
  %69 = vmatpush1.bf16.msra.mxu0 0
  %70 = vmatprep.subr.bf16.mxu0 0
  %71 = vmatpush1.bf16.msra.mxu0 0
  %72 = vmatprep.subr.bf16.mxu0 0
  %73 = vmatpush1.bf16.msra.mxu0 0
  %74 = vmatprep.subr.bf16.mxu0 0
  %75 = vmatpush1.bf16.msra.mxu0 0
  %76 = vmatprep.subr.bf16.mxu0 0
  %77 = vmatpush1.bf16.msra.mxu0 0
  %78 = vmatprep.subr.bf16.mxu0 0
  %79 = vmatpush1.bf16.msra.mxu0 0
  %80 = vmatprep.mubr.bf16.mxu0 0
  %81 = vmatmul.mubr.bf16.gmra.mrb[0].mxu0 %v46
  %v82 = vpop.f32.mrb[0].mxu0
  %v83 = vadd.f32 %v30, %v82
  %v84 = vpop.f32.mrb[0].mxu0
  %v85 = vpop.f32.mrb[0].mxu0
  %v86 = vadd.f32 %v30, %v85
  %v87 = vpop.f32.mrb[0].mxu0
  %88 = vdwg.mxu0
  %v89 = vld [vmem:[%s3] sm:$0xff]
  %v90 = vld [vmem:[%s3 + $0x8] sm:$0xff]
  %v91 = vadd.f32 %v83, %v89
  %v92 = vadd.f32 %v86, %v90
  %93 = vst.msk [vmem:[%s4] sm:$0xff] %vm44, %v91
  %94 = vst.msk [vmem:[%s4 + $0x8] sm:$0xff] %vm44, %v92
  // Predicated region
  $region18: #{closed_call.27} parent=0 // pred_check
    _
  $region19: #{closed_call.27} parent=0 // pred_check_branch
    %96 = sbr.rel (0) target = $region21
  $region20: #{closed_call.27} parent=0 // pred_region
    _
  $region21: #{closed_call.27} parent=0 // pred_fallthru
    _
  // Predicated region
  $region22: #{closed_call.27} parent=0 // pred_check
    _
  $region23: #{closed_call.27} parent=0 // pred_check_branch
    %98 = sbr.rel (0) target = $region25
  $region24: #{closed_call.27} parent=0 // pred_region
    _
  $region25: #{closed_call.27} parent=0 // pred_fallthru
    _

// kernel: closed_call.28
$region0: #{closed_call.28}
  #allocation0 [shape = 'u32[]', space=smem, size = 0x4, offset = 0x4, fixed_abs, tag = 'smem constant byte address 0x4 - core index']
  #allocation1 [shape = 'u32[144,128]{1,0:T(1,128)}', space=vmem, size = 0x12000, scoped, tag = 'internal scratch']
  %s0 = inlined_call_operand.vmem [shape: f32[16,32], index: 0, kind: input, shape index: {}]
  %s1 = inlined_call_operand.vmem [shape: f32[1,32], index: 1, kind: input, shape index: {}]
  %s2 = inlined_call_operand.vmem [shape: f32[1,32], index: 2, kind: input, shape index: {}]
  %s3 = inlined_call_operand.vmem [shape: bf16[32,32], index: 3, kind: input, shape index: {}]
  %s4 = inlined_call_operand.vmem [shape: f32[1,32], index: 4, kind: input, shape index: {}]
  %s5 = inlined_call_operand.vmem [shape: f32[16,32], index: 5, kind: output, shape index: {}]
  %s6 = sld [smem:[#allocation0]]
  $region30: #{closed_call.28} parent=0
    _
  %s8 = ssub.s32 1, %s6
  %s9 = scalar_select 0, %s8, %s6
  // Predicated region
  $region2: #{closed_call.28} parent=0 // pred_check
    _
  $region3: #{closed_call.28} parent=0 // pred_check_branch
    %11 = sbr.rel (0) target = $region5
  $region4: #{closed_call.28} parent=0 // pred_region
    _
  $region5: #{closed_call.28} parent=0 // pred_fallthru
    _
  // Predicated region
  $region6: #{closed_call.28} parent=0 // pred_check
    _
  $region7: #{closed_call.28} parent=0 // pred_check_branch
    %13 = sbr.rel (0) target = $region9
  $region8: #{closed_call.28} parent=0 // pred_region
    _
  $region9: #{closed_call.28} parent=0 // pred_fallthru
    _
  // Predicated region
  $region10: #{closed_call.28} parent=0 // pred_check
    _
  $region11: #{closed_call.28} parent=0 // pred_check_branch
    %15 = sbr.rel (0) target = $region13
  $region12: #{closed_call.28} parent=0 // pred_region
    _
  $region13: #{closed_call.28} parent=0 // pred_fallthru
    _
  // Predicated region
  $region14: #{closed_call.28} parent=0 // pred_check
    _
  $region15: #{closed_call.28} parent=0 // pred_check_branch
    %17 = sbr.rel (0) target = $region17
  $region16: #{closed_call.28} parent=0 // pred_region
    _
  $region17: #{closed_call.28} parent=0 // pred_fallthru
    _
  // Predicated region
  $region18: #{closed_call.28} parent=0 // pred_check
    _
  $region19: #{closed_call.28} parent=0 // pred_check_branch
    %19 = sbr.rel (0) target = $region21
  $region20: #{closed_call.28} parent=0 // pred_region
    _
  $region21: #{closed_call.28} parent=0 // pred_fallthru
    _
  %v21 = vld [vmem:[%s0] sm:$0xff]
  %v22 = vld [vmem:[%s0 + $0x8] sm:$0xff]
  %vm23 = vcmask 261120
  %v24 = vsel %vm23, %v21, 0.0
  %25 = vadd.xlane.f32.xlu0 %v24
  %v26 = vpop.xlane.xlu0 %25
  %v27 = vsel %vm23, %v22, 0.0
  %28 = vadd.xlane.f32.xlu0 %v27
  %v29 = vpop.xlane.xlu0 %28
  %v30 = vrcp.pop 32.0
  %v31 = vmul.f32 %v26, %v30
  %v32 = vmul.f32 %v29, %v30
  %v33 = vsub.f32 %v21, %v31
  %v34 = vsub.f32 %v22, %v32
  %v35 = vmul.f32 %v33, %v33
  %v36 = vmul.f32 %v34, %v34
  %v37 = vsel %vm23, %v35, 0.0
  %38 = vadd.xlane.f32.xlu0 %v37
  %v39 = vpop.xlane.xlu0 %38
  %v40 = vsel %vm23, %v36, 0.0
  %41 = vadd.xlane.f32.xlu0 %v40
  %v42 = vpop.xlane.xlu0 %41
  %v43 = vmul.f32 %v39, %v30
  %v44 = vmul.f32 %v42, %v30
  %v45 = vadd.f32 %v43, 1e-05
  %v46 = vadd.f32 %v44, 1e-05
  %v47 = vrsqrt.pop %v45
  %v48 = vrsqrt.pop %v46
  %v49 = vmul.f32 %v33, %v47
  %v50 = vmul.f32 %v34, %v48
  %v51 = vld [vmem:[%s1] sm:$0x1]
  %v53 = vlaneseq
  %v54 = vshrl.u32 %v53, 7
  %v55 = vsub.s32 0, %v54
  %v56 = vrot.slane %v51, %v55
  %v58 = vmul.f32 %v49, %v56
  %v59 = vmul.f32 %v50, %v56
  %v60 = vld [vmem:[%s2] sm:$0x1]
  %v62 = vlaneseq
  %v63 = vshrl.u32 %v62, 7
  %v64 = vsub.s32 0, %v63
  %v65 = vrot.slane %v60, %v64
  %v67 = vadd.f32 %v58, %v65
  %v68 = vadd.f32 %v59, %v65
  %v69 = vpack.c.bf16 %v68, %v67
  %v70 = vld [vmem:[%s3] sm:$0xf]
  %v71 = vld [vmem:[%s3 + $0x4] sm:$0xf]
  %v72 = vld [vmem:[%s3 + $0x8] sm:$0xf]
  %v73 = vld [vmem:[%s3 + $0xc] sm:$0xf]
  %v74 = vld [vmem:[%s4] sm:$0x1]
  %v76 = vlaneseq
  %v77 = vshrl.u32 %v76, 7
  %v78 = vsub.s32 0, %v77
  %v79 = vrot.slane %v74, %v78
  %v85 = vunpack.c.l.b16 %v70
  %v86 = vunpack.c.l.b16 %v71
  %v87 = vunpack.c.l.b16 %v72
  %v88 = vunpack.c.l.b16 %v73
  %v89 = vpack.c.b16 %v86, %v85
  %v90 = vpack.c.b16 %v88, %v87
  %v94 = vsel %vm23, %v69, 0
  %96 = vmatprep.subr.bf16.mxu0 0
  %97 = vmatpush1.bf16.msra.mxu0 %v89
  %98 = vmatprep.subr.bf16.mxu0 0
  %99 = vmatpush1.bf16.msra.mxu0 %v90
  %100 = vmatprep.subr.bf16.mxu0 0
  %101 = vmatpush1.bf16.msra.mxu0 0
  %102 = vmatprep.subr.bf16.mxu0 0
  %103 = vmatpush1.bf16.msra.mxu0 0
  %104 = vmatprep.subr.bf16.mxu0 0
  %105 = vmatpush1.bf16.msra.mxu0 0
  %106 = vmatprep.subr.bf16.mxu0 0
  %107 = vmatpush1.bf16.msra.mxu0 0
  %108 = vmatprep.subr.bf16.mxu0 0
  %109 = vmatpush1.bf16.msra.mxu0 0
  %110 = vmatprep.subr.bf16.mxu0 0
  %111 = vmatpush1.bf16.msra.mxu0 0
  %112 = vmatprep.subr.bf16.mxu0 0
  %113 = vmatpush1.bf16.msra.mxu0 0
  %114 = vmatprep.subr.bf16.mxu0 0
  %115 = vmatpush1.bf16.msra.mxu0 0
  %116 = vmatprep.subr.bf16.mxu0 0
  %117 = vmatpush1.bf16.msra.mxu0 0
  %118 = vmatprep.subr.bf16.mxu0 0
  %119 = vmatpush1.bf16.msra.mxu0 0
  %120 = vmatprep.subr.bf16.mxu0 0
  %121 = vmatpush1.bf16.msra.mxu0 0
  %122 = vmatprep.subr.bf16.mxu0 0
  %123 = vmatpush1.bf16.msra.mxu0 0
  %124 = vmatprep.subr.bf16.mxu0 0
  %125 = vmatpush1.bf16.msra.mxu0 0
  %126 = vmatprep.subr.bf16.mxu0 0
  %127 = vmatpush1.bf16.msra.mxu0 0
  %128 = vmatprep.mubr.bf16.mxu0 0
  %129 = vmatmul.mubr.bf16.gmra.mrb[0].mxu0 %v94
  %v130 = vpop.f32.mrb[0].mxu0
  %v131 = vadd.f32 %v79, %v130
  %v132 = vpop.f32.mrb[0].mxu0
  %v133 = vpop.f32.mrb[0].mxu0
  %v134 = vadd.f32 %v79, %v133
  %v135 = vpop.f32.mrb[0].mxu0
  %136 = vdwg.mxu0
  %137 = vst.msk [vmem:[%s5] sm:$0xff] %vm23, %v131
  %138 = vst.msk [vmem:[%s5 + $0x8] sm:$0xff] %vm23, %v134
  // Predicated region
  $region22: #{closed_call.28} parent=0 // pred_check
    _
  $region23: #{closed_call.28} parent=0 // pred_check_branch
    %140 = sbr.rel (0) target = $region25
  $region24: #{closed_call.28} parent=0 // pred_region
    _
  $region25: #{closed_call.28} parent=0 // pred_fallthru
    _
  // Predicated region
  $region26: #{closed_call.28} parent=0 // pred_check
    _
  $region27: #{closed_call.28} parent=0 // pred_check_branch
    %142 = sbr.rel (0) target = $region29
  $region28: #{closed_call.28} parent=0 // pred_region
    _
  $region29: #{closed_call.28} parent=0 // pred_fallthru
    _

// kernel: closed_call.25
$region0: #{closed_call.25}
  #allocation0 [shape = 'u32[]', space=smem, size = 0x4, offset = 0x4, fixed_abs, tag = 'smem constant byte address 0x4 - core index']
  #allocation1 [shape = 'u32[144,128]{1,0:T(1,128)}', space=vmem, size = 0x12000, scoped, tag = 'internal scratch']
  %s0 = inlined_call_operand.vmem [shape: f32[16,32], index: 0, kind: input, shape index: {}]
  %s1 = inlined_call_operand.vmem [shape: f32[1,32], index: 1, kind: input, shape index: {}]
  %s2 = inlined_call_operand.vmem [shape: f32[1,32], index: 2, kind: input, shape index: {}]
  %s3 = inlined_call_operand.vmem [shape: bf16[32,96], index: 3, kind: input, shape index: {}]
  %s4 = inlined_call_operand.vmem [shape: f32[1,96], index: 4, kind: input, shape index: {}]
  %s5 = inlined_call_operand.vmem [shape: f32[16,96], index: 5, kind: output, shape index: {}]
  %s6 = sld [smem:[#allocation0]]
  $region30: #{closed_call.25} parent=0
    _
  %s8 = ssub.s32 1, %s6
  %s9 = scalar_select 0, %s8, %s6
  // Predicated region
  $region2: #{closed_call.25} parent=0 // pred_check
    _
  $region3: #{closed_call.25} parent=0 // pred_check_branch
    %11 = sbr.rel (0) target = $region5
  $region4: #{closed_call.25} parent=0 // pred_region
    _
  $region5: #{closed_call.25} parent=0 // pred_fallthru
    _
  // Predicated region
  $region6: #{closed_call.25} parent=0 // pred_check
    _
  $region7: #{closed_call.25} parent=0 // pred_check_branch
    %13 = sbr.rel (0) target = $region9
  $region8: #{closed_call.25} parent=0 // pred_region
    _
  $region9: #{closed_call.25} parent=0 // pred_fallthru
    _
  // Predicated region
  $region10: #{closed_call.25} parent=0 // pred_check
    _
  $region11: #{closed_call.25} parent=0 // pred_check_branch
    %15 = sbr.rel (0) target = $region13
  $region12: #{closed_call.25} parent=0 // pred_region
    _
  $region13: #{closed_call.25} parent=0 // pred_fallthru
    _
  // Predicated region
  $region14: #{closed_call.25} parent=0 // pred_check
    _
  $region15: #{closed_call.25} parent=0 // pred_check_branch
    %17 = sbr.rel (0) target = $region17
  $region16: #{closed_call.25} parent=0 // pred_region
    _
  $region17: #{closed_call.25} parent=0 // pred_fallthru
    _
  // Predicated region
  $region18: #{closed_call.25} parent=0 // pred_check
    _
  $region19: #{closed_call.25} parent=0 // pred_check_branch
    %19 = sbr.rel (0) target = $region21
  $region20: #{closed_call.25} parent=0 // pred_region
    _
  $region21: #{closed_call.25} parent=0 // pred_fallthru
    _
  %v21 = vld [vmem:[%s0] sm:$0xff]
  %v22 = vld [vmem:[%s0 + $0x8] sm:$0xff]
  %vm23 = vcmask 261120
  %v24 = vsel %vm23, %v21, 0.0
  %25 = vadd.xlane.f32.xlu0 %v24
  %v26 = vpop.xlane.xlu0 %25
  %v27 = vsel %vm23, %v22, 0.0
  %28 = vadd.xlane.f32.xlu0 %v27
  %v29 = vpop.xlane.xlu0 %28
  %v30 = vrcp.pop 32.0
  %v31 = vmul.f32 %v26, %v30
  %v32 = vmul.f32 %v29, %v30
  %v33 = vsub.f32 %v21, %v31
  %v34 = vsub.f32 %v22, %v32
  %v35 = vmul.f32 %v33, %v33
  %v36 = vmul.f32 %v34, %v34
  %v37 = vsel %vm23, %v35, 0.0
  %38 = vadd.xlane.f32.xlu0 %v37
  %v39 = vpop.xlane.xlu0 %38
  %v40 = vsel %vm23, %v36, 0.0
  %41 = vadd.xlane.f32.xlu0 %v40
  %v42 = vpop.xlane.xlu0 %41
  %v43 = vmul.f32 %v39, %v30
  %v44 = vmul.f32 %v42, %v30
  %v45 = vadd.f32 %v43, 1e-05
  %v46 = vadd.f32 %v44, 1e-05
  %v47 = vrsqrt.pop %v45
  %v48 = vrsqrt.pop %v46
  %v49 = vmul.f32 %v33, %v47
  %v50 = vmul.f32 %v34, %v48
  %v51 = vld [vmem:[%s1] sm:$0x1]
  %v53 = vlaneseq
  %v54 = vshrl.u32 %v53, 7
  %v55 = vsub.s32 0, %v54
  %v56 = vrot.slane %v51, %v55
  %v58 = vmul.f32 %v49, %v56
  %v59 = vmul.f32 %v50, %v56
  %v60 = vld [vmem:[%s2] sm:$0x1]
  %v62 = vlaneseq
  %v63 = vshrl.u32 %v62, 7
  %v64 = vsub.s32 0, %v63
  %v65 = vrot.slane %v60, %v64
  %v67 = vadd.f32 %v58, %v65
  %v68 = vadd.f32 %v59, %v65
  %v69 = vpack.c.bf16 %v68, %v67
  %v70 = vld [vmem:[%s3] sm:$0xf]
  %v71 = vld [vmem:[%s3 + $0x4] sm:$0xf]
  %v72 = vld [vmem:[%s3 + $0x8] sm:$0xf]
  %v73 = vld [vmem:[%s3 + $0xc] sm:$0xf]
  %v74 = vld [vmem:[%s4] sm:$0x1]
  %v76 = vlaneseq
  %v77 = vshrl.u32 %v76, 7
  %v78 = vsub.s32 0, %v77
  %v79 = vrot.slane %v74, %v78
  %v85 = vunpack.c.l.b16 %v70
  %v86 = vunpack.c.l.b16 %v71
  %v87 = vunpack.c.l.b16 %v72
  %v88 = vunpack.c.l.b16 %v73
  %v89 = vpack.c.b16 %v86, %v85
  %v90 = vpack.c.b16 %v88, %v87
  %v94 = vsel %vm23, %v69, 0
  %96 = vmatprep.subr.bf16.mxu0 0
  %97 = vmatpush1.bf16.msra.mxu0 %v89
  %98 = vmatprep.subr.bf16.mxu0 0
  %99 = vmatpush1.bf16.msra.mxu0 %v90
  %100 = vmatprep.subr.bf16.mxu0 0
  %101 = vmatpush1.bf16.msra.mxu0 0
  %102 = vmatprep.subr.bf16.mxu0 0
  %103 = vmatpush1.bf16.msra.mxu0 0
  %104 = vmatprep.subr.bf16.mxu0 0
  %105 = vmatpush1.bf16.msra.mxu0 0
  %106 = vmatprep.subr.bf16.mxu0 0
  %107 = vmatpush1.bf16.msra.mxu0 0
  %108 = vmatprep.subr.bf16.mxu0 0
  %109 = vmatpush1.bf16.msra.mxu0 0
  %110 = vmatprep.subr.bf16.mxu0 0
  %111 = vmatpush1.bf16.msra.mxu0 0
  %112 = vmatprep.subr.bf16.mxu0 0
  %113 = vmatpush1.bf16.msra.mxu0 0
  %114 = vmatprep.subr.bf16.mxu0 0
  %115 = vmatpush1.bf16.msra.mxu0 0
  %116 = vmatprep.subr.bf16.mxu0 0
  %117 = vmatpush1.bf16.msra.mxu0 0
  %118 = vmatprep.subr.bf16.mxu0 0
  %119 = vmatpush1.bf16.msra.mxu0 0
  %120 = vmatprep.subr.bf16.mxu0 0
  %121 = vmatpush1.bf16.msra.mxu0 0
  %122 = vmatprep.subr.bf16.mxu0 0
  %123 = vmatpush1.bf16.msra.mxu0 0
  %124 = vmatprep.subr.bf16.mxu0 0
  %125 = vmatpush1.bf16.msra.mxu0 0
  %126 = vmatprep.subr.bf16.mxu0 0
  %127 = vmatpush1.bf16.msra.mxu0 0
  %128 = vmatprep.mubr.bf16.mxu0 0
  %129 = vmatmul.mubr.bf16.gmra.mrb[0].mxu0 %v94
  %v130 = vpop.f32.mrb[0].mxu0
  %v131 = vadd.f32 %v79, %v130
  %v132 = vpop.f32.mrb[0].mxu0
  %v133 = vpop.f32.mrb[0].mxu0
  %v134 = vadd.f32 %v79, %v133
  %v135 = vpop.f32.mrb[0].mxu0
  %136 = vdwg.mxu0
  %vm137 = vcmask 785408
  %138 = vst.msk [vmem:[%s5] sm:$0xff] %vm137, %v131
  %139 = vst.msk [vmem:[%s5 + $0x8] sm:$0xff] %vm137, %v134
  // Predicated region
  $region22: #{closed_call.25} parent=0 // pred_check
    _
  $region23: #{closed_call.25} parent=0 // pred_check_branch
    %141 = sbr.rel (0) target = $region25
  $region24: #{closed_call.25} parent=0 // pred_region
    _
  $region25: #{closed_call.25} parent=0 // pred_fallthru
    _
  // Predicated region
  $region26: #{closed_call.25} parent=0 // pred_check
    _
  $region27: #{closed_call.25} parent=0 // pred_check_branch
    %143 = sbr.rel (0) target = $region29
  $region28: #{closed_call.25} parent=0 // pred_region
    _
  $region29: #{closed_call.25} parent=0 // pred_fallthru
    _

// kernel: closed_call.26
$region0: #{closed_call.26}
  #allocation0 [shape = 'u32[]', space=smem, size = 0x4, offset = 0x4, fixed_abs, tag = 'smem constant byte address 0x4 - core index']
  #allocation1 [shape = 'u32[144,128]{1,0:T(1,128)}', space=vmem, size = 0x12000, scoped, tag = 'internal scratch']
  %s0 = inlined_call_operand.vmem [shape: f32[2,8,96], index: 0, kind: input, shape index: {}]
  %s1 = inlined_call_operand.vmem [shape: f32[2,1,8], index: 1, kind: input, shape index: {}]
  %s2 = inlined_call_operand.vmem [shape: f32[2,8,32], index: 2, kind: output, shape index: {}]
  %s3 = sld [smem:[#allocation0]]
  $region41: #{closed_call.26} parent=0
    _
  %s5 = ssub.s32 1, %s3
  %s6 = scalar_select 0, %s5, %s3
  loop: start=0, step=1, limit=4
  $region2: #{closed_call.26} parent=0 // loop_pre_header
    _
  $region3: #{closed_call.26} parent=0 // loop_header
    %s8 = sphi 0, %s12
    %p9 = scmp.ge.s32.totalorder %s8, 4
    %s18 = sphi 0, %s20
    %s21 = sphi 0, %s18
    %s22 = sphi 0, %s21
    %s38 = sphi 0, %s22
    %s44 = sphi 0, %s46
    %s47 = sphi 0, %s44
    %s48 = sphi 0, %s47
    %s64 = sphi 0, %s48
    %s70 = sphi 0, %s72
    %s73 = sphi 0, %s70
    %s74 = sphi 0, %s73
    %s90 = sphi 0, %s74
  $region4: #{closed_call.26} parent=0 // loop_header_branch
    %11 = sbr.rel (%p9) target = $region8
  $region5: #{closed_call.26} parent=0 // loop_body
    %s13 = ssub.s32 %s8, 1
    %s14 = ssub.s32 %s8, 2
    %s15 = sadd.s32 %s8, 1
    %s16 = ssub.s32 %s8, %s15
    %p17 = scmp.eq.s32.totalorder %s16, 0
    %s19 = sadd.s32 %s18, 1
    %s20 = scalar_select %p17, %s18, %s19
    %p23 = pneg %p17
    %p24 = scmp.eq.s32.totalorder %s8, 1
    %p25 = por %p23, %p24
    %p26 = scmp.ne.s32.totalorder %s18, %s21
    %p27 = scmp.eq.s32.totalorder %s8, 0
    %p28 = por %p26, %p27
    %p29 = scmp.ne.s32.totalorder %s18, %s21
    %p30 = scmp.eq.s32.totalorder %s13, 1
    %p31 = por %p29, %p30
    %p32 = scmp.ne.s32.totalorder %s21, %s22
    %p33 = scmp.eq.s32.totalorder %s13, 0
    %p34 = por %p32, %p33
    %p35 = scmp.ne.s32.totalorder %s21, %s22
    %p36 = scmp.eq.s32.totalorder %s14, 1
    %p37 = por %p35, %p36
    %p39 = scmp.ne.s32.totalorder %s22, %s38
    %p40 = scmp.eq.s32.totalorder %s14, 0
    %p41 = por %p39, %p40
    %s42 = ssub.s32 %s8, %s15
    %p43 = scmp.eq.s32.totalorder %s42, 0
    %s45 = sadd.s32 %s44, 1
    %s46 = scalar_select %p43, %s44, %s45
    %p49 = pneg %p43
    %p50 = scmp.eq.s32.totalorder %s8, 1
    %p51 = por %p49, %p50
    %p52 = scmp.ne.s32.totalorder %s44, %s47
    %p53 = scmp.eq.s32.totalorder %s8, 0
    %p54 = por %p52, %p53
    %p55 = scmp.ne.s32.totalorder %s44, %s47
    %p56 = scmp.eq.s32.totalorder %s13, 1
    %p57 = por %p55, %p56
    %p58 = scmp.ne.s32.totalorder %s47, %s48
    %p59 = scmp.eq.s32.totalorder %s13, 0
    %p60 = por %p58, %p59
    %p61 = scmp.ne.s32.totalorder %s47, %s48
    %p62 = scmp.eq.s32.totalorder %s14, 1
    %p63 = por %p61, %p62
    %p65 = scmp.ne.s32.totalorder %s48, %s64
    %p66 = scmp.eq.s32.totalorder %s14, 0
    %p67 = por %p65, %p66
    %s68 = ssub.s32 %s8, %s15
    %p69 = scmp.eq.s32.totalorder %s68, 0
    %s71 = sadd.s32 %s70, 1
    %s72 = scalar_select %p69, %s70, %s71
    %p75 = pneg %p69
    %p76 = scmp.eq.s32.totalorder %s8, 1
    %p77 = por %p75, %p76
    %p78 = scmp.ne.s32.totalorder %s70, %s73
    %p79 = scmp.eq.s32.totalorder %s8, 0
    %p80 = por %p78, %p79
    %p81 = scmp.ne.s32.totalorder %s70, %s73
    %p82 = scmp.eq.s32.totalorder %s13, 1
    %p83 = por %p81, %p82
    %p84 = scmp.ne.s32.totalorder %s73, %s74
    %p85 = scmp.eq.s32.totalorder %s13, 0
    %p86 = por %p84, %p85
    %p87 = scmp.ne.s32.totalorder %s73, %s74
    %p88 = scmp.eq.s32.totalorder %s14, 1
    %p89 = por %p87, %p88
    %p91 = scmp.ne.s32.totalorder %s74, %s90
    %p92 = scmp.eq.s32.totalorder %s14, 0
    %p93 = por %p91, %p92
    %p94 = scmp.le.s32.totalorder 1, %s8
    %p95 = scmp.lt.s32.totalorder %s8, 3
    %p96 = pnand %p94, %p95
    %p97 = pneg %p96
    // Predicated region
    $region9: #{closed_call.26} parent=5 // pred_check
      _
    $region10: #{closed_call.26} parent=5 // pred_check_branch
      %99 = sbr.rel (%p96) target = $region12
    $region11: #{closed_call.26} parent=5 // pred_region
      %s100 = ssub.s32 %s8, 1
    $region12: #{closed_call.26} parent=5 // pred_fallthru
      _
    %p101 = scmp.lt.s32.totalorder %s8, 2
    // Predicated region
    $region13: #{closed_call.26} parent=5 // pred_check
      %p102 = pneg %p101
    $region14: #{closed_call.26} parent=5 // pred_check_branch
      %104 = sbr.rel (%p102) target = $region16
    $region15: #{closed_call.26} parent=5 // pred_region
      // Predicated region
      $region17: #{closed_call.26} parent=15 // pred_check
        %p105 = pneg %p28
      $region18: #{closed_call.26} parent=15 // pred_check_branch
        %107 = sbr.rel (%p105) target = $region20
      $region19: #{closed_call.26} parent=15 // pred_region
        %p108 = scmp.lt.s32.totalorder %s8, 1
        %s109 = scalar_select %p108, %s8, 1
        %s110 = smul.addr %s109, 8
        %s111 = scalar_lea.vmem %s0, %s110
      $region20: #{closed_call.26} parent=15 // pred_fallthru
        _
      // Predicated region
      $region21: #{closed_call.26} parent=15 // pred_check
        %p112 = pneg %p54
      $region22: #{closed_call.26} parent=15 // pred_check_branch
        %114 = sbr.rel (%p112) target = $region24
      $region23: #{closed_call.26} parent=15 // pred_region
        %p115 = scmp.lt.s32.totalorder %s8, 1
        %s116 = scalar_select %p115, %s8, 1
        %s117 = scalar_lea.vmem %s1, %s116
      $region24: #{closed_call.26} parent=15 // pred_fallthru
        _
    $region16: #{closed_call.26} parent=5 // pred_fallthru
      _
    %p118 = scmp.le.s32.totalorder 1, %s8
    %p119 = scmp.lt.s32.totalorder %s8, 3
    %p120 = pnand %p118, %p119
    %p121 = pneg %p120
    // Predicated region
    $region25: #{closed_call.26} parent=5 // pred_check
      _
    $region26: #{closed_call.26} parent=5 // pred_check_branch
      %123 = sbr.rel (%p120) target = $region28
    $region27: #{closed_call.26} parent=5 // pred_region
      %s124 = ssub.s32 %s8, 1
      %p125 = scmp.lt.s32.totalorder %s13, 1
      %s126 = scalar_select %p125, %s13, 1
      %s127 = smul.addr %s126, 8
      %s128 = scalar_lea.vmem %s0, %s127
      %p129 = pneg %p34
      %p130 = pneg %p31
      %p131 = scmp.lt.s32.totalorder %s13, 1
      %s132 = scalar_select %p131, %s13, 1
      %s133 = scalar_lea.vmem %s1, %s132
      %p134 = pneg %p60
      %p135 = pneg %p57
      %p136 = pneg %p86
      %p137 = pneg %p83
      %p138 = scmp.lt.s32.totalorder %s13, 1
      %s139 = scalar_select %p138, %s13, 1
      %s140 = smul.addr %s139, 8
      %s141 = scalar_lea.vmem %s2, %s140
      %p142 = scmp.lt.s32.totalorder %s13, 1
      %s143 = scalar_select %p142, %s13, 1
      %s144 = smul.addr %s143, 8
      %s145 = scalar_lea.vmem %s0, %s144
      %p146 = scmp.lt.s32.totalorder %s13, 1
      %s147 = scalar_select %p146, %s13, 1
      %s148 = scalar_lea.vmem %s1, %s147
      %p149 = scmp.lt.s32.totalorder %s13, 1
      %s150 = scalar_select %p149, %s13, 1
      %s151 = smul.addr %s150, 8
      %s152 = scalar_lea.vmem %s2, %s151
      %v154 = vld [vmem:[%s145] sm:$0xff]
      %v155 = vld [vmem:[%s148] sm:$0x1]
      %v156 = vlaneseq
      %v157 = vshrl.u32 %v156, 7
      %v158 = vlaneseq
      %v159 = vand.u32 %v158, 127
      %vm160 = vcmp.lt.s32.totalorder %v157, %v159
      %v161 = vsel %vm160, -65536.0, 0.0
      %v163 = vlaneseq
      %v164 = vshrl.u32 %v163, 7
      %v165 = vsub.s32 0, %v164
      %v166 = vrot.slane %v155, %v165
      %v168 = vadd.f32 %v161, %v166
      %v169 = vmul.f32 %v154, 0.35355338
      %v170 = vpack.c.bf16 %v169, %v169
      %v171 = vpack.c.bf16 %v154, %v154
      %173 = vrot.lane.b32.xlu0 %v171, 96
      %v174 = vpop.permute.xlu0 %173
      %vm175 = vcmask 64512
      %v177 = vsel %vm175, %v170, 0
      %v180 = vsel %vm175, %v174, 0
      %182 = vmatprep.subr.bf16.mxu0 0
      %183 = vmatpush1.bf16.xpose.msra.mxu0 %v180
      %184 = vmatprep.subr.bf16.mxu0 0
      %185 = vmatpush1.bf16.xpose.msra.mxu0 0
      %186 = vmatprep.subr.bf16.mxu0 0
      %187 = vmatpush1.bf16.xpose.msra.mxu0 0
      %188 = vmatprep.subr.bf16.mxu0 0
      %189 = vmatpush1.bf16.xpose.msra.mxu0 0
      %190 = vmatprep.subr.bf16.mxu0 0
      %191 = vmatpush1.bf16.xpose.msra.mxu0 0
      %192 = vmatprep.subr.bf16.mxu0 0
      %193 = vmatpush1.bf16.xpose.msra.mxu0 0
      %194 = vmatprep.subr.bf16.mxu0 0
      %195 = vmatpush1.bf16.xpose.msra.mxu0 0
      %196 = vmatprep.subr.bf16.mxu0 0
      %197 = vmatpush1.bf16.xpose.msra.mxu0 0
      %198 = vmatprep.subr.bf16.mxu0 0
      %199 = vmatpush1.bf16.xpose.msra.mxu0 0
      %200 = vmatprep.subr.bf16.mxu0 0
      %201 = vmatpush1.bf16.xpose.msra.mxu0 0
      %202 = vmatprep.subr.bf16.mxu0 0
      %203 = vmatpush1.bf16.xpose.msra.mxu0 0
      %204 = vmatprep.subr.bf16.mxu0 0
      %205 = vmatpush1.bf16.xpose.msra.mxu0 0
      %206 = vmatprep.subr.bf16.mxu0 0
      %207 = vmatpush1.bf16.xpose.msra.mxu0 0
      %208 = vmatprep.subr.bf16.mxu0 0
      %209 = vmatpush1.bf16.xpose.msra.mxu0 0
      %210 = vmatprep.subr.bf16.mxu0 0
      %211 = vmatpush1.bf16.xpose.msra.mxu0 0
      %212 = vmatprep.subr.bf16.mxu0 0
      %213 = vmatpush1.bf16.xpose.msra.mxu0 0
      %214 = vmatprep.mubr.bf16.mxu0 0
      %215 = vmatmul.mubr.bf16.gmra.mrb[0].mxu0 %v177
      %v216 = vpop.f32.mrb[0].mxu0
      %v217 = vadd.f32 %v168, %v216
      %v218 = vpop.f32.mrb[0].mxu0
      %v219 = vpop.f32.mrb[0].mxu0
      %v220 = vpop.f32.mrb[0].mxu0
      %221 = vdwg.mxu0
      %v222 = vsel %vm175, %v217, -inf
      %223 = vmax.xlane.f32.xlu0 %v222
      %v224 = vpop.xlane.xlu0 %223
      %v225 = vsub.f32 %v217, %v224
      %v226 = vmul.f32 %v225, 1.442695
      %v227 = vpow.pop %v226
      %v228 = vsel %vm175, %v227, 0.0
      %229 = vadd.xlane.f32.xlu0 %v228
      %v230 = vpop.xlane.xlu0 %229
      %v231 = vpack.c.bf16 %v227, %v227
      %232 = vrot.lane.b32.xlu0 %v171, 64
      %v233 = vpop.permute.xlu0 %232
      %v235 = vsel %vm175, %v231, 0
      %vm237 = vcmask 1043456
      %v239 = vsel %vm237, %v233, 0
      %241 = vmatprep.subr.bf16.mxu0 0
      %242 = vmatpush1.bf16.msra.mxu0 %v239
      %243 = vmatprep.subr.bf16.mxu0 0
      %244 = vmatpush1.bf16.msra.mxu0 0
      %245 = vmatprep.subr.bf16.mxu0 0
      %246 = vmatpush1.bf16.msra.mxu0 0
      %247 = vmatprep.subr.bf16.mxu0 0
      %248 = vmatpush1.bf16.msra.mxu0 0
      %249 = vmatprep.subr.bf16.mxu0 0
      %250 = vmatpush1.bf16.msra.mxu0 0
      %251 = vmatprep.subr.bf16.mxu0 0
      %252 = vmatpush1.bf16.msra.mxu0 0
      %253 = vmatprep.subr.bf16.mxu0 0
      %254 = vmatpush1.bf16.msra.mxu0 0
      %255 = vmatprep.subr.bf16.mxu0 0
      %256 = vmatpush1.bf16.msra.mxu0 0
      %257 = vmatprep.subr.bf16.mxu0 0
      %258 = vmatpush1.bf16.msra.mxu0 0
      %259 = vmatprep.subr.bf16.mxu0 0
      %260 = vmatpush1.bf16.msra.mxu0 0
      %261 = vmatprep.subr.bf16.mxu0 0
      %262 = vmatpush1.bf16.msra.mxu0 0
      %263 = vmatprep.subr.bf16.mxu0 0
      %264 = vmatpush1.bf16.msra.mxu0 0
      %265 = vmatprep.subr.bf16.mxu0 0
      %266 = vmatpush1.bf16.msra.mxu0 0
      %267 = vmatprep.subr.bf16.mxu0 0
      %268 = vmatpush1.bf16.msra.mxu0 0
      %269 = vmatprep.subr.bf16.mxu0 0
      %270 = vmatpush1.bf16.msra.mxu0 0
      %271 = vmatprep.subr.bf16.mxu0 0
      %272 = vmatpush1.bf16.msra.mxu0 0
      %273 = vmatprep.mubr.bf16.mxu0 0
      %274 = vmatmul.mubr.bf16.gmra.mrb[0].mxu0 %v235
      %v275 = vpop.f32.mrb[0].mxu0
      %v276 = vadd.f32 0.0, %v275
      %v277 = vpop.f32.mrb[0].mxu0
      %v278 = vpop.f32.mrb[0].mxu0
      %v279 = vpop.f32.mrb[0].mxu0
      %280 = vdwg.mxu0
      %v281 = vrcp.pop %v230
      %v282 = vmul.f32 %v276, %v281
      %284 = vrot.lane.b32.xlu0 %v170, 120
      %v285 = vpop.permute.xlu0 %284
      %286 = vrot.lane.b32.xlu0 %v171, 88
      %v287 = vpop.permute.xlu0 %286
      %v289 = vsel %vm175, %v285, 0
      %v292 = vsel %vm175, %v287, 0
      %294 = vmatprep.subr.bf16.mxu0 0
      %295 = vmatpush1.bf16.xpose.msra.mxu0 %v292
      %296 = vmatprep.subr.bf16.mxu0 0
      %297 = vmatpush1.bf16.xpose.msra.mxu0 0
      %298 = vmatprep.subr.bf16.mxu0 0
      %299 = vmatpush1.bf16.xpose.msra.mxu0 0
      %300 = vmatprep.subr.bf16.mxu0 0
      %301 = vmatpush1.bf16.xpose.msra.mxu0 0
      %302 = vmatprep.subr.bf16.mxu0 0
      %303 = vmatpush1.bf16.xpose.msra.mxu0 0
      %304 = vmatprep.subr.bf16.mxu0 0
      %305 = vmatpush1.bf16.xpose.msra.mxu0 0
      %306 = vmatprep.subr.bf16.mxu0 0
      %307 = vmatpush1.bf16.xpose.msra.mxu0 0
      %308 = vmatprep.subr.bf16.mxu0 0
      %309 = vmatpush1.bf16.xpose.msra.mxu0 0
      %310 = vmatprep.subr.bf16.mxu0 0
      %311 = vmatpush1.bf16.xpose.msra.mxu0 0
      %312 = vmatprep.subr.bf16.mxu0 0
      %313 = vmatpush1.bf16.xpose.msra.mxu0 0
      %314 = vmatprep.subr.bf16.mxu0 0
      %315 = vmatpush1.bf16.xpose.msra.mxu0 0
      %316 = vmatprep.subr.bf16.mxu0 0
      %317 = vmatpush1.bf16.xpose.msra.mxu0 0
      %318 = vmatprep.subr.bf16.mxu0 0
      %319 = vmatpush1.bf16.xpose.msra.mxu0 0
      %320 = vmatprep.subr.bf16.mxu0 0
      %321 = vmatpush1.bf16.xpose.msra.mxu0 0
      %322 = vmatprep.subr.bf16.mxu0 0
      %323 = vmatpush1.bf16.xpose.msra.mxu0 0
      %324 = vmatprep.subr.bf16.mxu0 0
      %325 = vmatpush1.bf16.xpose.msra.mxu0 0
      %326 = vmatprep.mubr.bf16.mxu0 0
      %327 = vmatmul.mubr.bf16.gmra.mrb[0].mxu0 %v289
      %v328 = vpop.f32.mrb[0].mxu0
      %v329 = vadd.f32 %v168, %v328
      %v330 = vpop.f32.mrb[0].mxu0
      %v331 = vpop.f32.mrb[0].mxu0
      %v332 = vpop.f32.mrb[0].mxu0
      %333 = vdwg.mxu0
      %v334 = vsel %vm175, %v329, -inf
      %335 = vmax.xlane.f32.xlu0 %v334
      %v336 = vpop.xlane.xlu0 %335
      %v337 = vsub.f32 %v329, %v336
      %v338 = vmul.f32 %v337, 1.442695
      %v339 = vpow.pop %v338
      %v340 = vsel %vm175, %v339, 0.0
      %341 = vadd.xlane.f32.xlu0 %v340
      %v342 = vpop.xlane.xlu0 %341
      %v343 = vpack.c.bf16 %v339, %v339
      %344 = vrot.lane.b32.xlu0 %v171, 56
      %v345 = vpop.permute.xlu0 %344
      %v347 = vsel %vm175, %v343, 0
      %v350 = vsel %vm237, %v345, 0
      %352 = vmatprep.subr.bf16.mxu0 0
      %353 = vmatpush1.bf16.msra.mxu0 %v350
      %354 = vmatprep.subr.bf16.mxu0 0
      %355 = vmatpush1.bf16.msra.mxu0 0
      %356 = vmatprep.subr.bf16.mxu0 0
      %357 = vmatpush1.bf16.msra.mxu0 0
      %358 = vmatprep.subr.bf16.mxu0 0
      %359 = vmatpush1.bf16.msra.mxu0 0
      %360 = vmatprep.subr.bf16.mxu0 0
      %361 = vmatpush1.bf16.msra.mxu0 0
      %362 = vmatprep.subr.bf16.mxu0 0
      %363 = vmatpush1.bf16.msra.mxu0 0
      %364 = vmatprep.subr.bf16.mxu0 0
      %365 = vmatpush1.bf16.msra.mxu0 0
      %366 = vmatprep.subr.bf16.mxu0 0
      %367 = vmatpush1.bf16.msra.mxu0 0
      %368 = vmatprep.subr.bf16.mxu0 0
      %369 = vmatpush1.bf16.msra.mxu0 0
      %370 = vmatprep.subr.bf16.mxu0 0
      %371 = vmatpush1.bf16.msra.mxu0 0
      %372 = vmatprep.subr.bf16.mxu0 0
      %373 = vmatpush1.bf16.msra.mxu0 0
      %374 = vmatprep.subr.bf16.mxu0 0
      %375 = vmatpush1.bf16.msra.mxu0 0
      %376 = vmatprep.subr.bf16.mxu0 0
      %377 = vmatpush1.bf16.msra.mxu0 0
      %378 = vmatprep.subr.bf16.mxu0 0
      %379 = vmatpush1.bf16.msra.mxu0 0
      %380 = vmatprep.subr.bf16.mxu0 0
      %381 = vmatpush1.bf16.msra.mxu0 0
      %382 = vmatprep.subr.bf16.mxu0 0
      %383 = vmatpush1.bf16.msra.mxu0 0
      %384 = vmatprep.mubr.bf16.mxu0 0
      %385 = vmatmul.mubr.bf16.gmra.mrb[0].mxu0 %v347
      %v386 = vpop.f32.mrb[0].mxu0
      %v387 = vadd.f32 0.0, %v386
      %v388 = vpop.f32.mrb[0].mxu0
      %v389 = vpop.f32.mrb[0].mxu0
      %v390 = vpop.f32.mrb[0].mxu0
      %391 = vdwg.mxu0
      %v392 = vrcp.pop %v342
      %v393 = vmul.f32 %v387, %v392
      %394 = vrot.lane.b32.xlu0 %v170, 112
      %v395 = vpop.permute.xlu0 %394
      %396 = vrot.lane.b32.xlu0 %v171, 80
      %v397 = vpop.permute.xlu0 %396
      %v399 = vsel %vm175, %v395, 0
      %v402 = vsel %vm175, %v397, 0
      %404 = vmatprep.subr.bf16.mxu0 0
      %405 = vmatpush1.bf16.xpose.msra.mxu0 %v402
      %406 = vmatprep.subr.bf16.mxu0 0
      %407 = vmatpush1.bf16.xpose.msra.mxu0 0
      %408 = vmatprep.subr.bf16.mxu0 0
      %409 = vmatpush1.bf16.xpose.msra.mxu0 0
      %410 = vmatprep.subr.bf16.mxu0 0
      %411 = vmatpush1.bf16.xpose.msra.mxu0 0
      %412 = vmatprep.subr.bf16.mxu0 0
      %413 = vmatpush1.bf16.xpose.msra.mxu0 0
      %414 = vmatprep.subr.bf16.mxu0 0
      %415 = vmatpush1.bf16.xpose.msra.mxu0 0
      %416 = vmatprep.subr.bf16.mxu0 0
      %417 = vmatpush1.bf16.xpose.msra.mxu0 0
      %418 = vmatprep.subr.bf16.mxu0 0
      %419 = vmatpush1.bf16.xpose.msra.mxu0 0
      %420 = vmatprep.subr.bf16.mxu0 0
      %421 = vmatpush1.bf16.xpose.msra.mxu0 0
      %422 = vmatprep.subr.bf16.mxu0 0
      %423 = vmatpush1.bf16.xpose.msra.mxu0 0
      %424 = vmatprep.subr.bf16.mxu0 0
      %425 = vmatpush1.bf16.xpose.msra.mxu0 0
      %426 = vmatprep.subr.bf16.mxu0 0
      %427 = vmatpush1.bf16.xpose.msra.mxu0 0
      %428 = vmatprep.subr.bf16.mxu0 0
      %429 = vmatpush1.bf16.xpose.msra.mxu0 0
      %430 = vmatprep.subr.bf16.mxu0 0
      %431 = vmatpush1.bf16.xpose.msra.mxu0 0
      %432 = vmatprep.subr.bf16.mxu0 0
      %433 = vmatpush1.bf16.xpose.msra.mxu0 0
      %434 = vmatprep.subr.bf16.mxu0 0
      %435 = vmatpush1.bf16.xpose.msra.mxu0 0
      %436 = vmatprep.mubr.bf16.mxu0 0
      %437 = vmatmul.mubr.bf16.gmra.mrb[0].mxu0 %v399
      %v438 = vpop.f32.mrb[0].mxu0
      %v439 = vadd.f32 %v168, %v438
      %v440 = vpop.f32.mrb[0].mxu0
      %v441 = vpop.f32.mrb[0].mxu0
      %v442 = vpop.f32.mrb[0].mxu0
      %443 = vdwg.mxu0
      %v444 = vsel %vm175, %v439, -inf
      %445 = vmax.xlane.f32.xlu0 %v444
      %v446 = vpop.xlane.xlu0 %445
      %v447 = vsub.f32 %v439, %v446
      %v448 = vmul.f32 %v447, 1.442695
      %v449 = vpow.pop %v448
      %v450 = vsel %vm175, %v449, 0.0
      %451 = vadd.xlane.f32.xlu0 %v450
      %v452 = vpop.xlane.xlu0 %451
      %v453 = vpack.c.bf16 %v449, %v449
      %454 = vrot.lane.b32.xlu0 %v171, 48
      %v455 = vpop.permute.xlu0 %454
      %v457 = vsel %vm175, %v453, 0
      %v460 = vsel %vm237, %v455, 0
      %462 = vmatprep.subr.bf16.mxu0 0
      %463 = vmatpush1.bf16.msra.mxu0 %v460
      %464 = vmatprep.subr.bf16.mxu0 0
      %465 = vmatpush1.bf16.msra.mxu0 0
      %466 = vmatprep.subr.bf16.mxu0 0
      %467 = vmatpush1.bf16.msra.mxu0 0
      %468 = vmatprep.subr.bf16.mxu0 0
      %469 = vmatpush1.bf16.msra.mxu0 0
      %470 = vmatprep.subr.bf16.mxu0 0
      %471 = vmatpush1.bf16.msra.mxu0 0
      %472 = vmatprep.subr.bf16.mxu0 0
      %473 = vmatpush1.bf16.msra.mxu0 0
      %474 = vmatprep.subr.bf16.mxu0 0
      %475 = vmatpush1.bf16.msra.mxu0 0
      %476 = vmatprep.subr.bf16.mxu0 0
      %477 = vmatpush1.bf16.msra.mxu0 0
      %478 = vmatprep.subr.bf16.mxu0 0
      %479 = vmatpush1.bf16.msra.mxu0 0
      %480 = vmatprep.subr.bf16.mxu0 0
      %481 = vmatpush1.bf16.msra.mxu0 0
      %482 = vmatprep.subr.bf16.mxu0 0
      %483 = vmatpush1.bf16.msra.mxu0 0
      %484 = vmatprep.subr.bf16.mxu0 0
      %485 = vmatpush1.bf16.msra.mxu0 0
      %486 = vmatprep.subr.bf16.mxu0 0
      %487 = vmatpush1.bf16.msra.mxu0 0
      %488 = vmatprep.subr.bf16.mxu0 0
      %489 = vmatpush1.bf16.msra.mxu0 0
      %490 = vmatprep.subr.bf16.mxu0 0
      %491 = vmatpush1.bf16.msra.mxu0 0
      %492 = vmatprep.subr.bf16.mxu0 0
      %493 = vmatpush1.bf16.msra.mxu0 0
      %494 = vmatprep.mubr.bf16.mxu0 0
      %495 = vmatmul.mubr.bf16.gmra.mrb[0].mxu0 %v457
      %v496 = vpop.f32.mrb[0].mxu0
      %v497 = vadd.f32 0.0, %v496
      %v498 = vpop.f32.mrb[0].mxu0
      %v499 = vpop.f32.mrb[0].mxu0
      %v500 = vpop.f32.mrb[0].mxu0
      %501 = vdwg.mxu0
      %v502 = vrcp.pop %v452
      %v503 = vmul.f32 %v497, %v502
      %504 = vrot.lane.b32.xlu0 %v170, 104
      %v505 = vpop.permute.xlu0 %504
      %506 = vrot.lane.b32.xlu0 %v171, 72
      %v507 = vpop.permute.xlu0 %506
      %v509 = vsel %vm175, %v505, 0
      %v512 = vsel %vm175, %v507, 0
      %514 = vmatprep.subr.bf16.mxu0 0
      %515 = vmatpush1.bf16.xpose.msra.mxu0 %v512
      %516 = vmatprep.subr.bf16.mxu0 0
      %517 = vmatpush1.bf16.xpose.msra.mxu0 0
      %518 = vmatprep.subr.bf16.mxu0 0
      %519 = vmatpush1.bf16.xpose.msra.mxu0 0
      %520 = vmatprep.subr.bf16.mxu0 0
      %521 = vmatpush1.bf16.xpose.msra.mxu0 0
      %522 = vmatprep.subr.bf16.mxu0 0
      %523 = vmatpush1.bf16.xpose.msra.mxu0 0
      %524 = vmatprep.subr.bf16.mxu0 0
      %525 = vmatpush1.bf16.xpose.msra.mxu0 0
      %526 = vmatprep.subr.bf16.mxu0 0
      %527 = vmatpush1.bf16.xpose.msra.mxu0 0
      %528 = vmatprep.subr.bf16.mxu0 0
      %529 = vmatpush1.bf16.xpose.msra.mxu0 0
      %530 = vmatprep.subr.bf16.mxu0 0
      %531 = vmatpush1.bf16.xpose.msra.mxu0 0
      %532 = vmatprep.subr.bf16.mxu0 0
      %533 = vmatpush1.bf16.xpose.msra.mxu0 0
      %534 = vmatprep.subr.bf16.mxu0 0
      %535 = vmatpush1.bf16.xpose.msra.mxu0 0
      %536 = vmatprep.subr.bf16.mxu0 0
      %537 = vmatpush1.bf16.xpose.msra.mxu0 0
      %538 = vmatprep.subr.bf16.mxu0 0
      %539 = vmatpush1.bf16.xpose.msra.mxu0 0
      %540 = vmatprep.subr.bf16.mxu0 0
      %541 = vmatpush1.bf16.xpose.msra.mxu0 0
      %542 = vmatprep.subr.bf16.mxu0 0
      %543 = vmatpush1.bf16.xpose.msra.mxu0 0
      %544 = vmatprep.subr.bf16.mxu0 0
      %545 = vmatpush1.bf16.xpose.msra.mxu0 0
      %546 = vmatprep.mubr.bf16.mxu0 0
      %547 = vmatmul.mubr.bf16.gmra.mrb[0].mxu0 %v509
      %v548 = vpop.f32.mrb[0].mxu0
      %v549 = vadd.f32 %v168, %v548
      %v550 = vpop.f32.mrb[0].mxu0
      %v551 = vpop.f32.mrb[0].mxu0
      %v552 = vpop.f32.mrb[0].mxu0
      %553 = vdwg.mxu0
      %v554 = vsel %vm175, %v549, -inf
      %555 = vmax.xlane.f32.xlu0 %v554
      %v556 = vpop.xlane.xlu0 %555
      %v557 = vsub.f32 %v549, %v556
      %v558 = vmul.f32 %v557, 1.442695
      %v559 = vpow.pop %v558
      %v560 = vsel %vm175, %v559, 0.0
      %561 = vadd.xlane.f32.xlu0 %v560
      %v562 = vpop.xlane.xlu0 %561
      %v563 = vpack.c.bf16 %v559, %v559
      %564 = vrot.lane.b32.xlu0 %v171, 40
      %v565 = vpop.permute.xlu0 %564
      %v567 = vsel %vm175, %v563, 0
      %v570 = vsel %vm237, %v565, 0
      %572 = vmatprep.subr.bf16.mxu0 0
      %573 = vmatpush1.bf16.msra.mxu0 %v570
      %574 = vmatprep.subr.bf16.mxu0 0
      %575 = vmatpush1.bf16.msra.mxu0 0
      %576 = vmatprep.subr.bf16.mxu0 0
      %577 = vmatpush1.bf16.msra.mxu0 0
      %578 = vmatprep.subr.bf16.mxu0 0
      %579 = vmatpush1.bf16.msra.mxu0 0
      %580 = vmatprep.subr.bf16.mxu0 0
      %581 = vmatpush1.bf16.msra.mxu0 0
      %582 = vmatprep.subr.bf16.mxu0 0
      %583 = vmatpush1.bf16.msra.mxu0 0
      %584 = vmatprep.subr.bf16.mxu0 0
      %585 = vmatpush1.bf16.msra.mxu0 0
      %586 = vmatprep.subr.bf16.mxu0 0
      %587 = vmatpush1.bf16.msra.mxu0 0
      %588 = vmatprep.subr.bf16.mxu0 0
      %589 = vmatpush1.bf16.msra.mxu0 0
      %590 = vmatprep.subr.bf16.mxu0 0
      %591 = vmatpush1.bf16.msra.mxu0 0
      %592 = vmatprep.subr.bf16.mxu0 0
      %593 = vmatpush1.bf16.msra.mxu0 0
      %594 = vmatprep.subr.bf16.mxu0 0
      %595 = vmatpush1.bf16.msra.mxu0 0
      %596 = vmatprep.subr.bf16.mxu0 0
      %597 = vmatpush1.bf16.msra.mxu0 0
      %598 = vmatprep.subr.bf16.mxu0 0
      %599 = vmatpush1.bf16.msra.mxu0 0
      %600 = vmatprep.subr.bf16.mxu0 0
      %601 = vmatpush1.bf16.msra.mxu0 0
      %602 = vmatprep.subr.bf16.mxu0 0
      %603 = vmatpush1.bf16.msra.mxu0 0
      %604 = vmatprep.mubr.bf16.mxu0 0
      %605 = vmatmul.mubr.bf16.gmra.mrb[0].mxu0 %v567
      %v606 = vpop.f32.mrb[0].mxu0
      %v607 = vadd.f32 0.0, %v606
      %v608 = vpop.f32.mrb[0].mxu0
      %v609 = vpop.f32.mrb[0].mxu0
      %v610 = vpop.f32.mrb[0].mxu0
      %611 = vdwg.mxu0
      %v612 = vrcp.pop %v562
      %v613 = vmul.f32 %v607, %v612
      %615 = vrot.lane.b32.xlu0 %v393, 8
      %v616 = vpop.permute.xlu0 %615
      %619 = vrot.lane.b32.xlu0 %v503, 16
      %v620 = vpop.permute.xlu0 %619
      %623 = vrot.lane.b32.xlu0 %v613, 24
      %v624 = vpop.permute.xlu0 %623
      %v626 = vsel %vm175, %v282, %v616
      %vm627 = vcmask 130048
      %v628 = vsel %vm627, %v626, %v620
      %vm629 = vcmask 195584
      %v630 = vsel %vm629, %v628, %v624
      %vm631 = vcmask 261120
      %632 = vst.msk [vmem:[%s152] sm:$0xff] %vm631, %v630
      %p633 = scmp.lt.s32.totalorder %s13, 1
      %s634 = scalar_select %p633, %s13, 1
      %s635 = smul.addr %s634, 8
      %s636 = scalar_lea.vmem %s2, %s635
      // Predicated region
      $region29: #{closed_call.26} parent=27 // pred_check
        %p637 = pneg %p83
      $region30: #{closed_call.26} parent=27 // pred_check_branch
        %639 = sbr.rel (%p637) target = $region32
      $region31: #{closed_call.26} parent=27 // pred_region
        _
      $region32: #{closed_call.26} parent=27 // pred_fallthru
        _
    $region28: #{closed_call.26} parent=5 // pred_fallthru
      _
    %p640 = scmp.le.s32.totalorder 2, %s8
    // Predicated region
    $region33: #{closed_call.26} parent=5 // pred_check
      %p641 = pneg %p640
    $region34: #{closed_call.26} parent=5 // pred_check_branch
      %643 = sbr.rel (%p641) target = $region36
    $region35: #{closed_call.26} parent=5 // pred_region
      %s644 = ssub.s32 %s8, 2
      // Predicated region
      $region37: #{closed_call.26} parent=35 // pred_check
        %p645 = pneg %p89
      $region38: #{closed_call.26} parent=35 // pred_check_branch
        %647 = sbr.rel (%p645) target = $region40
      $region39: #{closed_call.26} parent=35 // pred_region
        %p648 = scmp.lt.s32.totalorder %s14, 1
        %s649 = scalar_select %p648, %s14, 1
        %s650 = smul.addr %s649, 8
        %s651 = scalar_lea.vmem %s2, %s650
      $region40: #{closed_call.26} parent=35 // pred_fallthru
        _
    $region36: #{closed_call.26} parent=5 // pred_fallthru
      _
  $region6: #{closed_call.26} parent=0 // loop_footer
    %s12 = sadd.s32 1, %s8
  $region7: #{closed_call.26} parent=0 // loop_footer_branch
    %7 = sbr.rel target = $region3
  $region8: #{closed_call.26} parent=0 // loop_exit
    _

// kernel: closed_call.29
$region0: #{closed_call.29}
  #allocation0 [shape = 'u32[]', space=smem, size = 0x4, offset = 0x4, fixed_abs, tag = 'smem constant byte address 0x4 - core index']
  #allocation1 [shape = 'u32[144,128]{1,0:T(1,128)}', space=vmem, size = 0x12000, scoped, tag = 'internal scratch']
  %s0 = inlined_call_operand.vmem [shape: f32[20,32], index: 0, kind: input, shape index: {}]
  %s1 = inlined_call_operand.vmem [shape: bf16[32,64], index: 1, kind: input, shape index: {}]
  %s2 = inlined_call_operand.vmem [shape: f32[1,64], index: 2, kind: input, shape index: {}]
  %s3 = inlined_call_operand.vmem [shape: f32[20,64], index: 3, kind: output, shape index: {}]
  %s4 = sld [smem:[#allocation0]]
  $region22: #{closed_call.29} parent=0
    _
  %s6 = ssub.s32 1, %s4
  %s7 = scalar_select 0, %s6, %s4
  // Predicated region
  $region2: #{closed_call.29} parent=0 // pred_check
    _
  $region3: #{closed_call.29} parent=0 // pred_check_branch
    %9 = sbr.rel (0) target = $region5
  $region4: #{closed_call.29} parent=0 // pred_region
    _
  $region5: #{closed_call.29} parent=0 // pred_fallthru
    _
  // Predicated region
  $region6: #{closed_call.29} parent=0 // pred_check
    _
  $region7: #{closed_call.29} parent=0 // pred_check_branch
    %11 = sbr.rel (0) target = $region9
  $region8: #{closed_call.29} parent=0 // pred_region
    _
  $region9: #{closed_call.29} parent=0 // pred_fallthru
    _
  // Predicated region
  $region10: #{closed_call.29} parent=0 // pred_check
    _
  $region11: #{closed_call.29} parent=0 // pred_check_branch
    %13 = sbr.rel (0) target = $region13
  $region12: #{closed_call.29} parent=0 // pred_region
    _
  $region13: #{closed_call.29} parent=0 // pred_fallthru
    _
  %v15 = vld [vmem:[%s0] sm:$0xff]
  %v16 = vld [vmem:[%s0 + $0x8] sm:$0xff]
  %v17 = vld [vmem:[%s0 + $0x10] sm:$0xf]
  %v18 = vpack.c.bf16 %v16, %v15
  %v19 = vpack.c.bf16 %v17, %v17
  %v20 = vld [vmem:[%s1] sm:$0xf]
  %v21 = vld [vmem:[%s1 + $0x4] sm:$0xf]
  %v22 = vld [vmem:[%s1 + $0x8] sm:$0xf]
  %v23 = vld [vmem:[%s1 + $0xc] sm:$0xf]
  %v24 = vld [vmem:[%s2] sm:$0x1]
  %v26 = vlaneseq
  %v27 = vshrl.u32 %v26, 7
  %v28 = vsub.s32 0, %v27
  %v29 = vrot.slane %v24, %v28
  %v35 = vunpack.c.l.b16 %v20
  %v36 = vunpack.c.l.b16 %v21
  %v37 = vunpack.c.l.b16 %v22
  %v38 = vunpack.c.l.b16 %v23
  %v39 = vpack.c.b16 %v36, %v35
  %v40 = vpack.c.b16 %v38, %v37
  %vm43 = vcmask 261120
  %v45 = vsel %vm43, %v18, 0
  %v48 = vsel %vm43, %v19, 0
  %50 = vmatprep.subr.bf16.mxu0 0
  %51 = vmatpush1.bf16.msra.mxu0 %v39
  %52 = vmatprep.subr.bf16.mxu0 0
  %53 = vmatpush1.bf16.msra.mxu0 %v40
  %54 = vmatprep.subr.bf16.mxu0 0
  %55 = vmatpush1.bf16.msra.mxu0 0
  %56 = vmatprep.subr.bf16.mxu0 0
  %57 = vmatpush1.bf16.msra.mxu0 0
  %58 = vmatprep.subr.bf16.mxu0 0
  %59 = vmatpush1.bf16.msra.mxu0 0
  %60 = vmatprep.subr.bf16.mxu0 0
  %61 = vmatpush1.bf16.msra.mxu0 0
  %62 = vmatprep.subr.bf16.mxu0 0
  %63 = vmatpush1.bf16.msra.mxu0 0
  %64 = vmatprep.subr.bf16.mxu0 0
  %65 = vmatpush1.bf16.msra.mxu0 0
  %66 = vmatprep.subr.bf16.mxu0 0
  %67 = vmatpush1.bf16.msra.mxu0 0
  %68 = vmatprep.subr.bf16.mxu0 0
  %69 = vmatpush1.bf16.msra.mxu0 0
  %70 = vmatprep.subr.bf16.mxu0 0
  %71 = vmatpush1.bf16.msra.mxu0 0
  %72 = vmatprep.subr.bf16.mxu0 0
  %73 = vmatpush1.bf16.msra.mxu0 0
  %74 = vmatprep.subr.bf16.mxu0 0
  %75 = vmatpush1.bf16.msra.mxu0 0
  %76 = vmatprep.subr.bf16.mxu0 0
  %77 = vmatpush1.bf16.msra.mxu0 0
  %78 = vmatprep.subr.bf16.mxu0 0
  %79 = vmatpush1.bf16.msra.mxu0 0
  %80 = vmatprep.subr.bf16.mxu0 0
  %81 = vmatpush1.bf16.msra.mxu0 0
  %82 = vmatprep.mubr.bf16.mxu0 0
  %83 = vmatmul.mubr.bf16.gmra.mrb[0].mxu0 %v45
  %v84 = vpop.f32.mrb[0].mxu0
  %v85 = vadd.f32 %v29, %v84
  %v86 = vpop.f32.mrb[0].mxu0
  %v87 = vpop.f32.mrb[0].mxu0
  %v88 = vadd.f32 %v29, %v87
  %v89 = vpop.f32.mrb[0].mxu0
  %90 = vmatprep.mubr.bf16.mxu0 0
  %91 = vmatmul.mubr.bf16.gmra.mrb[0].mxu0 %v48
  %v92 = vpop.f32.mrb[0].mxu0
  %v93 = vadd.f32 %v29, %v92
  %v94 = vpop.f32.mrb[0].mxu0
  %v95 = vpop.f32.mrb[0].mxu0
  %v96 = vpop.f32.mrb[0].mxu0
  %97 = vdwg.mxu0
  %vm98 = vcmask 523264
  %99 = vst.msk [vmem:[%s3] sm:$0xff] %vm98, %v85
  %100 = vst.msk [vmem:[%s3 + $0x8] sm:$0xff] %vm98, %v88
  %vm101 = vcmask 519168
  %102 = vst.msk [vmem:[%s3 + $0x10] sm:$0xf] %vm101, %v93
  // Predicated region
  $region14: #{closed_call.29} parent=0 // pred_check
    _
  $region15: #{closed_call.29} parent=0 // pred_check_branch
    %104 = sbr.rel (0) target = $region17
  $region16: #{closed_call.29} parent=0 // pred_region
    _
  $region17: #{closed_call.29} parent=0 // pred_fallthru
    _
  // Predicated region
  $region18: #{closed_call.29} parent=0 // pred_check
    _
  $region19: #{closed_call.29} parent=0 // pred_check_branch
    %106 = sbr.rel (0) target = $region21
  $region20: #{closed_call.29} parent=0 // pred_region
    _
  $region21: #{closed_call.29} parent=0 // pred_fallthru
    _

// kernel: transformer_decoder_forward.1
$region0: #{transformer_decoder_forward.1}
  #allocation0 [shape = 'u32[]', space=smem, size = 0x4, offset = 0x4, fixed_abs, tag = 'smem constant byte address 0x4 - core index']
  #allocation1 [shape = 'u32[144,128]{1,0:T(1,128)}', space=vmem, size = 0x12000, scoped, tag = 'internal scratch']
  %s0 = inlined_call_operand.vmem [shape: f32[16,32], index: 0, kind: input, shape index: {}]
  %s1 = inlined_call_operand.vmem [shape: f32[1,32], index: 1, kind: input, shape index: {}]
  %s2 = inlined_call_operand.vmem [shape: f32[1,32], index: 2, kind: input, shape index: {}]
  %s3 = inlined_call_operand.vmem [shape: bf16[32,64], index: 3, kind: input, shape index: {}]
  %s4 = inlined_call_operand.hbm [shape: f32[16,64], index: 4, kind: output, shape index: {}]
  %s5 = sld [smem:[#allocation0]]
  $region26: #{transformer_decoder_forward.1} parent=0
    _
  %s7 = ssub.s32 1, %s5
  %s8 = scalar_select 0, %s7, %s5
  $region1: #{transformer_decoder_forward.1} parent=0
    #allocation2 [shape = 'u8[8192]{0}', space=vmem, size = 0x2000, scoped, tag = 'output window, operand 0, single buffered']
    #allocation3 [shape = 's32[1]{0}', space=sflag, size = 0x4, scoped, tag = 'scoped memory for transformer_decoder_forward.1']
    %9 = vsyncpa [#allocation3], 0
    // Predicated region
    $region2: #{transformer_decoder_forward.1} parent=1 // pred_check
      _
    $region3: #{transformer_decoder_forward.1} parent=1 // pred_check_branch
      %11 = sbr.rel (0) target = $region5
    $region4: #{transformer_decoder_forward.1} parent=1 // pred_region
      _
    $region5: #{transformer_decoder_forward.1} parent=1 // pred_fallthru
      _
    // Predicated region
    $region6: #{transformer_decoder_forward.1} parent=1 // pred_check
      _
    $region7: #{transformer_decoder_forward.1} parent=1 // pred_check_branch
      %13 = sbr.rel (0) target = $region9
    $region8: #{transformer_decoder_forward.1} parent=1 // pred_region
      _
    $region9: #{transformer_decoder_forward.1} parent=1 // pred_fallthru
      _
    // Predicated region
    $region10: #{transformer_decoder_forward.1} parent=1 // pred_check
      _
    $region11: #{transformer_decoder_forward.1} parent=1 // pred_check_branch
      %15 = sbr.rel (0) target = $region13
    $region12: #{transformer_decoder_forward.1} parent=1 // pred_region
      _
    $region13: #{transformer_decoder_forward.1} parent=1 // pred_fallthru
      _
    // Predicated region
    $region14: #{transformer_decoder_forward.1} parent=1 // pred_check
      _
    $region15: #{transformer_decoder_forward.1} parent=1 // pred_check_branch
      %17 = sbr.rel (0) target = $region17
    $region16: #{transformer_decoder_forward.1} parent=1 // pred_region
      _
    $region17: #{transformer_decoder_forward.1} parent=1 // pred_fallthru
      _
    %v19 = vld [vmem:[%s0] sm:$0xff]
    %v20 = vld [vmem:[%s0 + $0x8] sm:$0xff]
    %vm21 = vcmask 261120
    %v22 = vsel %vm21, %v19, 0.0
    %23 = vadd.xlane.f32.xlu0 %v22
    %v24 = vpop.xlane.xlu0 %23
    %v25 = vsel %vm21, %v20, 0.0
    %26 = vadd.xlane.f32.xlu0 %v25
    %v27 = vpop.xlane.xlu0 %26
    %v28 = vrcp.pop 32.0
    %v29 = vmul.f32 %v24, %v28
    %v30 = vmul.f32 %v27, %v28
    %v31 = vsub.f32 %v19, %v29
    %v32 = vsub.f32 %v20, %v30
    %v33 = vmul.f32 %v31, %v31
    %v34 = vmul.f32 %v32, %v32
    %v35 = vsel %vm21, %v33, 0.0
    %36 = vadd.xlane.f32.xlu0 %v35
    %v37 = vpop.xlane.xlu0 %36
    %v38 = vsel %vm21, %v34, 0.0
    %39 = vadd.xlane.f32.xlu0 %v38
    %v40 = vpop.xlane.xlu0 %39
    %v41 = vmul.f32 %v37, %v28
    %v42 = vmul.f32 %v40, %v28
    %v43 = vadd.f32 %v41, 1e-05
    %v44 = vadd.f32 %v42, 1e-05
    %v45 = vrsqrt.pop %v43
    %v46 = vrsqrt.pop %v44
    %v47 = vmul.f32 %v31, %v45
    %v48 = vmul.f32 %v32, %v46
    %v49 = vld [vmem:[%s1] sm:$0x1]
    %v51 = vlaneseq
    %v52 = vshrl.u32 %v51, 7
    %v53 = vsub.s32 0, %v52
    %v54 = vrot.slane %v49, %v53
    %v56 = vmul.f32 %v47, %v54
    %v57 = vmul.f32 %v48, %v54
    %v58 = vld [vmem:[%s2] sm:$0x1]
    %v60 = vlaneseq
    %v61 = vshrl.u32 %v60, 7
    %v62 = vsub.s32 0, %v61
    %v63 = vrot.slane %v58, %v62
    %v65 = vadd.f32 %v56, %v63
    %v66 = vadd.f32 %v57, %v63
    %v67 = vpack.c.bf16 %v66, %v65
    %v68 = vld [vmem:[%s3] sm:$0xf]
    %v69 = vld [vmem:[%s3 + $0x4] sm:$0xf]
    %v70 = vld [vmem:[%s3 + $0x8] sm:$0xf]
    %v71 = vld [vmem:[%s3 + $0xc] sm:$0xf]
    %v76 = vunpack.c.l.b16 %v68
    %v77 = vunpack.c.l.b16 %v69
    %v78 = vunpack.c.l.b16 %v70
    %v79 = vunpack.c.l.b16 %v71
    %v80 = vpack.c.b16 %v77, %v76
    %v81 = vpack.c.b16 %v79, %v78
    %v85 = vsel %vm21, %v67, 0
    %87 = vmatprep.subr.bf16.mxu0 0
    %88 = vmatpush1.bf16.msra.mxu0 %v80
    %89 = vmatprep.subr.bf16.mxu0 0
    %90 = vmatpush1.bf16.msra.mxu0 %v81
    %91 = vmatprep.subr.bf16.mxu0 0
    %92 = vmatpush1.bf16.msra.mxu0 0
    %93 = vmatprep.subr.bf16.mxu0 0
    %94 = vmatpush1.bf16.msra.mxu0 0
    %95 = vmatprep.subr.bf16.mxu0 0
    %96 = vmatpush1.bf16.msra.mxu0 0
    %97 = vmatprep.subr.bf16.mxu0 0
    %98 = vmatpush1.bf16.msra.mxu0 0
    %99 = vmatprep.subr.bf16.mxu0 0
    %100 = vmatpush1.bf16.msra.mxu0 0
    %101 = vmatprep.subr.bf16.mxu0 0
    %102 = vmatpush1.bf16.msra.mxu0 0
    %103 = vmatprep.subr.bf16.mxu0 0
    %104 = vmatpush1.bf16.msra.mxu0 0
    %105 = vmatprep.subr.bf16.mxu0 0
    %106 = vmatpush1.bf16.msra.mxu0 0
    %107 = vmatprep.subr.bf16.mxu0 0
    %108 = vmatpush1.bf16.msra.mxu0 0
    %109 = vmatprep.subr.bf16.mxu0 0
    %110 = vmatpush1.bf16.msra.mxu0 0
    %111 = vmatprep.subr.bf16.mxu0 0
    %112 = vmatpush1.bf16.msra.mxu0 0
    %113 = vmatprep.subr.bf16.mxu0 0
    %114 = vmatpush1.bf16.msra.mxu0 0
    %115 = vmatprep.subr.bf16.mxu0 0
    %116 = vmatpush1.bf16.msra.mxu0 0
    %117 = vmatprep.subr.bf16.mxu0 0
    %118 = vmatpush1.bf16.msra.mxu0 0
    %119 = vmatprep.mubr.bf16.mxu0 0
    %120 = vmatmul.mubr.bf16.gmra.mrb[0].mxu0 %v85
    %v121 = vpop.f32.mrb[0].mxu0
    %v122 = vadd.f32 0.0, %v121
    %v123 = vpop.f32.mrb[0].mxu0
    %v124 = vpop.f32.mrb[0].mxu0
    %v125 = vadd.f32 0.0, %v124
    %v126 = vpop.f32.mrb[0].mxu0
    %127 = vdwg.mxu0
    %vm128 = vcmask 523264
    %129 = vst.msk [vmem:[#allocation2] sm:$0xff] %vm128, %v122
    %130 = vst.msk [vmem:[#allocation2 + $0x8] sm:$0xff] %vm128, %v125
    // Predicated region
    $region18: #{transformer_decoder_forward.1} parent=1 // pred_check
      _
    $region19: #{transformer_decoder_forward.1} parent=1 // pred_check_branch
      %132 = sbr.rel (0) target = $region21
    $region20: #{transformer_decoder_forward.1} parent=1 // pred_region
      %s134 = ssub.s32 256, 256
      %135 = vsyncadd [#allocation3], %s134
      %s136 = sshll.u32 [#allocation2], 4
      %s137 = int_to_ptr.vmem [resolvable:$true] %s136
      %142 = dma.vmem_to_hbm [thread:$0]  %s137, 256, %s4, [#allocation3], 128, 128, 8
    $region21: #{transformer_decoder_forward.1} parent=1 // pred_fallthru
      _
    // Predicated region
    $region22: #{transformer_decoder_forward.1} parent=1 // pred_check
      _
    $region23: #{transformer_decoder_forward.1} parent=1 // pred_check_branch
      %144 = sbr.rel (0) target = $region25
    $region24: #{transformer_decoder_forward.1} parent=1 // pred_region
      %145 = dma.done [#allocation3], 256
    $region25: #{transformer_decoder_forward.1} parent=1 // pred_fallthru
      _
    %146 = vsyncpa [#allocation3], 1

// kernel: closed_call.30
$region0: #{closed_call.30}
  #allocation0 [shape = 'u32[]', space=smem, size = 0x4, offset = 0x4, fixed_abs, tag = 'smem constant byte address 0x4 - core index']
  #allocation1 [shape = 'u32[144,128]{1,0:T(1,128)}', space=vmem, size = 0x12000, scoped, tag = 'internal scratch']
  %s0 = inlined_call_operand.vmem [shape: f32[2,8,32], index: 0, kind: input, shape index: {}]
  %s1 = inlined_call_operand.vmem [shape: f32[2,10,64], index: 1, kind: input, shape index: {}]
  %s2 = inlined_call_operand.vmem [shape: f32[2,1,10], index: 2, kind: input, shape index: {}]
  %s3 = inlined_call_operand.vmem [shape: f32[2,8,32], index: 3, kind: output, shape index: {}]
  %s4 = sld [smem:[#allocation0]]
  $region45: #{closed_call.30} parent=0
    _
  %s6 = ssub.s32 1, %s4
  %s7 = scalar_select 0, %s6, %s4
  loop: start=0, step=1, limit=4
  $region2: #{closed_call.30} parent=0 // loop_pre_header
    _
  $region3: #{closed_call.30} parent=0 // loop_header
    %s9 = sphi 0, %s13
    %p10 = scmp.ge.s32.totalorder %s9, 4
    %s19 = sphi 0, %s21
    %s22 = sphi 0, %s19
    %s23 = sphi 0, %s22
    %s39 = sphi 0, %s23
    %s45 = sphi 0, %s47
    %s48 = sphi 0, %s45
    %s49 = sphi 0, %s48
    %s65 = sphi 0, %s49
    %s71 = sphi 0, %s73
    %s74 = sphi 0, %s71
    %s75 = sphi 0, %s74
    %s91 = sphi 0, %s75
    %s97 = sphi 0, %s99
    %s100 = sphi 0, %s97
    %s101 = sphi 0, %s100
    %s117 = sphi 0, %s101
  $region4: #{closed_call.30} parent=0 // loop_header_branch
    %12 = sbr.rel (%p10) target = $region8
  $region5: #{closed_call.30} parent=0 // loop_body
    %s14 = ssub.s32 %s9, 1
    %s15 = ssub.s32 %s9, 2
    %s16 = sadd.s32 %s9, 1
    %s17 = ssub.s32 %s9, %s16
    %p18 = scmp.eq.s32.totalorder %s17, 0
    %s20 = sadd.s32 %s19, 1
    %s21 = scalar_select %p18, %s19, %s20
    %p24 = pneg %p18
    %p25 = scmp.eq.s32.totalorder %s9, 1
    %p26 = por %p24, %p25
    %p27 = scmp.ne.s32.totalorder %s19, %s22
    %p28 = scmp.eq.s32.totalorder %s9, 0
    %p29 = por %p27, %p28
    %p30 = scmp.ne.s32.totalorder %s19, %s22
    %p31 = scmp.eq.s32.totalorder %s14, 1
    %p32 = por %p30, %p31
    %p33 = scmp.ne.s32.totalorder %s22, %s23
    %p34 = scmp.eq.s32.totalorder %s14, 0
    %p35 = por %p33, %p34
    %p36 = scmp.ne.s32.totalorder %s22, %s23
    %p37 = scmp.eq.s32.totalorder %s15, 1
    %p38 = por %p36, %p37
    %p40 = scmp.ne.s32.totalorder %s23, %s39
    %p41 = scmp.eq.s32.totalorder %s15, 0
    %p42 = por %p40, %p41
    %s43 = ssub.s32 %s9, %s16
    %p44 = scmp.eq.s32.totalorder %s43, 0
    %s46 = sadd.s32 %s45, 1
    %s47 = scalar_select %p44, %s45, %s46
    %p50 = pneg %p44
    %p51 = scmp.eq.s32.totalorder %s9, 1
    %p52 = por %p50, %p51
    %p53 = scmp.ne.s32.totalorder %s45, %s48
    %p54 = scmp.eq.s32.totalorder %s9, 0
    %p55 = por %p53, %p54
    %p56 = scmp.ne.s32.totalorder %s45, %s48
    %p57 = scmp.eq.s32.totalorder %s14, 1
    %p58 = por %p56, %p57
    %p59 = scmp.ne.s32.totalorder %s48, %s49
    %p60 = scmp.eq.s32.totalorder %s14, 0
    %p61 = por %p59, %p60
    %p62 = scmp.ne.s32.totalorder %s48, %s49
    %p63 = scmp.eq.s32.totalorder %s15, 1
    %p64 = por %p62, %p63
    %p66 = scmp.ne.s32.totalorder %s49, %s65
    %p67 = scmp.eq.s32.totalorder %s15, 0
    %p68 = por %p66, %p67
    %s69 = ssub.s32 %s9, %s16
    %p70 = scmp.eq.s32.totalorder %s69, 0
    %s72 = sadd.s32 %s71, 1
    %s73 = scalar_select %p70, %s71, %s72
    %p76 = pneg %p70
    %p77 = scmp.eq.s32.totalorder %s9, 1
    %p78 = por %p76, %p77
    %p79 = scmp.ne.s32.totalorder %s71, %s74
    %p80 = scmp.eq.s32.totalorder %s9, 0
    %p81 = por %p79, %p80
    %p82 = scmp.ne.s32.totalorder %s71, %s74
    %p83 = scmp.eq.s32.totalorder %s14, 1
    %p84 = por %p82, %p83
    %p85 = scmp.ne.s32.totalorder %s74, %s75
    %p86 = scmp.eq.s32.totalorder %s14, 0
    %p87 = por %p85, %p86
    %p88 = scmp.ne.s32.totalorder %s74, %s75
    %p89 = scmp.eq.s32.totalorder %s15, 1
    %p90 = por %p88, %p89
    %p92 = scmp.ne.s32.totalorder %s75, %s91
    %p93 = scmp.eq.s32.totalorder %s15, 0
    %p94 = por %p92, %p93
    %s95 = ssub.s32 %s9, %s16
    %p96 = scmp.eq.s32.totalorder %s95, 0
    %s98 = sadd.s32 %s97, 1
    %s99 = scalar_select %p96, %s97, %s98
    %p102 = pneg %p96
    %p103 = scmp.eq.s32.totalorder %s9, 1
    %p104 = por %p102, %p103
    %p105 = scmp.ne.s32.totalorder %s97, %s100
    %p106 = scmp.eq.s32.totalorder %s9, 0
    %p107 = por %p105, %p106
    %p108 = scmp.ne.s32.totalorder %s97, %s100
    %p109 = scmp.eq.s32.totalorder %s14, 1
    %p110 = por %p108, %p109
    %p111 = scmp.ne.s32.totalorder %s100, %s101
    %p112 = scmp.eq.s32.totalorder %s14, 0
    %p113 = por %p111, %p112
    %p114 = scmp.ne.s32.totalorder %s100, %s101
    %p115 = scmp.eq.s32.totalorder %s15, 1
    %p116 = por %p114, %p115
    %p118 = scmp.ne.s32.totalorder %s101, %s117
    %p119 = scmp.eq.s32.totalorder %s15, 0
    %p120 = por %p118, %p119
    %p121 = scmp.le.s32.totalorder 1, %s9
    %p122 = scmp.lt.s32.totalorder %s9, 3
    %p123 = pnand %p121, %p122
    %p124 = pneg %p123
    // Predicated region
    $region9: #{closed_call.30} parent=5 // pred_check
      _
    $region10: #{closed_call.30} parent=5 // pred_check_branch
      %126 = sbr.rel (%p123) target = $region12
    $region11: #{closed_call.30} parent=5 // pred_region
      %s127 = ssub.s32 %s9, 1
    $region12: #{closed_call.30} parent=5 // pred_fallthru
      _
    %p128 = scmp.lt.s32.totalorder %s9, 2
    // Predicated region
    $region13: #{closed_call.30} parent=5 // pred_check
      %p129 = pneg %p128
    $region14: #{closed_call.30} parent=5 // pred_check_branch
      %131 = sbr.rel (%p129) target = $region16
    $region15: #{closed_call.30} parent=5 // pred_region
      // Predicated region
      $region17: #{closed_call.30} parent=15 // pred_check
        %p132 = pneg %p29
      $region18: #{closed_call.30} parent=15 // pred_check_branch
        %134 = sbr.rel (%p132) target = $region20
      $region19: #{closed_call.30} parent=15 // pred_region
        %p135 = scmp.lt.s32.totalorder %s9, 1
        %s136 = scalar_select %p135, %s9, 1
        %s137 = smul.addr %s136, 8
        %s138 = scalar_lea.vmem %s0, %s137
      $region20: #{closed_call.30} parent=15 // pred_fallthru
        _
      // Predicated region
      $region21: #{closed_call.30} parent=15 // pred_check
        %p139 = pneg %p55
      $region22: #{closed_call.30} parent=15 // pred_check_branch
        %141 = sbr.rel (%p139) target = $region24
      $region23: #{closed_call.30} parent=15 // pred_region
        %p142 = scmp.lt.s32.totalorder %s9, 1
        %s143 = scalar_select %p142, %s9, 1
        %s144 = smul.addr %s143, 2
        %s145 = smul.addr %s144, 8
        %s146 = scalar_lea.vmem %s1, %s145
      $region24: #{closed_call.30} parent=15 // pred_fallthru
        _
      // Predicated region
      $region25: #{closed_call.30} parent=15 // pred_check
        %p147 = pneg %p81
      $region26: #{closed_call.30} parent=15 // pred_check_branch
        %149 = sbr.rel (%p147) target = $region28
      $region27: #{closed_call.30} parent=15 // pred_region
        %p150 = scmp.lt.s32.totalorder %s9, 1
        %s151 = scalar_select %p150, %s9, 1
        %s152 = scalar_lea.vmem %s2, %s151
      $region28: #{closed_call.30} parent=15 // pred_fallthru
        _
    $region16: #{closed_call.30} parent=5 // pred_fallthru
      _
    %p153 = scmp.le.s32.totalorder 1, %s9
    %p154 = scmp.lt.s32.totalorder %s9, 3
    %p155 = pnand %p153, %p154
    %p156 = pneg %p155
    // Predicated region
    $region29: #{closed_call.30} parent=5 // pred_check
      _
    $region30: #{closed_call.30} parent=5 // pred_check_branch
      %158 = sbr.rel (%p155) target = $region32
    $region31: #{closed_call.30} parent=5 // pred_region
      %s159 = ssub.s32 %s9, 1
      %p160 = scmp.lt.s32.totalorder %s14, 1
      %s161 = scalar_select %p160, %s14, 1
      %s162 = smul.addr %s161, 8
      %s163 = scalar_lea.vmem %s0, %s162
      %p164 = pneg %p35
      %p165 = pneg %p32
      %p166 = scmp.lt.s32.totalorder %s14, 1
      %s167 = scalar_select %p166, %s14, 1
      %s168 = smul.addr %s167, 2
      %s169 = smul.addr %s168, 8
      %s170 = scalar_lea.vmem %s1, %s169
      %p171 = pneg %p61
      %p172 = pneg %p58
      %p173 = scmp.lt.s32.totalorder %s14, 1
      %s174 = scalar_select %p173, %s14, 1
      %s175 = scalar_lea.vmem %s2, %s174
      %p176 = pneg %p87
      %p177 = pneg %p84
      %p178 = pneg %p113
      %p179 = pneg %p110
      %p180 = scmp.lt.s32.totalorder %s14, 1
      %s181 = scalar_select %p180, %s14, 1
      %s182 = smul.addr %s181, 8
      %s183 = scalar_lea.vmem %s3, %s182
      %p184 = scmp.lt.s32.totalorder %s14, 1
      %s185 = scalar_select %p184, %s14, 1
      %s186 = smul.addr %s185, 8
      %s187 = scalar_lea.vmem %s0, %s186
      %p188 = scmp.lt.s32.totalorder %s14, 1
      %s189 = scalar_select %p188, %s14, 1
      %s190 = smul.addr %s189, 2
      %s191 = smul.addr %s190, 8
      %s192 = scalar_lea.vmem %s1, %s191
      %p193 = scmp.lt.s32.totalorder %s14, 1
      %s194 = scalar_select %p193, %s14, 1
      %s195 = scalar_lea.vmem %s2, %s194
      %p196 = scmp.lt.s32.totalorder %s14, 1
      %s197 = scalar_select %p196, %s14, 1
      %s198 = smul.addr %s197, 8
      %s199 = scalar_lea.vmem %s3, %s198
      %v201 = vld [vmem:[%s187] sm:$0xff]
      %v202 = vld [vmem:[%s192] sm:$0xff]
      %v203 = vld [vmem:[%s192 + $0x8] sm:$0x3]
      %v204 = vld [vmem:[%s195] sm:$0x1]
      %v205 = vmul.f32 %v201, 0.35355338
      %v206 = vpack.c.bf16 %v205, %v205
      %v207 = vpack.c.bf16 %v203, %v202
      %v209 = vlaneseq
      %v210 = vshrl.u32 %v209, 7
      %v211 = vsub.s32 0, %v210
      %v212 = vrot.slane %v204, %v211
      %vm214 = vcmask 64512
      %v216 = vsel %vm214, %v206, 0
      %v219 = vsel %vm214, %v207, 0
      %221 = vmatprep.subr.bf16.mxu0 0
      %222 = vmatpush1.bf16.xpose.msra.mxu0 %v219
      %223 = vmatprep.subr.bf16.mxu0 0
      %224 = vmatpush1.bf16.xpose.msra.mxu0 0
      %225 = vmatprep.subr.bf16.mxu0 0
      %226 = vmatpush1.bf16.xpose.msra.mxu0 0
      %227 = vmatprep.subr.bf16.mxu0 0
      %228 = vmatpush1.bf16.xpose.msra.mxu0 0
      %229 = vmatprep.subr.bf16.mxu0 0
      %230 = vmatpush1.bf16.xpose.msra.mxu0 0
      %231 = vmatprep.subr.bf16.mxu0 0
      %232 = vmatpush1.bf16.xpose.msra.mxu0 0
      %233 = vmatprep.subr.bf16.mxu0 0
      %234 = vmatpush1.bf16.xpose.msra.mxu0 0
      %235 = vmatprep.subr.bf16.mxu0 0
      %236 = vmatpush1.bf16.xpose.msra.mxu0 0
      %237 = vmatprep.subr.bf16.mxu0 0
      %238 = vmatpush1.bf16.xpose.msra.mxu0 0
      %239 = vmatprep.subr.bf16.mxu0 0
      %240 = vmatpush1.bf16.xpose.msra.mxu0 0
      %241 = vmatprep.subr.bf16.mxu0 0
      %242 = vmatpush1.bf16.xpose.msra.mxu0 0
      %243 = vmatprep.subr.bf16.mxu0 0
      %244 = vmatpush1.bf16.xpose.msra.mxu0 0
      %245 = vmatprep.subr.bf16.mxu0 0
      %246 = vmatpush1.bf16.xpose.msra.mxu0 0
      %247 = vmatprep.subr.bf16.mxu0 0
      %248 = vmatpush1.bf16.xpose.msra.mxu0 0
      %249 = vmatprep.subr.bf16.mxu0 0
      %250 = vmatpush1.bf16.xpose.msra.mxu0 0
      %251 = vmatprep.subr.bf16.mxu0 0
      %252 = vmatpush1.bf16.xpose.msra.mxu0 0
      %253 = vmatprep.mubr.bf16.mxu0 0
      %254 = vmatmul.mubr.bf16.gmra.mrb[0].mxu0 %v216
      %v255 = vpop.f32.mrb[0].mxu0
      %v256 = vadd.f32 %v212, %v255
      %v257 = vpop.f32.mrb[0].mxu0
      %v258 = vpop.f32.mrb[0].mxu0
      %v259 = vpop.f32.mrb[0].mxu0
      %260 = vdwg.mxu0
      %vm261 = vcmask 80896
      %v262 = vsel %vm261, %v256, -inf
      %263 = vmax.xlane.f32.xlu0 %v262
      %v264 = vpop.xlane.xlu0 %263
      %v265 = vsub.f32 %v256, %v264
      %v266 = vmul.f32 %v265, 1.442695
      %v267 = vpow.pop %v266
      %v268 = vsel %vm261, %v267, 0.0
      %269 = vadd.xlane.f32.xlu0 %v268
      %v270 = vpop.xlane.xlu0 %269
      %v271 = vpack.c.bf16 %v267, %v267
      %273 = vrot.lane.b32.xlu0 %v207, 96
      %v274 = vpop.permute.xlu0 %273
      %v276 = vsel %vm261, %v271, 0
      %vm278 = vcmask 1044480
      %v280 = vsel %vm278, %v274, 0
      %282 = vmatprep.subr.bf16.mxu0 0
      %283 = vmatpush1.bf16.msra.mxu0 %v280
      %284 = vmatprep.subr.bf16.mxu0 0
      %285 = vmatpush1.bf16.msra.mxu0 0
      %286 = vmatprep.subr.bf16.mxu0 0
      %287 = vmatpush1.bf16.msra.mxu0 0
      %288 = vmatprep.subr.bf16.mxu0 0
      %289 = vmatpush1.bf16.msra.mxu0 0
      %290 = vmatprep.subr.bf16.mxu0 0
      %291 = vmatpush1.bf16.msra.mxu0 0
      %292 = vmatprep.subr.bf16.mxu0 0
      %293 = vmatpush1.bf16.msra.mxu0 0
      %294 = vmatprep.subr.bf16.mxu0 0
      %295 = vmatpush1.bf16.msra.mxu0 0
      %296 = vmatprep.subr.bf16.mxu0 0
      %297 = vmatpush1.bf16.msra.mxu0 0
      %298 = vmatprep.subr.bf16.mxu0 0
      %299 = vmatpush1.bf16.msra.mxu0 0
      %300 = vmatprep.subr.bf16.mxu0 0
      %301 = vmatpush1.bf16.msra.mxu0 0
      %302 = vmatprep.subr.bf16.mxu0 0
      %303 = vmatpush1.bf16.msra.mxu0 0
      %304 = vmatprep.subr.bf16.mxu0 0
      %305 = vmatpush1.bf16.msra.mxu0 0
      %306 = vmatprep.subr.bf16.mxu0 0
      %307 = vmatpush1.bf16.msra.mxu0 0
      %308 = vmatprep.subr.bf16.mxu0 0
      %309 = vmatpush1.bf16.msra.mxu0 0
      %310 = vmatprep.subr.bf16.mxu0 0
      %311 = vmatpush1.bf16.msra.mxu0 0
      %312 = vmatprep.subr.bf16.mxu0 0
      %313 = vmatpush1.bf16.msra.mxu0 0
      %314 = vmatprep.mubr.bf16.mxu0 0
      %315 = vmatmul.mubr.bf16.gmra.mrb[0].mxu0 %v276
      %v316 = vpop.f32.mrb[0].mxu0
      %v317 = vadd.f32 0.0, %v316
      %v318 = vpop.f32.mrb[0].mxu0
      %v319 = vpop.f32.mrb[0].mxu0
      %v320 = vpop.f32.mrb[0].mxu0
      %321 = vdwg.mxu0
      %v322 = vrcp.pop %v270
      %v323 = vmul.f32 %v317, %v322
      %325 = vrot.lane.b32.xlu0 %v206, 120
      %v326 = vpop.permute.xlu0 %325
      %327 = vrot.lane.b32.xlu0 %v207, 120
      %v328 = vpop.permute.xlu0 %327
      %v330 = vsel %vm214, %v326, 0
      %v333 = vsel %vm214, %v328, 0
      %335 = vmatprep.subr.bf16.mxu0 0
      %336 = vmatpush1.bf16.xpose.msra.mxu0 %v333
      %337 = vmatprep.subr.bf16.mxu0 0
      %338 = vmatpush1.bf16.xpose.msra.mxu0 0
      %339 = vmatprep.subr.bf16.mxu0 0
      %340 = vmatpush1.bf16.xpose.msra.mxu0 0
      %341 = vmatprep.subr.bf16.mxu0 0
      %342 = vmatpush1.bf16.xpose.msra.mxu0 0
      %343 = vmatprep.subr.bf16.mxu0 0
      %344 = vmatpush1.bf16.xpose.msra.mxu0 0
      %345 = vmatprep.subr.bf16.mxu0 0
      %346 = vmatpush1.bf16.xpose.msra.mxu0 0
      %347 = vmatprep.subr.bf16.mxu0 0
      %348 = vmatpush1.bf16.xpose.msra.mxu0 0
      %349 = vmatprep.subr.bf16.mxu0 0
      %350 = vmatpush1.bf16.xpose.msra.mxu0 0
      %351 = vmatprep.subr.bf16.mxu0 0
      %352 = vmatpush1.bf16.xpose.msra.mxu0 0
      %353 = vmatprep.subr.bf16.mxu0 0
      %354 = vmatpush1.bf16.xpose.msra.mxu0 0
      %355 = vmatprep.subr.bf16.mxu0 0
      %356 = vmatpush1.bf16.xpose.msra.mxu0 0
      %357 = vmatprep.subr.bf16.mxu0 0
      %358 = vmatpush1.bf16.xpose.msra.mxu0 0
      %359 = vmatprep.subr.bf16.mxu0 0
      %360 = vmatpush1.bf16.xpose.msra.mxu0 0
      %361 = vmatprep.subr.bf16.mxu0 0
      %362 = vmatpush1.bf16.xpose.msra.mxu0 0
      %363 = vmatprep.subr.bf16.mxu0 0
      %364 = vmatpush1.bf16.xpose.msra.mxu0 0
      %365 = vmatprep.subr.bf16.mxu0 0
      %366 = vmatpush1.bf16.xpose.msra.mxu0 0
      %367 = vmatprep.mubr.bf16.mxu0 0
      %368 = vmatmul.mubr.bf16.gmra.mrb[0].mxu0 %v330
      %v369 = vpop.f32.mrb[0].mxu0
      %v370 = vadd.f32 %v212, %v369
      %v371 = vpop.f32.mrb[0].mxu0
      %v372 = vpop.f32.mrb[0].mxu0
      %v373 = vpop.f32.mrb[0].mxu0
      %374 = vdwg.mxu0
      %v375 = vsel %vm261, %v370, -inf
      %376 = vmax.xlane.f32.xlu0 %v375
      %v377 = vpop.xlane.xlu0 %376
      %v378 = vsub.f32 %v370, %v377
      %v379 = vmul.f32 %v378, 1.442695
      %v380 = vpow.pop %v379
      %v381 = vsel %vm261, %v380, 0.0
      %382 = vadd.xlane.f32.xlu0 %v381
      %v383 = vpop.xlane.xlu0 %382
      %v384 = vpack.c.bf16 %v380, %v380
      %385 = vrot.lane.b32.xlu0 %v207, 88
      %v386 = vpop.permute.xlu0 %385
      %v388 = vsel %vm261, %v384, 0
      %v391 = vsel %vm278, %v386, 0
      %393 = vmatprep.subr.bf16.mxu0 0
      %394 = vmatpush1.bf16.msra.mxu0 %v391
      %395 = vmatprep.subr.bf16.mxu0 0
      %396 = vmatpush1.bf16.msra.mxu0 0
      %397 = vmatprep.subr.bf16.mxu0 0
      %398 = vmatpush1.bf16.msra.mxu0 0
      %399 = vmatprep.subr.bf16.mxu0 0
      %400 = vmatpush1.bf16.msra.mxu0 0
      %401 = vmatprep.subr.bf16.mxu0 0
      %402 = vmatpush1.bf16.msra.mxu0 0
      %403 = vmatprep.subr.bf16.mxu0 0
      %404 = vmatpush1.bf16.msra.mxu0 0
      %405 = vmatprep.subr.bf16.mxu0 0
      %406 = vmatpush1.bf16.msra.mxu0 0
      %407 = vmatprep.subr.bf16.mxu0 0
      %408 = vmatpush1.bf16.msra.mxu0 0
      %409 = vmatprep.subr.bf16.mxu0 0
      %410 = vmatpush1.bf16.msra.mxu0 0
      %411 = vmatprep.subr.bf16.mxu0 0
      %412 = vmatpush1.bf16.msra.mxu0 0
      %413 = vmatprep.subr.bf16.mxu0 0
      %414 = vmatpush1.bf16.msra.mxu0 0
      %415 = vmatprep.subr.bf16.mxu0 0
      %416 = vmatpush1.bf16.msra.mxu0 0
      %417 = vmatprep.subr.bf16.mxu0 0
      %418 = vmatpush1.bf16.msra.mxu0 0
      %419 = vmatprep.subr.bf16.mxu0 0
      %420 = vmatpush1.bf16.msra.mxu0 0
      %421 = vmatprep.subr.bf16.mxu0 0
      %422 = vmatpush1.bf16.msra.mxu0 0
      %423 = vmatprep.subr.bf16.mxu0 0
      %424 = vmatpush1.bf16.msra.mxu0 0
      %425 = vmatprep.mubr.bf16.mxu0 0
      %426 = vmatmul.mubr.bf16.gmra.mrb[0].mxu0 %v388
      %v427 = vpop.f32.mrb[0].mxu0
      %v428 = vadd.f32 0.0, %v427
      %v429 = vpop.f32.mrb[0].mxu0
      %v430 = vpop.f32.mrb[0].mxu0
      %v431 = vpop.f32.mrb[0].mxu0
      %432 = vdwg.mxu0
      %v433 = vrcp.pop %v383
      %v434 = vmul.f32 %v428, %v433
      %435 = vrot.lane.b32.xlu0 %v206, 112
      %v436 = vpop.permute.xlu0 %435
      %437 = vrot.lane.b32.xlu0 %v207, 112
      %v438 = vpop.permute.xlu0 %437
      %v440 = vsel %vm214, %v436, 0
      %v443 = vsel %vm214, %v438, 0
      %445 = vmatprep.subr.bf16.mxu0 0
      %446 = vmatpush1.bf16.xpose.msra.mxu0 %v443
      %447 = vmatprep.subr.bf16.mxu0 0
      %448 = vmatpush1.bf16.xpose.msra.mxu0 0
      %449 = vmatprep.subr.bf16.mxu0 0
      %450 = vmatpush1.bf16.xpose.msra.mxu0 0
      %451 = vmatprep.subr.bf16.mxu0 0
      %452 = vmatpush1.bf16.xpose.msra.mxu0 0
      %453 = vmatprep.subr.bf16.mxu0 0
      %454 = vmatpush1.bf16.xpose.msra.mxu0 0
      %455 = vmatprep.subr.bf16.mxu0 0
      %456 = vmatpush1.bf16.xpose.msra.mxu0 0
      %457 = vmatprep.subr.bf16.mxu0 0
      %458 = vmatpush1.bf16.xpose.msra.mxu0 0
      %459 = vmatprep.subr.bf16.mxu0 0
      %460 = vmatpush1.bf16.xpose.msra.mxu0 0
      %461 = vmatprep.subr.bf16.mxu0 0
      %462 = vmatpush1.bf16.xpose.msra.mxu0 0
      %463 = vmatprep.subr.bf16.mxu0 0
      %464 = vmatpush1.bf16.xpose.msra.mxu0 0
      %465 = vmatprep.subr.bf16.mxu0 0
      %466 = vmatpush1.bf16.xpose.msra.mxu0 0
      %467 = vmatprep.subr.bf16.mxu0 0
      %468 = vmatpush1.bf16.xpose.msra.mxu0 0
      %469 = vmatprep.subr.bf16.mxu0 0
      %470 = vmatpush1.bf16.xpose.msra.mxu0 0
      %471 = vmatprep.subr.bf16.mxu0 0
      %472 = vmatpush1.bf16.xpose.msra.mxu0 0
      %473 = vmatprep.subr.bf16.mxu0 0
      %474 = vmatpush1.bf16.xpose.msra.mxu0 0
      %475 = vmatprep.subr.bf16.mxu0 0
      %476 = vmatpush1.bf16.xpose.msra.mxu0 0
      %477 = vmatprep.mubr.bf16.mxu0 0
      %478 = vmatmul.mubr.bf16.gmra.mrb[0].mxu0 %v440
      %v479 = vpop.f32.mrb[0].mxu0
      %v480 = vadd.f32 %v212, %v479
      %v481 = vpop.f32.mrb[0].mxu0
      %v482 = vpop.f32.mrb[0].mxu0
      %v483 = vpop.f32.mrb[0].mxu0
      %484 = vdwg.mxu0
      %v485 = vsel %vm261, %v480, -inf
      %486 = vmax.xlane.f32.xlu0 %v485
      %v487 = vpop.xlane.xlu0 %486
      %v488 = vsub.f32 %v480, %v487
      %v489 = vmul.f32 %v488, 1.442695
      %v490 = vpow.pop %v489
      %v491 = vsel %vm261, %v490, 0.0
      %492 = vadd.xlane.f32.xlu0 %v491
      %v493 = vpop.xlane.xlu0 %492
      %v494 = vpack.c.bf16 %v490, %v490
      %495 = vrot.lane.b32.xlu0 %v207, 80
      %v496 = vpop.permute.xlu0 %495
      %v498 = vsel %vm261, %v494, 0
      %v501 = vsel %vm278, %v496, 0
      %503 = vmatprep.subr.bf16.mxu0 0
      %504 = vmatpush1.bf16.msra.mxu0 %v501
      %505 = vmatprep.subr.bf16.mxu0 0
      %506 = vmatpush1.bf16.msra.mxu0 0
      %507 = vmatprep.subr.bf16.mxu0 0
      %508 = vmatpush1.bf16.msra.mxu0 0
      %509 = vmatprep.subr.bf16.mxu0 0
      %510 = vmatpush1.bf16.msra.mxu0 0
      %511 = vmatprep.subr.bf16.mxu0 0
      %512 = vmatpush1.bf16.msra.mxu0 0
      %513 = vmatprep.subr.bf16.mxu0 0
      %514 = vmatpush1.bf16.msra.mxu0 0
      %515 = vmatprep.subr.bf16.mxu0 0
      %516 = vmatpush1.bf16.msra.mxu0 0
      %517 = vmatprep.subr.bf16.mxu0 0
      %518 = vmatpush1.bf16.msra.mxu0 0
      %519 = vmatprep.subr.bf16.mxu0 0
      %520 = vmatpush1.bf16.msra.mxu0 0
      %521 = vmatprep.subr.bf16.mxu0 0
      %522 = vmatpush1.bf16.msra.mxu0 0
      %523 = vmatprep.subr.bf16.mxu0 0
      %524 = vmatpush1.bf16.msra.mxu0 0
      %525 = vmatprep.subr.bf16.mxu0 0
      %526 = vmatpush1.bf16.msra.mxu0 0
      %527 = vmatprep.subr.bf16.mxu0 0
      %528 = vmatpush1.bf16.msra.mxu0 0
      %529 = vmatprep.subr.bf16.mxu0 0
      %530 = vmatpush1.bf16.msra.mxu0 0
      %531 = vmatprep.subr.bf16.mxu0 0
      %532 = vmatpush1.bf16.msra.mxu0 0
      %533 = vmatprep.subr.bf16.mxu0 0
      %534 = vmatpush1.bf16.msra.mxu0 0
      %535 = vmatprep.mubr.bf16.mxu0 0
      %536 = vmatmul.mubr.bf16.gmra.mrb[0].mxu0 %v498
      %v537 = vpop.f32.mrb[0].mxu0
      %v538 = vadd.f32 0.0, %v537
      %v539 = vpop.f32.mrb[0].mxu0
      %v540 = vpop.f32.mrb[0].mxu0
      %v541 = vpop.f32.mrb[0].mxu0
      %542 = vdwg.mxu0
      %v543 = vrcp.pop %v493
      %v544 = vmul.f32 %v538, %v543
      %545 = vrot.lane.b32.xlu0 %v206, 104
      %v546 = vpop.permute.xlu0 %545
      %547 = vrot.lane.b32.xlu0 %v207, 104
      %v548 = vpop.permute.xlu0 %547
      %v550 = vsel %vm214, %v546, 0
      %v553 = vsel %vm214, %v548, 0
      %555 = vmatprep.subr.bf16.mxu0 0
      %556 = vmatpush1.bf16.xpose.msra.mxu0 %v553
      %557 = vmatprep.subr.bf16.mxu0 0
      %558 = vmatpush1.bf16.xpose.msra.mxu0 0
      %559 = vmatprep.subr.bf16.mxu0 0
      %560 = vmatpush1.bf16.xpose.msra.mxu0 0
      %561 = vmatprep.subr.bf16.mxu0 0
      %562 = vmatpush1.bf16.xpose.msra.mxu0 0
      %563 = vmatprep.subr.bf16.mxu0 0
      %564 = vmatpush1.bf16.xpose.msra.mxu0 0
      %565 = vmatprep.subr.bf16.mxu0 0
      %566 = vmatpush1.bf16.xpose.msra.mxu0 0
      %567 = vmatprep.subr.bf16.mxu0 0
      %568 = vmatpush1.bf16.xpose.msra.mxu0 0
      %569 = vmatprep.subr.bf16.mxu0 0
      %570 = vmatpush1.bf16.xpose.msra.mxu0 0
      %571 = vmatprep.subr.bf16.mxu0 0
      %572 = vmatpush1.bf16.xpose.msra.mxu0 0
      %573 = vmatprep.subr.bf16.mxu0 0
      %574 = vmatpush1.bf16.xpose.msra.mxu0 0
      %575 = vmatprep.subr.bf16.mxu0 0
      %576 = vmatpush1.bf16.xpose.msra.mxu0 0
      %577 = vmatprep.subr.bf16.mxu0 0
      %578 = vmatpush1.bf16.xpose.msra.mxu0 0
      %579 = vmatprep.subr.bf16.mxu0 0
      %580 = vmatpush1.bf16.xpose.msra.mxu0 0
      %581 = vmatprep.subr.bf16.mxu0 0
      %582 = vmatpush1.bf16.xpose.msra.mxu0 0
      %583 = vmatprep.subr.bf16.mxu0 0
      %584 = vmatpush1.bf16.xpose.msra.mxu0 0
      %585 = vmatprep.subr.bf16.mxu0 0
      %586 = vmatpush1.bf16.xpose.msra.mxu0 0
      %587 = vmatprep.mubr.bf16.mxu0 0
      %588 = vmatmul.mubr.bf16.gmra.mrb[0].mxu0 %v550
      %v589 = vpop.f32.mrb[0].mxu0
      %v590 = vadd.f32 %v212, %v589
      %v591 = vpop.f32.mrb[0].mxu0
      %v592 = vpop.f32.mrb[0].mxu0
      %v593 = vpop.f32.mrb[0].mxu0
      %594 = vdwg.mxu0
      %v595 = vsel %vm261, %v590, -inf
      %596 = vmax.xlane.f32.xlu0 %v595
      %v597 = vpop.xlane.xlu0 %596
      %v598 = vsub.f32 %v590, %v597
      %v599 = vmul.f32 %v598, 1.442695
      %v600 = vpow.pop %v599
      %v601 = vsel %vm261, %v600, 0.0
      %602 = vadd.xlane.f32.xlu0 %v601
      %v603 = vpop.xlane.xlu0 %602
      %v604 = vpack.c.bf16 %v600, %v600
      %605 = vrot.lane.b32.xlu0 %v207, 72
      %v606 = vpop.permute.xlu0 %605
      %v608 = vsel %vm261, %v604, 0
      %v611 = vsel %vm278, %v606, 0
      %613 = vmatprep.subr.bf16.mxu0 0
      %614 = vmatpush1.bf16.msra.mxu0 %v611
      %615 = vmatprep.subr.bf16.mxu0 0
      %616 = vmatpush1.bf16.msra.mxu0 0
      %617 = vmatprep.subr.bf16.mxu0 0
      %618 = vmatpush1.bf16.msra.mxu0 0
      %619 = vmatprep.subr.bf16.mxu0 0
      %620 = vmatpush1.bf16.msra.mxu0 0
      %621 = vmatprep.subr.bf16.mxu0 0
      %622 = vmatpush1.bf16.msra.mxu0 0
      %623 = vmatprep.subr.bf16.mxu0 0
      %624 = vmatpush1.bf16.msra.mxu0 0
      %625 = vmatprep.subr.bf16.mxu0 0
      %626 = vmatpush1.bf16.msra.mxu0 0
      %627 = vmatprep.subr.bf16.mxu0 0
      %628 = vmatpush1.bf16.msra.mxu0 0
      %629 = vmatprep.subr.bf16.mxu0 0
      %630 = vmatpush1.bf16.msra.mxu0 0
      %631 = vmatprep.subr.bf16.mxu0 0
      %632 = vmatpush1.bf16.msra.mxu0 0
      %633 = vmatprep.subr.bf16.mxu0 0
      %634 = vmatpush1.bf16.msra.mxu0 0
      %635 = vmatprep.subr.bf16.mxu0 0
      %636 = vmatpush1.bf16.msra.mxu0 0
      %637 = vmatprep.subr.bf16.mxu0 0
      %638 = vmatpush1.bf16.msra.mxu0 0
      %639 = vmatprep.subr.bf16.mxu0 0
      %640 = vmatpush1.bf16.msra.mxu0 0
      %641 = vmatprep.subr.bf16.mxu0 0
      %642 = vmatpush1.bf16.msra.mxu0 0
      %643 = vmatprep.subr.bf16.mxu0 0
      %644 = vmatpush1.bf16.msra.mxu0 0
      %645 = vmatprep.mubr.bf16.mxu0 0
      %646 = vmatmul.mubr.bf16.gmra.mrb[0].mxu0 %v608
      %v647 = vpop.f32.mrb[0].mxu0
      %v648 = vadd.f32 0.0, %v647
      %v649 = vpop.f32.mrb[0].mxu0
      %v650 = vpop.f32.mrb[0].mxu0
      %v651 = vpop.f32.mrb[0].mxu0
      %652 = vdwg.mxu0
      %v653 = vrcp.pop %v603
      %v654 = vmul.f32 %v648, %v653
      %656 = vrot.lane.b32.xlu0 %v434, 8
      %v657 = vpop.permute.xlu0 %656
      %660 = vrot.lane.b32.xlu0 %v544, 16
      %v661 = vpop.permute.xlu0 %660
      %664 = vrot.lane.b32.xlu0 %v654, 24
      %v665 = vpop.permute.xlu0 %664
      %v667 = vsel %vm214, %v323, %v657
      %vm668 = vcmask 130048
      %v669 = vsel %vm668, %v667, %v661
      %vm670 = vcmask 195584
      %v671 = vsel %vm670, %v669, %v665
      %vm672 = vcmask 261120
      %673 = vst.msk [vmem:[%s199] sm:$0xff] %vm672, %v671
      %p674 = scmp.lt.s32.totalorder %s14, 1
      %s675 = scalar_select %p674, %s14, 1
      %s676 = smul.addr %s675, 8
      %s677 = scalar_lea.vmem %s3, %s676
      // Predicated region
      $region33: #{closed_call.30} parent=31 // pred_check
        %p678 = pneg %p110
      $region34: #{closed_call.30} parent=31 // pred_check_branch
        %680 = sbr.rel (%p678) target = $region36
      $region35: #{closed_call.30} parent=31 // pred_region
        _
      $region36: #{closed_call.30} parent=31 // pred_fallthru
        _
    $region32: #{closed_call.30} parent=5 // pred_fallthru
      _
    %p681 = scmp.le.s32.totalorder 2, %s9
    // Predicated region
    $region37: #{closed_call.30} parent=5 // pred_check
      %p682 = pneg %p681
    $region38: #{closed_call.30} parent=5 // pred_check_branch
      %684 = sbr.rel (%p682) target = $region40
    $region39: #{closed_call.30} parent=5 // pred_region
      %s685 = ssub.s32 %s9, 2
      // Predicated region
      $region41: #{closed_call.30} parent=39 // pred_check
        %p686 = pneg %p116
      $region42: #{closed_call.30} parent=39 // pred_check_branch
        %688 = sbr.rel (%p686) target = $region44
      $region43: #{closed_call.30} parent=39 // pred_region
        %p689 = scmp.lt.s32.totalorder %s15, 1
        %s690 = scalar_select %p689, %s15, 1
        %s691 = smul.addr %s690, 8
        %s692 = scalar_lea.vmem %s3, %s691
      $region44: #{closed_call.30} parent=39 // pred_fallthru
        _
    $region40: #{closed_call.30} parent=5 // pred_fallthru
      _
  $region6: #{closed_call.30} parent=0 // loop_footer
    %s13 = sadd.s32 1, %s9
  $region7: #{closed_call.30} parent=0 // loop_footer_branch
    %8 = sbr.rel target = $region3
  $region8: #{closed_call.30} parent=0 // loop_exit
    _

// kernel: closed_call.32
$region0: #{closed_call.32}
  #allocation0 [shape = 'u32[]', space=smem, size = 0x4, offset = 0x4, fixed_abs, tag = 'smem constant byte address 0x4 - core index']
  #allocation1 [shape = 'u32[144,128]{1,0:T(1,128)}', space=vmem, size = 0x12000, scoped, tag = 'internal scratch']
  %s0 = inlined_call_operand.vmem [shape: f32[16,32], index: 0, kind: input, shape index: {}]
  %s1 = inlined_call_operand.vmem [shape: f32[1,32], index: 1, kind: input, shape index: {}]
  %s2 = inlined_call_operand.vmem [shape: f32[1,32], index: 2, kind: input, shape index: {}]
  %s3 = inlined_call_operand.vmem [shape: bf16[32,64], index: 3, kind: input, shape index: {}]
  %s4 = inlined_call_operand.vmem [shape: f32[1,64], index: 4, kind: input, shape index: {}]
  %s5 = inlined_call_operand.vmem [shape: bf16[64,32], index: 5, kind: input, shape index: {}]
  %s6 = inlined_call_operand.vmem [shape: f32[1,32], index: 6, kind: input, shape index: {}]
  %s7 = inlined_call_operand.vmem [shape: f32[16,32], index: 7, kind: output, shape index: {}]
  %s8 = sld [smem:[#allocation0]]
  $region38: #{closed_call.32} parent=0
    _
  %s10 = ssub.s32 1, %s8
  %s11 = scalar_select 0, %s10, %s8
  // Predicated region
  $region2: #{closed_call.32} parent=0 // pred_check
    _
  $region3: #{closed_call.32} parent=0 // pred_check_branch
    %13 = sbr.rel (0) target = $region5
  $region4: #{closed_call.32} parent=0 // pred_region
    _
  $region5: #{closed_call.32} parent=0 // pred_fallthru
    _
  // Predicated region
  $region6: #{closed_call.32} parent=0 // pred_check
    _
  $region7: #{closed_call.32} parent=0 // pred_check_branch
    %15 = sbr.rel (0) target = $region9
  $region8: #{closed_call.32} parent=0 // pred_region
    _
  $region9: #{closed_call.32} parent=0 // pred_fallthru
    _
  // Predicated region
  $region10: #{closed_call.32} parent=0 // pred_check
    _
  $region11: #{closed_call.32} parent=0 // pred_check_branch
    %17 = sbr.rel (0) target = $region13
  $region12: #{closed_call.32} parent=0 // pred_region
    _
  $region13: #{closed_call.32} parent=0 // pred_fallthru
    _
  // Predicated region
  $region14: #{closed_call.32} parent=0 // pred_check
    _
  $region15: #{closed_call.32} parent=0 // pred_check_branch
    %19 = sbr.rel (0) target = $region17
  $region16: #{closed_call.32} parent=0 // pred_region
    _
  $region17: #{closed_call.32} parent=0 // pred_fallthru
    _
  // Predicated region
  $region18: #{closed_call.32} parent=0 // pred_check
    _
  $region19: #{closed_call.32} parent=0 // pred_check_branch
    %21 = sbr.rel (0) target = $region21
  $region20: #{closed_call.32} parent=0 // pred_region
    _
  $region21: #{closed_call.32} parent=0 // pred_fallthru
    _
  // Predicated region
  $region22: #{closed_call.32} parent=0 // pred_check
    _
  $region23: #{closed_call.32} parent=0 // pred_check_branch
    %23 = sbr.rel (0) target = $region25
  $region24: #{closed_call.32} parent=0 // pred_region
    _
  $region25: #{closed_call.32} parent=0 // pred_fallthru
    _
  // Predicated region
  $region26: #{closed_call.32} parent=0 // pred_check
    _
  $region27: #{closed_call.32} parent=0 // pred_check_branch
    %25 = sbr.rel (0) target = $region29
  $region28: #{closed_call.32} parent=0 // pred_region
    _
  $region29: #{closed_call.32} parent=0 // pred_fallthru
    _
  %v27 = vld [vmem:[%s0] sm:$0xff]
  %v28 = vld [vmem:[%s0 + $0x8] sm:$0xff]
  %vm29 = vcmask 261120
  %v30 = vsel %vm29, %v27, 0.0
  %31 = vadd.xlane.f32.xlu0 %v30
  %v32 = vpop.xlane.xlu0 %31
  %v33 = vsel %vm29, %v28, 0.0
  %34 = vadd.xlane.f32.xlu0 %v33
  %v35 = vpop.xlane.xlu0 %34
  %v36 = vrcp.pop 32.0
  %v37 = vmul.f32 %v32, %v36
  %v38 = vmul.f32 %v35, %v36
  %v39 = vsub.f32 %v27, %v37
  %v40 = vsub.f32 %v28, %v38
  %v41 = vmul.f32 %v39, %v39
  %v42 = vmul.f32 %v40, %v40
  %v43 = vsel %vm29, %v41, 0.0
  %44 = vadd.xlane.f32.xlu0 %v43
  %v45 = vpop.xlane.xlu0 %44
  %v46 = vsel %vm29, %v42, 0.0
  %47 = vadd.xlane.f32.xlu0 %v46
  %v48 = vpop.xlane.xlu0 %47
  %v49 = vmul.f32 %v45, %v36
  %v50 = vmul.f32 %v48, %v36
  %v51 = vadd.f32 %v49, 1e-05
  %v52 = vadd.f32 %v50, 1e-05
  %v53 = vrsqrt.pop %v51
  %v54 = vrsqrt.pop %v52
  %v55 = vmul.f32 %v39, %v53
  %v56 = vmul.f32 %v40, %v54
  %v57 = vld [vmem:[%s1] sm:$0x1]
  %v59 = vlaneseq
  %v60 = vshrl.u32 %v59, 7
  %v61 = vsub.s32 0, %v60
  %v62 = vrot.slane %v57, %v61
  %v64 = vmul.f32 %v55, %v62
  %v65 = vmul.f32 %v56, %v62
  %v66 = vld [vmem:[%s2] sm:$0x1]
  %v68 = vlaneseq
  %v69 = vshrl.u32 %v68, 7
  %v70 = vsub.s32 0, %v69
  %v71 = vrot.slane %v66, %v70
  %v73 = vadd.f32 %v64, %v71
  %v74 = vadd.f32 %v65, %v71
  %v75 = vpack.c.bf16 %v74, %v73
  %v76 = vld [vmem:[%s3] sm:$0xf]
  %v77 = vld [vmem:[%s3 + $0x4] sm:$0xf]
  %v78 = vld [vmem:[%s3 + $0x8] sm:$0xf]
  %v79 = vld [vmem:[%s3 + $0xc] sm:$0xf]
  %v80 = vld [vmem:[%s4] sm:$0x1]
  %v82 = vlaneseq
  %v83 = vshrl.u32 %v82, 7
  %v84 = vsub.s32 0, %v83
  %v85 = vrot.slane %v80, %v84
  %v91 = vunpack.c.l.b16 %v76
  %v92 = vunpack.c.l.b16 %v77
  %v93 = vunpack.c.l.b16 %v78
  %v94 = vunpack.c.l.b16 %v79
  %v95 = vpack.c.b16 %v92, %v91
  %v96 = vpack.c.b16 %v94, %v93
  %v100 = vsel %vm29, %v75, 0
  %102 = vmatprep.subr.bf16.mxu0 0
  %103 = vmatpush1.bf16.msra.mxu0 %v95
  %104 = vmatprep.subr.bf16.mxu0 0
  %105 = vmatpush1.bf16.msra.mxu0 %v96
  %106 = vmatprep.subr.bf16.mxu0 0
  %107 = vmatpush1.bf16.msra.mxu0 0
  %108 = vmatprep.subr.bf16.mxu0 0
  %109 = vmatpush1.bf16.msra.mxu0 0
  %110 = vmatprep.subr.bf16.mxu0 0
  %111 = vmatpush1.bf16.msra.mxu0 0
  %112 = vmatprep.subr.bf16.mxu0 0
  %113 = vmatpush1.bf16.msra.mxu0 0
  %114 = vmatprep.subr.bf16.mxu0 0
  %115 = vmatpush1.bf16.msra.mxu0 0
  %116 = vmatprep.subr.bf16.mxu0 0
  %117 = vmatpush1.bf16.msra.mxu0 0
  %118 = vmatprep.subr.bf16.mxu0 0
  %119 = vmatpush1.bf16.msra.mxu0 0
  %120 = vmatprep.subr.bf16.mxu0 0
  %121 = vmatpush1.bf16.msra.mxu0 0
  %122 = vmatprep.subr.bf16.mxu0 0
  %123 = vmatpush1.bf16.msra.mxu0 0
  %124 = vmatprep.subr.bf16.mxu0 0
  %125 = vmatpush1.bf16.msra.mxu0 0
  %126 = vmatprep.subr.bf16.mxu0 0
  %127 = vmatpush1.bf16.msra.mxu0 0
  %128 = vmatprep.subr.bf16.mxu0 0
  %129 = vmatpush1.bf16.msra.mxu0 0
  %130 = vmatprep.subr.bf16.mxu0 0
  %131 = vmatpush1.bf16.msra.mxu0 0
  %132 = vmatprep.subr.bf16.mxu0 0
  %133 = vmatpush1.bf16.msra.mxu0 0
  %134 = vmatprep.mubr.bf16.mxu0 0
  %135 = vmatmul.mubr.bf16.gmra.mrb[0].mxu0 %v100
  %v136 = vpop.f32.mrb[0].mxu0
  %v137 = vadd.f32 %v85, %v136
  %v138 = vpop.f32.mrb[0].mxu0
  %v139 = vpop.f32.mrb[0].mxu0
  %v140 = vadd.f32 %v85, %v139
  %v141 = vpop.f32.mrb[0].mxu0
  %142 = vdwg.mxu0
  %v143 = vmax.f32 %v137, 0.0
  %v144 = vmax.f32 %v140, 0.0
  %v145 = vpack.c.bf16 %v144, %v143
  %v146 = vld [vmem:[%s5] sm:$0xf]
  %v147 = vld [vmem:[%s5 + $0x4] sm:$0xf]
  %v148 = vld [vmem:[%s5 + $0x8] sm:$0xf]
  %v149 = vld [vmem:[%s5 + $0xc] sm:$0xf]
  %v150 = vld [vmem:[%s5 + $0x10] sm:$0xf]
  %v151 = vld [vmem:[%s5 + $0x14] sm:$0xf]
  %v152 = vld [vmem:[%s5 + $0x18] sm:$0xf]
  %v153 = vld [vmem:[%s5 + $0x1c] sm:$0xf]
  %v154 = vld [vmem:[%s6] sm:$0x1]
  %v156 = vlaneseq
  %v157 = vshrl.u32 %v156, 7
  %v158 = vsub.s32 0, %v157
  %v159 = vrot.slane %v154, %v158
  %v169 = vunpack.c.l.b16 %v146
  %v170 = vunpack.c.l.b16 %v147
  %v171 = vunpack.c.l.b16 %v148
  %v172 = vunpack.c.l.b16 %v149
  %v173 = vunpack.c.l.b16 %v150
  %v174 = vunpack.c.l.b16 %v151
  %v175 = vunpack.c.l.b16 %v152
  %v176 = vunpack.c.l.b16 %v153
  %v177 = vpack.c.b16 %v170, %v169
  %v178 = vpack.c.b16 %v172, %v171
  %v179 = vpack.c.b16 %v174, %v173
  %v180 = vpack.c.b16 %v176, %v175
  %vm185 = vcmask 523264
  %v187 = vsel %vm185, %v145, 0
  %189 = vmatprep.subr.bf16.mxu0 0
  %190 = vmatpush1.bf16.msra.mxu0 %v177
  %191 = vmatprep.subr.bf16.mxu0 0
  %192 = vmatpush1.bf16.msra.mxu0 %v178
  %193 = vmatprep.subr.bf16.mxu0 0
  %194 = vmatpush1.bf16.msra.mxu0 %v179
  %195 = vmatprep.subr.bf16.mxu0 0
  %196 = vmatpush1.bf16.msra.mxu0 %v180
  %197 = vmatprep.subr.bf16.mxu0 0
  %198 = vmatpush1.bf16.msra.mxu0 0
  %199 = vmatprep.subr.bf16.mxu0 0
  %200 = vmatpush1.bf16.msra.mxu0 0
  %201 = vmatprep.subr.bf16.mxu0 0
  %202 = vmatpush1.bf16.msra.mxu0 0
  %203 = vmatprep.subr.bf16.mxu0 0
  %204 = vmatpush1.bf16.msra.mxu0 0
  %205 = vmatprep.subr.bf16.mxu0 0
  %206 = vmatpush1.bf16.msra.mxu0 0
  %207 = vmatprep.subr.bf16.mxu0 0
  %208 = vmatpush1.bf16.msra.mxu0 0
  %209 = vmatprep.subr.bf16.mxu0 0
  %210 = vmatpush1.bf16.msra.mxu0 0
  %211 = vmatprep.subr.bf16.mxu0 0
  %212 = vmatpush1.bf16.msra.mxu0 0
  %213 = vmatprep.subr.bf16.mxu0 0
  %214 = vmatpush1.bf16.msra.mxu0 0
  %215 = vmatprep.subr.bf16.mxu0 0
  %216 = vmatpush1.bf16.msra.mxu0 0
  %217 = vmatprep.subr.bf16.mxu0 0
  %218 = vmatpush1.bf16.msra.mxu0 0
  %219 = vmatprep.subr.bf16.mxu0 0
  %220 = vmatpush1.bf16.msra.mxu0 0
  %221 = vmatprep.mubr.bf16.mxu0 0
  %222 = vmatmul.mubr.bf16.gmra.mrb[0].mxu0 %v187
  %v223 = vpop.f32.mrb[0].mxu0
  %v224 = vadd.f32 %v159, %v223
  %v225 = vpop.f32.mrb[0].mxu0
  %v226 = vpop.f32.mrb[0].mxu0
  %v227 = vadd.f32 %v159, %v226
  %v228 = vpop.f32.mrb[0].mxu0
  %229 = vdwg.mxu0
  %v230 = vadd.f32 %v27, %v224
  %v231 = vadd.f32 %v28, %v227
  %232 = vst.msk [vmem:[%s7] sm:$0xff] %vm29, %v230
  %233 = vst.msk [vmem:[%s7 + $0x8] sm:$0xff] %vm29, %v231
  // Predicated region
  $region30: #{closed_call.32} parent=0 // pred_check
    _
  $region31: #{closed_call.32} parent=0 // pred_check_branch
    %235 = sbr.rel (0) target = $region33
  $region32: #{closed_call.32} parent=0 // pred_region
    _
  $region33: #{closed_call.32} parent=0 // pred_fallthru
    _
  // Predicated region
  $region34: #{closed_call.32} parent=0 // pred_check
    _
  $region35: #{closed_call.32} parent=0 // pred_check_branch
    %237 = sbr.rel (0) target = $region37
  $region36: #{closed_call.32} parent=0 // pred_region
    _
  $region37: #{closed_call.32} parent=0 // pred_fallthru
    _

</llo_original>
